<compile_context>
chip_gen: v5e
topology: v5e:2x2
jax: 0.10.0
libtpu: 0.0.40
codegen_flags: <defaults>
</compile_context>

<pallas_src>
import jax
import jax.numpy as jnp
from jax.experimental import pallas as pl
from jax.experimental.pallas import tpu as pltpu

NUM_LAYERS = 3                 # GraphGIN num_layers (INCLUDING input layer)
NUM_GIN = NUM_LAYERS - 1       # number of GIN propagation layers
NUM_MLP_LAYERS = 2             # MLP num_layers (EXCLUDING the input layer)
N_NODES = 9                    # fixed by BatchNorm1d(9) in the reference module


def graph_gin_kernel(x_ref, adj_ref, eps_ref,
                     w_lin_ref, b_lin_ref,
                     w_lm_ref, b_lm_ref,
                     w_mlp_a_ref, b_mlp_a_ref,
                     w_mlp_b_ref, b_mlp_b_ref,
                     bn_scale_ref, bn_shift_ref,
                     w_f_ref, b_f_ref,
                     out_ref):
  """One grid step processes TB graphs entirely in VMEM.

  x_ref:   (TB*N, Din)        node features, batch+node flattened
  adj_ref: (TB, N, N)         relation-presummed adjacency
  bn_*:    (n_bn, TB*N, 1)    eval-mode BN affine params, tiled over TB graphs
  out_ref: (TB*N, F1)
  """
  x = x_ref[...]                    # (TB*N, Din)
  adj = adj_ref[...]                # (TB, N, N)
  tb, n, _ = adj.shape
  tbn = x.shape[0]
  f0 = w_lin_ref.shape[1]

  def bn(v, idx):
    # eval-mode BatchNorm1d(9): channel axis is the node axis, tiled to TB*N rows
    return v * bn_scale_ref[idx] + bn_shift_ref[idx]      # (TB*N,1) lane-broadcast

  h = x
  h_sum = None

  for layer in range(NUM_GIN):
    # self.linear (layer 0) / self.linear_m[layer-1] (layer > 0) -- flat matmul
    if layer == 0:
      lin_h = jnp.dot(h, w_lin_ref[...],
                      preferred_element_type=jnp.float32) + b_lin_ref[...]
    else:
      lin_h = jnp.dot(h, w_lm_ref[layer - 1],
                      preferred_element_type=jnp.float32) + b_lm_ref[layer - 1]

    # Neighborhood aggregation: per-graph (N,N)@(N,F0) batched matmul.
    # adj was pre-summed over relations in the wrapper (linear in adj).
    lin_h3 = lin_h.reshape(tb, n, f0)
    pooled3 = jnp.einsum("bij,bjf->bif", adj, lin_h3,
                         preferred_element_type=jnp.float32)
    pooled3 = pooled3 + (1.0 + eps_ref[layer]) * lin_h3
    pooled = pooled3.reshape(tbn, f0)

    # MLP(num_mlp_layers=2): linear_a -> BatchNorm1d(9) -> relu -> linear_b
    t = jnp.dot(pooled, w_mlp_a_ref[layer],
                preferred_element_type=jnp.float32) + b_mlp_a_ref[layer]
    t = jnp.maximum(bn(t, 2 * layer), 0.0)
    pooled_rep = jnp.dot(t, w_mlp_b_ref[layer],
                         preferred_element_type=jnp.float32) + b_mlp_b_ref[layer]

    # outer BatchNorm + relu
    h = jnp.maximum(bn(pooled_rep, 2 * layer + 1), 0.0)

    # linear_f is layer-independent: accumulate h and project once at the end.
    h_sum = h if h_sum is None else h_sum + h

  # output = sum_layers dropout(linear_f(h))  (dropout == identity at inference)
  out_ref[...] = (jnp.dot(h_sum, w_f_ref[...],
                          preferred_element_type=jnp.float32)
                  + float(NUM_GIN) * b_f_ref[...])


def _round_up(v, m):
  return (v + m - 1) // m * m


def graph_gin_forward(x, adj, params, tb=128):
  """x: (B, N, Din), adj: (B, R, N, N). Returns (B, N, F1)."""
  B, N, Din = x.shape
  F1 = params["w_f"].shape[1]

  # TB graphs per grid step; TB*N must be a multiple of 8 => TB multiple of 8.
  tb = max(8, (tb // 8) * 8)
  tb = min(tb, _round_up(B, 8))          # don't pad more than necessary
  B_pad = _round_up(B, tb)
  if B_pad != B:
    x = jnp.pad(x, ((0, B_pad - B), (0, 0), (0, 0)))
    adj = jnp.pad(adj, ((0, B_pad - B), (0, 0), (0, 0), (0, 0)))

  # Pre-sum adjacency over the relation axis (R x less DMA, no in-kernel reduce).
  adj_sum = jnp.sum(adj, axis=1)                      # (B_pad, N, N)
  # Flatten batch+node for the per-node dense layers and the output slab.
  x_flat = x.reshape(B_pad * N, Din)                  # (B_pad*N, Din)
  # Tile the per-node BN affine params to the flat (tb*N, 1) layout.
  bn_scale = jnp.tile(params["bn_scale"], (1, tb, 1))  # (n_bn, tb*N, 1)
  bn_shift = jnp.tile(params["bn_shift"], (1, tb, 1))

  vmem = lambda: pl.BlockSpec(memory_space=pltpu.MemorySpace.VMEM)
  smem = pl.BlockSpec(memory_space=pltpu.MemorySpace.SMEM)

  in_specs = [
      pl.BlockSpec((tb * N, Din), lambda b: (b, 0)),   # x (flat), tiled over batch
      pl.BlockSpec((tb, N, N), lambda b: (b, 0, 0)),   # adj_sum, tiled over batch
      smem,                                            # eps (scalars)
      vmem(), vmem(),                                  # w_lin, b_lin
      vmem(), vmem(),                                  # w_lm, b_lm
      vmem(), vmem(),                                  # w_mlp_a, b_mlp_a
      vmem(), vmem(),                                  # w_mlp_b, b_mlp_b
      vmem(), vmem(),                                  # bn_scale, bn_shift (tiled)
      vmem(), vmem(),                                  # w_f, b_f
  ]
  out_spec = pl.BlockSpec((tb * N, F1), lambda b: (b, 0))

  out_flat = pl.pallas_call(
      graph_gin_kernel,
      out_shape=jax.ShapeDtypeStruct((B_pad * N, F1), jnp.float32),
      grid=(B_pad // tb,),
      in_specs=in_specs,
      out_specs=out_spec,
      compiler_params=pltpu.CompilerParams(dimension_semantics=("parallel",)),
  )(x_flat, adj_sum, params["eps"],
    params["w_lin"], params["b_lin"],
    params["w_lm"], params["b_lm"],
    params["w_mlp_a"], params["b_mlp_a"],
    params["w_mlp_b"], params["b_mlp_b"],
    bn_scale, bn_shift,
    params["w_f"], params["b_f"])

  return out_flat[: B * N].reshape(B, N, F1)


def graph_gin_ref(x, adj, params):
  """Pure-JAX reference mirroring the PyTorch forward (eval mode)."""
  eps = params["eps"]

  def bn(v, idx):
    return v * params["bn_scale"][idx] + params["bn_shift"][idx]

  h = x
  out = 0.0
  for layer in range(NUM_GIN):
    if layer == 0:
      lin_h = h @ params["w_lin"] + params["b_lin"]
    else:
      lin_h = h @ params["w_lm"][layer - 1] + params["b_lm"][layer - 1]
    pooled = jnp.einsum("brij,bjk->brik", adj, lin_h)
    pooled = pooled.sum(axis=1) + (1.0 + eps[layer]) * lin_h
    t = pooled @ params["w_mlp_a"][layer] + params["b_mlp_a"][layer]
    t = jax.nn.relu(bn(t, 2 * layer))
    pooled_rep = t @ params["w_mlp_b"][layer] + params["b_mlp_b"][layer]
    h = jax.nn.relu(bn(pooled_rep, 2 * layer + 1))
    out = out + (h @ params["w_f"] + params["b_f"])
  return out


def init_params(key, input_dim, out_feature_list, num_layers=NUM_LAYERS):
  F0, F1 = out_feature_list
  keys = jax.random.split(key, 10)
  u = lambda k, shape: jax.random.uniform(k, shape, jnp.float32, -0.1, 0.1)
  params = dict(
      eps=jnp.zeros((num_layers - 1,), jnp.float32),          # nn.Parameter(zeros)
      # weights stored pre-transposed (in, out) so kernel does x @ W
      w_lin=u(keys[0], (input_dim, F0)), b_lin=u(keys[1], (1, F0)),
      w_lm=u(keys[2], (num_layers - 2, F0, F0)),
      b_lm=u(keys[3], (num_layers - 2, 1, F0)),
      w_mlp_a=u(keys[4], (num_layers - 1, F0, F0)),
      b_mlp_a=u(keys[5], (num_layers - 1, 1, F0)),
      w_mlp_b=u(keys[6], (num_layers - 1, F0, F0)),
      b_mlp_b=u(keys[7], (num_layers - 1, 1, F0)),
      w_f=u(keys[8], (F0, F1)), b_f=u(keys[9], (1, F1)),
  )
  # BatchNorm1d(9) eval-mode parameters at PyTorch defaults.
  # index 2*layer   -> BN inside mlps[layer]
  # index 2*layer+1 -> GraphGIN.batch_norms[layer]
  n_bn = 2 * (num_layers - 1)
  gamma = jnp.ones((n_bn, N_NODES, 1), jnp.float32)
  beta = jnp.zeros((n_bn, N_NODES, 1), jnp.float32)
  running_mean = jnp.zeros((n_bn, N_NODES, 1), jnp.float32)
  running_var = jnp.ones((n_bn, N_NODES, 1), jnp.float32)
  scale = gamma * jax.lax.rsqrt(running_var + 1e-5)
  params["bn_scale"] = scale
  params["bn_shift"] = beta - running_mean * scale
  return params


if __name__ == "__main__":
  B, N, R = 16, N_NODES, 4
  input_dim = 16
  out_feature_list = (32, 16)

  key = jax.random.PRNGKey(0)
  kx, ka, kp = jax.random.split(key, 3)
  x = jax.random.normal(kx, (B, N, input_dim), jnp.float32)
  adj = jax.random.uniform(ka, (B, R, N, N), jnp.float32)
  params = init_params(kp, input_dim, out_feature_list)

  # small demo tile: 8 graphs per grid step -> 2 grid blocks (exercises pipelining
  # / megacore sharding); for real workloads use tb=64..256.
  out = graph_gin_forward(x, adj, params, tb=8)
  out = jax.block_until_ready(out)

  ref = graph_gin_ref(x, adj, params)
  assert out.shape == (B, N, out_feature_list[1]), out.shape
  max_err = float(jnp.max(jnp.abs(out - ref)))
  assert max_err < 1e-3, f"max abs err vs reference: {max_err}"

  print("KERNEL_OK")
</pallas_src>

<mosaic_0001>
module attributes {stable_mosaic.version = 11 : i64} {
  func.func @graph_gin_kernel(%arg0: i32, %arg1: memref<72x16xf32, #tpu.memory_space<vmem>>, %arg2: memref<8x9x9xf32, #tpu.memory_space<vmem>>, %arg3: memref<2xf32, #tpu.memory_space<smem>>, %arg4: memref<16x32xf32, #tpu.memory_space<vmem>>, %arg5: memref<1x32xf32, #tpu.memory_space<vmem>>, %arg6: memref<1x32x32xf32, #tpu.memory_space<vmem>>, %arg7: memref<1x1x32xf32, #tpu.memory_space<vmem>>, %arg8: memref<2x32x32xf32, #tpu.memory_space<vmem>>, %arg9: memref<2x1x32xf32, #tpu.memory_space<vmem>>, %arg10: memref<2x32x32xf32, #tpu.memory_space<vmem>>, %arg11: memref<2x1x32xf32, #tpu.memory_space<vmem>>, %arg12: memref<4x72x1xf32, #tpu.memory_space<vmem>>, %arg13: memref<4x72x1xf32, #tpu.memory_space<vmem>>, %arg14: memref<32x16xf32, #tpu.memory_space<vmem>>, %arg15: memref<1x16xf32, #tpu.memory_space<vmem>>, %arg16: memref<72x16xf32, #tpu.memory_space<vmem>>) attributes {dimension_semantics = [#tpu.dimension_semantics<parallel>], iteration_bounds = array<i64: 2>, scalar_prefetch = 0 : i64, scratch_operands = 0 : i64, tpu.core_type = #tpu.core_type<tc>, window_params = [{transform_indices = @transform_0, window_bounds = array<i64: 72, 16>}, {transform_indices = @transform_1, window_bounds = array<i64: 8, 9, 9>}, {transform_indices = @transform_2, window_bounds = array<i64: 2>}, {pipeline_mode = #tpu.pipeline_mode<synchronous>, transform_indices = @transform_3, window_bounds = array<i64: 16, 32>}, {pipeline_mode = #tpu.pipeline_mode<synchronous>, transform_indices = @transform_4, window_bounds = array<i64: 1, 32>}, {pipeline_mode = #tpu.pipeline_mode<synchronous>, transform_indices = @transform_5, window_bounds = array<i64: 1, 32, 32>}, {pipeline_mode = #tpu.pipeline_mode<synchronous>, transform_indices = @transform_6, window_bounds = array<i64: 1, 1, 32>}, {pipeline_mode = #tpu.pipeline_mode<synchronous>, transform_indices = @transform_7, window_bounds = array<i64: 2, 32, 32>}, {pipeline_mode = #tpu.pipeline_mode<synchronous>, transform_indices = @transform_8, window_bounds = array<i64: 2, 1, 32>}, {pipeline_mode = #tpu.pipeline_mode<synchronous>, transform_indices = @transform_9, window_bounds = array<i64: 2, 32, 32>}, {pipeline_mode = #tpu.pipeline_mode<synchronous>, transform_indices = @transform_10, window_bounds = array<i64: 2, 1, 32>}, {pipeline_mode = #tpu.pipeline_mode<synchronous>, transform_indices = @transform_11, window_bounds = array<i64: 4, 72, 1>}, {pipeline_mode = #tpu.pipeline_mode<synchronous>, transform_indices = @transform_12, window_bounds = array<i64: 4, 72, 1>}, {pipeline_mode = #tpu.pipeline_mode<synchronous>, transform_indices = @transform_13, window_bounds = array<i64: 32, 16>}, {pipeline_mode = #tpu.pipeline_mode<synchronous>, transform_indices = @transform_14, window_bounds = array<i64: 1, 16>}, {transform_indices = @transform_15, window_bounds = array<i64: 72, 16>}]} {
    %c0 = arith.constant 0 : index
    %c0_0 = arith.constant 0 : index
    %0 = vector.load %arg1[%c0, %c0_0] : memref<72x16xf32, #tpu.memory_space<vmem>>, vector<72x16xf32>
    %c0_1 = arith.constant 0 : index
    %c0_2 = arith.constant 0 : index
    %c0_3 = arith.constant 0 : index
    %1 = vector.load %arg2[%c0_1, %c0_2, %c0_3] : memref<8x9x9xf32, #tpu.memory_space<vmem>>, vector<8x9x9xf32>
    %c0_4 = arith.constant 0 : index
    %c0_5 = arith.constant 0 : index
    %2 = vector.load %arg4[%c0_4, %c0_5] : memref<16x32xf32, #tpu.memory_space<vmem>>, vector<16x32xf32>
    %cst = arith.constant dense<0.000000e+00> : vector<72x32xf32>
    %3 = tpu.matmul %0, %2, %cst {dimension_numbers = #tpu.dot_dimension_numbers<[1], [0], [0], [1], [0, 0, 1, 1], [], []>} : vector<72x16xf32>, vector<16x32xf32>, vector<72x32xf32> -> vector<72x32xf32>
    %c0_6 = arith.constant 0 : index
    %c0_7 = arith.constant 0 : index
    %4 = vector.load %arg5[%c0_6, %c0_7] : memref<1x32xf32, #tpu.memory_space<vmem>>, vector<1x32xf32>
    %5 = vector.broadcast %4 : vector<1x32xf32> to vector<72x32xf32>
    %6 = arith.addf %3, %5 : vector<72x32xf32>
    %7 = vector.shape_cast %6 : vector<72x32xf32> to vector<8x9x32xf32>
    "tpu.trace_start"() <{level = 10 : i32, message = "bij,bjf->bif"}> : () -> ()
    %cst_8 = arith.constant dense<0.000000e+00> : vector<8x9x32xf32>
    %8 = tpu.matmul %1, %7, %cst_8 {dimension_numbers = #tpu.dot_dimension_numbers<[2], [1], [1], [2], [0, 0, 0, 1, 1, 2], [0], [0]>} : vector<8x9x9xf32>, vector<8x9x32xf32>, vector<8x9x32xf32> -> vector<8x9x32xf32>
    "tpu.trace_stop"() : () -> ()
    %c0_9 = arith.constant 0 : index
    %9 = memref.load %arg3[%c0_9] : memref<2xf32, #tpu.memory_space<smem>>
    %cst_10 = arith.constant 1.000000e+00 : f32
    %10 = arith.addf %cst_10, %9 : f32
    %11 = vector.broadcast %10 : f32 to vector<8x9x32xf32>
    %12 = arith.mulf %11, %7 : vector<8x9x32xf32>
    %13 = arith.addf %8, %12 : vector<8x9x32xf32>
    %14 = vector.shape_cast %13 : vector<8x9x32xf32> to vector<72x32xf32>
    %c0_11 = arith.constant 0 : index
    %c0_12 = arith.constant 0 : index
    %c0_13 = arith.constant 0 : index
    %15 = vector.load %arg8[%c0_11, %c0_12, %c0_13] : memref<2x32x32xf32, #tpu.memory_space<vmem>>, vector<1x32x32xf32>
    %16 = vector.shape_cast %15 : vector<1x32x32xf32> to vector<32x32xf32>
    %cst_14 = arith.constant dense<0.000000e+00> : vector<72x32xf32>
    %17 = tpu.matmul %14, %16, %cst_14 {dimension_numbers = #tpu.dot_dimension_numbers<[1], [0], [0], [1], [0, 0, 1, 1], [], []>} : vector<72x32xf32>, vector<32x32xf32>, vector<72x32xf32> -> vector<72x32xf32>
    %c0_15 = arith.constant 0 : index
    %c0_16 = arith.constant 0 : index
    %c0_17 = arith.constant 0 : index
    %18 = vector.load %arg9[%c0_15, %c0_16, %c0_17] : memref<2x1x32xf32, #tpu.memory_space<vmem>>, vector<1x1x32xf32>
    %19 = vector.shape_cast %18 : vector<1x1x32xf32> to vector<1x32xf32>
    %20 = vector.broadcast %19 : vector<1x32xf32> to vector<72x32xf32>
    %21 = arith.addf %17, %20 : vector<72x32xf32>
    %c0_18 = arith.constant 0 : index
    %c0_19 = arith.constant 0 : index
    %c0_20 = arith.constant 0 : index
    %22 = vector.load %arg12[%c0_18, %c0_19, %c0_20] : memref<4x72x1xf32, #tpu.memory_space<vmem>>, vector<1x72x1xf32>
    %23 = vector.shape_cast %22 : vector<1x72x1xf32> to vector<72x1xf32>
    %24 = vector.broadcast %23 : vector<72x1xf32> to vector<72x32xf32>
    %25 = arith.mulf %21, %24 : vector<72x32xf32>
    %c0_21 = arith.constant 0 : index
    %c0_22 = arith.constant 0 : index
    %c0_23 = arith.constant 0 : index
    %26 = vector.load %arg13[%c0_21, %c0_22, %c0_23] : memref<4x72x1xf32, #tpu.memory_space<vmem>>, vector<1x72x1xf32>
    %27 = vector.shape_cast %26 : vector<1x72x1xf32> to vector<72x1xf32>
    %28 = vector.broadcast %27 : vector<72x1xf32> to vector<72x32xf32>
    %29 = arith.addf %25, %28 : vector<72x32xf32>
    %cst_24 = arith.constant 0.000000e+00 : f32
    %30 = vector.broadcast %cst_24 : f32 to vector<72x32xf32>
    %31 = arith.maximumf %29, %30 : vector<72x32xf32>
    %c0_25 = arith.constant 0 : index
    %c0_26 = arith.constant 0 : index
    %c0_27 = arith.constant 0 : index
    %32 = vector.load %arg10[%c0_25, %c0_26, %c0_27] : memref<2x32x32xf32, #tpu.memory_space<vmem>>, vector<1x32x32xf32>
    %33 = vector.shape_cast %32 : vector<1x32x32xf32> to vector<32x32xf32>
    %cst_28 = arith.constant dense<0.000000e+00> : vector<72x32xf32>
    %34 = tpu.matmul %31, %33, %cst_28 {dimension_numbers = #tpu.dot_dimension_numbers<[1], [0], [0], [1], [0, 0, 1, 1], [], []>} : vector<72x32xf32>, vector<32x32xf32>, vector<72x32xf32> -> vector<72x32xf32>
    %c0_29 = arith.constant 0 : index
    %c0_30 = arith.constant 0 : index
    %c0_31 = arith.constant 0 : index
    %35 = vector.load %arg11[%c0_29, %c0_30, %c0_31] : memref<2x1x32xf32, #tpu.memory_space<vmem>>, vector<1x1x32xf32>
    %36 = vector.shape_cast %35 : vector<1x1x32xf32> to vector<1x32xf32>
    %37 = vector.broadcast %36 : vector<1x32xf32> to vector<72x32xf32>
    %38 = arith.addf %34, %37 : vector<72x32xf32>
    %c1 = arith.constant 1 : index
    %c0_32 = arith.constant 0 : index
    %c0_33 = arith.constant 0 : index
    %39 = vector.load %arg12[%c1, %c0_32, %c0_33] : memref<4x72x1xf32, #tpu.memory_space<vmem>>, vector<1x72x1xf32>
    %40 = vector.shape_cast %39 : vector<1x72x1xf32> to vector<72x1xf32>
    %41 = vector.broadcast %40 : vector<72x1xf32> to vector<72x32xf32>
    %42 = arith.mulf %38, %41 : vector<72x32xf32>
    %c1_34 = arith.constant 1 : index
    %c0_35 = arith.constant 0 : index
    %c0_36 = arith.constant 0 : index
    %43 = vector.load %arg13[%c1_34, %c0_35, %c0_36] : memref<4x72x1xf32, #tpu.memory_space<vmem>>, vector<1x72x1xf32>
    %44 = vector.shape_cast %43 : vector<1x72x1xf32> to vector<72x1xf32>
    %45 = vector.broadcast %44 : vector<72x1xf32> to vector<72x32xf32>
    %46 = arith.addf %42, %45 : vector<72x32xf32>
    %cst_37 = arith.constant 0.000000e+00 : f32
    %47 = vector.broadcast %cst_37 : f32 to vector<72x32xf32>
    %48 = arith.maximumf %46, %47 : vector<72x32xf32>
    %c0_38 = arith.constant 0 : index
    %c0_39 = arith.constant 0 : index
    %c0_40 = arith.constant 0 : index
    %49 = vector.load %arg6[%c0_38, %c0_39, %c0_40] : memref<1x32x32xf32, #tpu.memory_space<vmem>>, vector<1x32x32xf32>
    %50 = vector.shape_cast %49 : vector<1x32x32xf32> to vector<32x32xf32>
    %cst_41 = arith.constant dense<0.000000e+00> : vector<72x32xf32>
    %51 = tpu.matmul %48, %50, %cst_41 {dimension_numbers = #tpu.dot_dimension_numbers<[1], [0], [0], [1], [0, 0, 1, 1], [], []>} : vector<72x32xf32>, vector<32x32xf32>, vector<72x32xf32> -> vector<72x32xf32>
    %c0_42 = arith.constant 0 : index
    %c0_43 = arith.constant 0 : index
    %c0_44 = arith.constant 0 : index
    %52 = vector.load %arg7[%c0_42, %c0_43, %c0_44] : memref<1x1x32xf32, #tpu.memory_space<vmem>>, vector<1x1x32xf32>
    %53 = vector.shape_cast %52 : vector<1x1x32xf32> to vector<1x32xf32>
    %54 = vector.broadcast %53 : vector<1x32xf32> to vector<72x32xf32>
    %55 = arith.addf %51, %54 : vector<72x32xf32>
    %56 = vector.shape_cast %55 : vector<72x32xf32> to vector<8x9x32xf32>
    "tpu.trace_start"() <{level = 10 : i32, message = "bij,bjf->bif"}> : () -> ()
    %cst_45 = arith.constant dense<0.000000e+00> : vector<8x9x32xf32>
    %57 = tpu.matmul %1, %56, %cst_45 {dimension_numbers = #tpu.dot_dimension_numbers<[2], [1], [1], [2], [0, 0, 0, 1, 1, 2], [0], [0]>} : vector<8x9x9xf32>, vector<8x9x32xf32>, vector<8x9x32xf32> -> vector<8x9x32xf32>
    "tpu.trace_stop"() : () -> ()
    %c1_46 = arith.constant 1 : index
    %58 = memref.load %arg3[%c1_46] : memref<2xf32, #tpu.memory_space<smem>>
    %cst_47 = arith.constant 1.000000e+00 : f32
    %59 = arith.addf %cst_47, %58 : f32
    %60 = vector.broadcast %59 : f32 to vector<8x9x32xf32>
    %61 = arith.mulf %60, %56 : vector<8x9x32xf32>
    %62 = arith.addf %57, %61 : vector<8x9x32xf32>
    %63 = vector.shape_cast %62 : vector<8x9x32xf32> to vector<72x32xf32>
    %c1_48 = arith.constant 1 : index
    %c0_49 = arith.constant 0 : index
    %c0_50 = arith.constant 0 : index
    %64 = vector.load %arg8[%c1_48, %c0_49, %c0_50] : memref<2x32x32xf32, #tpu.memory_space<vmem>>, vector<1x32x32xf32>
    %65 = vector.shape_cast %64 : vector<1x32x32xf32> to vector<32x32xf32>
    %cst_51 = arith.constant dense<0.000000e+00> : vector<72x32xf32>
    %66 = tpu.matmul %63, %65, %cst_51 {dimension_numbers = #tpu.dot_dimension_numbers<[1], [0], [0], [1], [0, 0, 1, 1], [], []>} : vector<72x32xf32>, vector<32x32xf32>, vector<72x32xf32> -> vector<72x32xf32>
    %c1_52 = arith.constant 1 : index
    %c0_53 = arith.constant 0 : index
    %c0_54 = arith.constant 0 : index
    %67 = vector.load %arg9[%c1_52, %c0_53, %c0_54] : memref<2x1x32xf32, #tpu.memory_space<vmem>>, vector<1x1x32xf32>
    %68 = vector.shape_cast %67 : vector<1x1x32xf32> to vector<1x32xf32>
    %69 = vector.broadcast %68 : vector<1x32xf32> to vector<72x32xf32>
    %70 = arith.addf %66, %69 : vector<72x32xf32>
    %c2 = arith.constant 2 : index
    %c0_55 = arith.constant 0 : index
    %c0_56 = arith.constant 0 : index
    %71 = vector.load %arg12[%c2, %c0_55, %c0_56] : memref<4x72x1xf32, #tpu.memory_space<vmem>>, vector<1x72x1xf32>
    %72 = vector.shape_cast %71 : vector<1x72x1xf32> to vector<72x1xf32>
    %73 = vector.broadcast %72 : vector<72x1xf32> to vector<72x32xf32>
    %74 = arith.mulf %70, %73 : vector<72x32xf32>
    %c2_57 = arith.constant 2 : index
    %c0_58 = arith.constant 0 : index
    %c0_59 = arith.constant 0 : index
    %75 = vector.load %arg13[%c2_57, %c0_58, %c0_59] : memref<4x72x1xf32, #tpu.memory_space<vmem>>, vector<1x72x1xf32>
    %76 = vector.shape_cast %75 : vector<1x72x1xf32> to vector<72x1xf32>
    %77 = vector.broadcast %76 : vector<72x1xf32> to vector<72x32xf32>
    %78 = arith.addf %74, %77 : vector<72x32xf32>
    %cst_60 = arith.constant 0.000000e+00 : f32
    %79 = vector.broadcast %cst_60 : f32 to vector<72x32xf32>
    %80 = arith.maximumf %78, %79 : vector<72x32xf32>
    %c1_61 = arith.constant 1 : index
    %c0_62 = arith.constant 0 : index
    %c0_63 = arith.constant 0 : index
    %81 = vector.load %arg10[%c1_61, %c0_62, %c0_63] : memref<2x32x32xf32, #tpu.memory_space<vmem>>, vector<1x32x32xf32>
    %82 = vector.shape_cast %81 : vector<1x32x32xf32> to vector<32x32xf32>
    %cst_64 = arith.constant dense<0.000000e+00> : vector<72x32xf32>
    %83 = tpu.matmul %80, %82, %cst_64 {dimension_numbers = #tpu.dot_dimension_numbers<[1], [0], [0], [1], [0, 0, 1, 1], [], []>} : vector<72x32xf32>, vector<32x32xf32>, vector<72x32xf32> -> vector<72x32xf32>
    %c1_65 = arith.constant 1 : index
    %c0_66 = arith.constant 0 : index
    %c0_67 = arith.constant 0 : index
    %84 = vector.load %arg11[%c1_65, %c0_66, %c0_67] : memref<2x1x32xf32, #tpu.memory_space<vmem>>, vector<1x1x32xf32>
    %85 = vector.shape_cast %84 : vector<1x1x32xf32> to vector<1x32xf32>
    %86 = vector.broadcast %85 : vector<1x32xf32> to vector<72x32xf32>
    %87 = arith.addf %83, %86 : vector<72x32xf32>
    %c3 = arith.constant 3 : index
    %c0_68 = arith.constant 0 : index
    %c0_69 = arith.constant 0 : index
    %88 = vector.load %arg12[%c3, %c0_68, %c0_69] : memref<4x72x1xf32, #tpu.memory_space<vmem>>, vector<1x72x1xf32>
    %89 = vector.shape_cast %88 : vector<1x72x1xf32> to vector<72x1xf32>
    %90 = vector.broadcast %89 : vector<72x1xf32> to vector<72x32xf32>
    %91 = arith.mulf %87, %90 : vector<72x32xf32>
    %c3_70 = arith.constant 3 : index
    %c0_71 = arith.constant 0 : index
    %c0_72 = arith.constant 0 : index
    %92 = vector.load %arg13[%c3_70, %c0_71, %c0_72] : memref<4x72x1xf32, #tpu.memory_space<vmem>>, vector<1x72x1xf32>
    %93 = vector.shape_cast %92 : vector<1x72x1xf32> to vector<72x1xf32>
    %94 = vector.broadcast %93 : vector<72x1xf32> to vector<72x32xf32>
    %95 = arith.addf %91, %94 : vector<72x32xf32>
    %cst_73 = arith.constant 0.000000e+00 : f32
    %96 = vector.broadcast %cst_73 : f32 to vector<72x32xf32>
    %97 = arith.maximumf %95, %96 : vector<72x32xf32>
    %98 = arith.addf %48, %97 : vector<72x32xf32>
    %c0_74 = arith.constant 0 : index
    %c0_75 = arith.constant 0 : index
    %99 = vector.load %arg14[%c0_74, %c0_75] : memref<32x16xf32, #tpu.memory_space<vmem>>, vector<32x16xf32>
    %cst_76 = arith.constant dense<0.000000e+00> : vector<72x16xf32>
    %100 = tpu.matmul %98, %99, %cst_76 {dimension_numbers = #tpu.dot_dimension_numbers<[1], [0], [0], [1], [0, 0, 1, 1], [], []>} : vector<72x32xf32>, vector<32x16xf32>, vector<72x16xf32> -> vector<72x16xf32>
    %c0_77 = arith.constant 0 : index
    %c0_78 = arith.constant 0 : index
    %101 = vector.load %arg15[%c0_77, %c0_78] : memref<1x16xf32, #tpu.memory_space<vmem>>, vector<1x16xf32>
    %cst_79 = arith.constant 2.000000e+00 : f32
    %102 = vector.broadcast %cst_79 : f32 to vector<1x16xf32>
    %103 = arith.mulf %102, %101 : vector<1x16xf32>
    %104 = vector.broadcast %103 : vector<1x16xf32> to vector<72x16xf32>
    %105 = arith.addf %100, %104 : vector<72x16xf32>
    %c0_80 = arith.constant 0 : index
    %c0_81 = arith.constant 0 : index
    %106 = vector.load %arg16[%c0_80, %c0_81] : memref<72x16xf32, #tpu.memory_space<vmem>>, vector<72x16xf32>
    tpu.vector_store %arg16[%c0_80, %c0_81], %105 {strides = array<i32>} : memref<72x16xf32, #tpu.memory_space<vmem>>, vector<72x16xf32>,
    return
  }
  func.func @transform_0(%arg0: i32) -> (i32, i32) {
    %c0_i32 = arith.constant 0 : i32
    %c0_i32_0 = arith.constant 0 : i32
    return %arg0, %c0_i32 : i32, i32
  }
  func.func @transform_1(%arg0: i32) -> (i32, i32, i32) {
    %c0_i32 = arith.constant 0 : i32
    %c0_i32_0 = arith.constant 0 : i32
    %c0_i32_1 = arith.constant 0 : i32
    return %arg0, %c0_i32, %c0_i32_0 : i32, i32, i32
  }
  func.func @transform_2(%arg0: i32) -> i32 {
    %c0_i32 = arith.constant 0 : i32
    %c0_i32_0 = arith.constant 0 : i32
    return %c0_i32 : i32
  }
  func.func @transform_3(%arg0: i32) -> (i32, i32) {
    %c0_i32 = arith.constant 0 : i32
    %c0_i32_0 = arith.constant 0 : i32
    %c0_i32_1 = arith.constant 0 : i32
    return %c0_i32, %c0_i32_0 : i32, i32
  }
  func.func @transform_4(%arg0: i32) -> (i32, i32) {
    %c0_i32 = arith.constant 0 : i32
    %c0_i32_0 = arith.constant 0 : i32
    %c0_i32_1 = arith.constant 0 : i32
    return %c0_i32, %c0_i32_0 : i32, i32
  }
  func.func @transform_5(%arg0: i32) -> (i32, i32, i32) {
    %c0_i32 = arith.constant 0 : i32
    %c0_i32_0 = arith.constant 0 : i32
    %c0_i32_1 = arith.constant 0 : i32
    %c0_i32_2 = arith.constant 0 : i32
    return %c0_i32, %c0_i32_0, %c0_i32_1 : i32, i32, i32
  }
  func.func @transform_6(%arg0: i32) -> (i32, i32, i32) {
    %c0_i32 = arith.constant 0 : i32
    %c0_i32_0 = arith.constant 0 : i32
    %c0_i32_1 = arith.constant 0 : i32
    %c0_i32_2 = arith.constant 0 : i32
    return %c0_i32, %c0_i32_0, %c0_i32_1 : i32, i32, i32
  }
  func.func @transform_7(%arg0: i32) -> (i32, i32, i32) {
    %c0_i32 = arith.constant 0 : i32
    %c0_i32_0 = arith.constant 0 : i32
    %c0_i32_1 = arith.constant 0 : i32
    %c0_i32_2 = arith.constant 0 : i32
    return %c0_i32, %c0_i32_0, %c0_i32_1 : i32, i32, i32
  }
  func.func @transform_8(%arg0: i32) -> (i32, i32, i32) {
    %c0_i32 = arith.constant 0 : i32
    %c0_i32_0 = arith.constant 0 : i32
    %c0_i32_1 = arith.constant 0 : i32
    %c0_i32_2 = arith.constant 0 : i32
    return %c0_i32, %c0_i32_0, %c0_i32_1 : i32, i32, i32
  }
  func.func @transform_9(%arg0: i32) -> (i32, i32, i32) {
    %c0_i32 = arith.constant 0 : i32
    %c0_i32_0 = arith.constant 0 : i32
    %c0_i32_1 = arith.constant 0 : i32
    %c0_i32_2 = arith.constant 0 : i32
    return %c0_i32, %c0_i32_0, %c0_i32_1 : i32, i32, i32
  }
  func.func @transform_10(%arg0: i32) -> (i32, i32, i32) {
    %c0_i32 = arith.constant 0 : i32
    %c0_i32_0 = arith.constant 0 : i32
    %c0_i32_1 = arith.constant 0 : i32
    %c0_i32_2 = arith.constant 0 : i32
    return %c0_i32, %c0_i32_0, %c0_i32_1 : i32, i32, i32
  }
  func.func @transform_11(%arg0: i32) -> (i32, i32, i32) {
    %c0_i32 = arith.constant 0 : i32
    %c0_i32_0 = arith.constant 0 : i32
    %c0_i32_1 = arith.constant 0 : i32
    %c0_i32_2 = arith.constant 0 : i32
    return %c0_i32, %c0_i32_0, %c0_i32_1 : i32, i32, i32
  }
  func.func @transform_12(%arg0: i32) -> (i32, i32, i32) {
    %c0_i32 = arith.constant 0 : i32
    %c0_i32_0 = arith.constant 0 : i32
    %c0_i32_1 = arith.constant 0 : i32
    %c0_i32_2 = arith.constant 0 : i32
    return %c0_i32, %c0_i32_0, %c0_i32_1 : i32, i32, i32
  }
  func.func @transform_13(%arg0: i32) -> (i32, i32) {
    %c0_i32 = arith.constant 0 : i32
    %c0_i32_0 = arith.constant 0 : i32
    %c0_i32_1 = arith.constant 0 : i32
    return %c0_i32, %c0_i32_0 : i32, i32
  }
  func.func @transform_14(%arg0: i32) -> (i32, i32) {
    %c0_i32 = arith.constant 0 : i32
    %c0_i32_0 = arith.constant 0 : i32
    %c0_i32_1 = arith.constant 0 : i32
    return %c0_i32, %c0_i32_0 : i32, i32
  }
  func.func @transform_15(%arg0: i32) -> (i32, i32) {
    %c0_i32 = arith.constant 0 : i32
    %c0_i32_0 = arith.constant 0 : i32
    return %arg0, %c0_i32 : i32, i32
  }
}

</mosaic_0001>

<llo_original>
// kernel: tpu_custom_call.1
$region0: #{tpu_custom_call.1}
  #allocation0 [shape = 'u32[]', space=smem, size = 0x4, offset = 0x4, fixed_abs, tag = 'smem constant byte address 0x4 - core index']
  #allocation1 [shape = 'u32[72,128]{1,0:T(1,128)}', space=vmem, size = 0x9000, scoped, tag = 'internal scratch']
  %s0 = inlined_call_operand.vmem [shape: f32[144,16], index: 0, kind: input, shape index: {}]
  %s1 = inlined_call_operand.vmem [shape: f32[16,9,9], index: 1, kind: input, shape index: {}]
  %s2 = inlined_call_operand.vmem [shape: f32[2], index: 2, kind: input, shape index: {}]
  %s3 = inlined_call_operand.vmem [shape: f32[16,32], index: 3, kind: input, shape index: {}]
  %s4 = inlined_call_operand.vmem [shape: f32[1,32], index: 4, kind: input, shape index: {}]
  %s5 = inlined_call_operand.vmem [shape: f32[1,32,32], index: 5, kind: input, shape index: {}]
  %s6 = inlined_call_operand.vmem [shape: f32[1,1,32], index: 6, kind: input, shape index: {}]
  %s7 = inlined_call_operand.vmem [shape: f32[2,32,32], index: 7, kind: input, shape index: {}]
  %s8 = inlined_call_operand.vmem [shape: f32[2,1,32], index: 8, kind: input, shape index: {}]
  %s9 = inlined_call_operand.vmem [shape: f32[2,32,32], index: 9, kind: input, shape index: {}]
  %s10 = inlined_call_operand.vmem [shape: f32[2,1,32], index: 10, kind: input, shape index: {}]
  %s11 = inlined_call_operand.vmem [shape: f32[4,72,1], index: 11, kind: input, shape index: {}]
  %s12 = inlined_call_operand.vmem [shape: f32[4,72,1], index: 12, kind: input, shape index: {}]
  %s13 = inlined_call_operand.vmem [shape: f32[32,16], index: 13, kind: input, shape index: {}]
  %s14 = inlined_call_operand.vmem [shape: f32[1,16], index: 14, kind: input, shape index: {}]
  %s15 = inlined_call_operand.vmem [shape: f32[144,16], index: 15, kind: output, shape index: {}]
  %s16 = sld [smem:[#allocation0]]
  $region97: #{tpu_custom_call.1} parent=0
    _
  %s18 = ssub.s32 1, %s16
  %s19 = scalar_select 0, %s18, %s16
  $region1: #{tpu_custom_call.1} parent=0
    #allocation2 [shape = 'u8[512]{0}', space=smem, size = 0x200, scoped, tag = 'input window, operand 2, single buffered']
    #allocation3 [shape = 's32[2]{0}', space=sflag, size = 0x8, scoped, tag = 'scoped memory for tpu_custom_call.1']
    %20 = vsyncpa [#allocation3], 0
    loop: start=0, step=1, limit=4
    $region2: #{tpu_custom_call.1} parent=1 // loop_pre_header
      _
    $region3: #{tpu_custom_call.1} parent=1 // loop_header
      %s22 = sphi 0, %s26
      %p23 = scmp.ge.s32.totalorder %s22, 4
      %s32 = sphi 0, %s34
      %s35 = sphi 0, %s32
      %s36 = sphi 0, %s35
      %s52 = sphi 0, %s36
      %s58 = sphi 0, %s60
      %s61 = sphi 0, %s58
      %s62 = sphi 0, %s61
      %s78 = sphi 0, %s62
      %s82 = sphi 0, %s82
      %s84 = sphi 0, %s82
      %s85 = sphi 0, %s84
      %s99 = sphi 0, %s85
      %s103 = sphi 0, %s103
      %s105 = sphi 0, %s103
      %s106 = sphi 0, %s105
      %s120 = sphi 0, %s106
      %s124 = sphi 0, %s124
      %s126 = sphi 0, %s124
      %s127 = sphi 0, %s126
      %s141 = sphi 0, %s127
      %s145 = sphi 0, %s145
      %s147 = sphi 0, %s145
      %s148 = sphi 0, %s147
      %s162 = sphi 0, %s148
      %s166 = sphi 0, %s166
      %s168 = sphi 0, %s166
      %s169 = sphi 0, %s168
      %s183 = sphi 0, %s169
      %s187 = sphi 0, %s187
      %s189 = sphi 0, %s187
      %s190 = sphi 0, %s189
      %s204 = sphi 0, %s190
      %s208 = sphi 0, %s208
      %s210 = sphi 0, %s208
      %s211 = sphi 0, %s210
      %s225 = sphi 0, %s211
      %s229 = sphi 0, %s229
      %s231 = sphi 0, %s229
      %s232 = sphi 0, %s231
      %s246 = sphi 0, %s232
      %s250 = sphi 0, %s250
      %s252 = sphi 0, %s250
      %s253 = sphi 0, %s252
      %s267 = sphi 0, %s253
      %s271 = sphi 0, %s271
      %s273 = sphi 0, %s271
      %s274 = sphi 0, %s273
      %s288 = sphi 0, %s274
      %s292 = sphi 0, %s292
      %s294 = sphi 0, %s292
      %s295 = sphi 0, %s294
      %s309 = sphi 0, %s295
      %s313 = sphi 0, %s313
      %s315 = sphi 0, %s313
      %s316 = sphi 0, %s315
      %s330 = sphi 0, %s316
      %s334 = sphi 0, %s334
      %s336 = sphi 0, %s334
      %s337 = sphi 0, %s336
      %s351 = sphi 0, %s337
      %s357 = sphi 0, %s359
      %s360 = sphi 0, %s357
      %s361 = sphi 0, %s360
      %s377 = sphi 0, %s361
    $region4: #{tpu_custom_call.1} parent=1 // loop_header_branch
      %25 = sbr.rel (%p23) target = $region8
    $region5: #{tpu_custom_call.1} parent=1 // loop_body
      %s27 = ssub.s32 %s22, 1
      %s28 = ssub.s32 %s22, 2
      %s29 = sadd.s32 %s22, 1
      %s30 = ssub.s32 %s22, %s29
      %p31 = scmp.eq.s32.totalorder %s30, 0
      %s33 = sadd.s32 %s32, 1
      %s34 = scalar_select %p31, %s32, %s33
      %p37 = pneg %p31
      %p38 = scmp.eq.s32.totalorder %s22, 1
      %p39 = por %p37, %p38
      %p40 = scmp.ne.s32.totalorder %s32, %s35
      %p41 = scmp.eq.s32.totalorder %s22, 0
      %p42 = por %p40, %p41
      %p43 = scmp.ne.s32.totalorder %s32, %s35
      %p44 = scmp.eq.s32.totalorder %s27, 1
      %p45 = por %p43, %p44
      %p46 = scmp.ne.s32.totalorder %s35, %s36
      %p47 = scmp.eq.s32.totalorder %s27, 0
      %p48 = por %p46, %p47
      %p49 = scmp.ne.s32.totalorder %s35, %s36
      %p50 = scmp.eq.s32.totalorder %s28, 1
      %p51 = por %p49, %p50
      %p53 = scmp.ne.s32.totalorder %s36, %s52
      %p54 = scmp.eq.s32.totalorder %s28, 0
      %p55 = por %p53, %p54
      %s56 = ssub.s32 %s22, %s29
      %p57 = scmp.eq.s32.totalorder %s56, 0
      %s59 = sadd.s32 %s58, 1
      %s60 = scalar_select %p57, %s58, %s59
      %p63 = pneg %p57
      %p64 = scmp.eq.s32.totalorder %s22, 1
      %p65 = por %p63, %p64
      %p66 = scmp.ne.s32.totalorder %s58, %s61
      %p67 = scmp.eq.s32.totalorder %s22, 0
      %p68 = por %p66, %p67
      %p69 = scmp.ne.s32.totalorder %s58, %s61
      %p70 = scmp.eq.s32.totalorder %s27, 1
      %p71 = por %p69, %p70
      %p72 = scmp.ne.s32.totalorder %s61, %s62
      %p73 = scmp.eq.s32.totalorder %s27, 0
      %p74 = por %p72, %p73
      %p75 = scmp.ne.s32.totalorder %s61, %s62
      %p76 = scmp.eq.s32.totalorder %s28, 1
      %p77 = por %p75, %p76
      %p79 = scmp.ne.s32.totalorder %s62, %s78
      %p80 = scmp.eq.s32.totalorder %s28, 0
      %p81 = por %p79, %p80
      %s83 = sadd.s32 %s82, 1
      %p86 = scmp.eq.s32.totalorder %s22, 1
      %p87 = scmp.ne.s32.totalorder %s82, %s84
      %p88 = scmp.eq.s32.totalorder %s22, 0
      %p89 = por %p87, %p88
      %p90 = scmp.ne.s32.totalorder %s82, %s84
      %p91 = scmp.eq.s32.totalorder %s27, 1
      %p92 = por %p90, %p91
      %p93 = scmp.ne.s32.totalorder %s84, %s85
      %p94 = scmp.eq.s32.totalorder %s27, 0
      %p95 = por %p93, %p94
      %p96 = scmp.ne.s32.totalorder %s84, %s85
      %p97 = scmp.eq.s32.totalorder %s28, 1
      %p98 = por %p96, %p97
      %p100 = scmp.ne.s32.totalorder %s85, %s99
      %p101 = scmp.eq.s32.totalorder %s28, 0
      %p102 = por %p100, %p101
      %s104 = sadd.s32 %s103, 1
      %p107 = scmp.eq.s32.totalorder %s22, 1
      %p108 = scmp.ne.s32.totalorder %s103, %s105
      %p109 = scmp.eq.s32.totalorder %s22, 0
      %p110 = por %p108, %p109
      %p111 = scmp.ne.s32.totalorder %s103, %s105
      %p112 = scmp.eq.s32.totalorder %s27, 1
      %p113 = por %p111, %p112
      %p114 = scmp.ne.s32.totalorder %s105, %s106
      %p115 = scmp.eq.s32.totalorder %s27, 0
      %p116 = por %p114, %p115
      %p117 = scmp.ne.s32.totalorder %s105, %s106
      %p118 = scmp.eq.s32.totalorder %s28, 1
      %p119 = por %p117, %p118
      %p121 = scmp.ne.s32.totalorder %s106, %s120
      %p122 = scmp.eq.s32.totalorder %s28, 0
      %p123 = por %p121, %p122
      %s125 = sadd.s32 %s124, 1
      %p128 = scmp.eq.s32.totalorder %s22, 1
      %p129 = scmp.ne.s32.totalorder %s124, %s126
      %p130 = scmp.eq.s32.totalorder %s22, 0
      %p131 = por %p129, %p130
      %p132 = scmp.ne.s32.totalorder %s124, %s126
      %p133 = scmp.eq.s32.totalorder %s27, 1
      %p134 = por %p132, %p133
      %p135 = scmp.ne.s32.totalorder %s126, %s127
      %p136 = scmp.eq.s32.totalorder %s27, 0
      %p137 = por %p135, %p136
      %p138 = scmp.ne.s32.totalorder %s126, %s127
      %p139 = scmp.eq.s32.totalorder %s28, 1
      %p140 = por %p138, %p139
      %p142 = scmp.ne.s32.totalorder %s127, %s141
      %p143 = scmp.eq.s32.totalorder %s28, 0
      %p144 = por %p142, %p143
      %s146 = sadd.s32 %s145, 1
      %p149 = scmp.eq.s32.totalorder %s22, 1
      %p150 = scmp.ne.s32.totalorder %s145, %s147
      %p151 = scmp.eq.s32.totalorder %s22, 0
      %p152 = por %p150, %p151
      %p153 = scmp.ne.s32.totalorder %s145, %s147
      %p154 = scmp.eq.s32.totalorder %s27, 1
      %p155 = por %p153, %p154
      %p156 = scmp.ne.s32.totalorder %s147, %s148
      %p157 = scmp.eq.s32.totalorder %s27, 0
      %p158 = por %p156, %p157
      %p159 = scmp.ne.s32.totalorder %s147, %s148
      %p160 = scmp.eq.s32.totalorder %s28, 1
      %p161 = por %p159, %p160
      %p163 = scmp.ne.s32.totalorder %s148, %s162
      %p164 = scmp.eq.s32.totalorder %s28, 0
      %p165 = por %p163, %p164
      %s167 = sadd.s32 %s166, 1
      %p170 = scmp.eq.s32.totalorder %s22, 1
      %p171 = scmp.ne.s32.totalorder %s166, %s168
      %p172 = scmp.eq.s32.totalorder %s22, 0
      %p173 = por %p171, %p172
      %p174 = scmp.ne.s32.totalorder %s166, %s168
      %p175 = scmp.eq.s32.totalorder %s27, 1
      %p176 = por %p174, %p175
      %p177 = scmp.ne.s32.totalorder %s168, %s169
      %p178 = scmp.eq.s32.totalorder %s27, 0
      %p179 = por %p177, %p178
      %p180 = scmp.ne.s32.totalorder %s168, %s169
      %p181 = scmp.eq.s32.totalorder %s28, 1
      %p182 = por %p180, %p181
      %p184 = scmp.ne.s32.totalorder %s169, %s183
      %p185 = scmp.eq.s32.totalorder %s28, 0
      %p186 = por %p184, %p185
      %s188 = sadd.s32 %s187, 1
      %p191 = scmp.eq.s32.totalorder %s22, 1
      %p192 = scmp.ne.s32.totalorder %s187, %s189
      %p193 = scmp.eq.s32.totalorder %s22, 0
      %p194 = por %p192, %p193
      %p195 = scmp.ne.s32.totalorder %s187, %s189
      %p196 = scmp.eq.s32.totalorder %s27, 1
      %p197 = por %p195, %p196
      %p198 = scmp.ne.s32.totalorder %s189, %s190
      %p199 = scmp.eq.s32.totalorder %s27, 0
      %p200 = por %p198, %p199
      %p201 = scmp.ne.s32.totalorder %s189, %s190
      %p202 = scmp.eq.s32.totalorder %s28, 1
      %p203 = por %p201, %p202
      %p205 = scmp.ne.s32.totalorder %s190, %s204
      %p206 = scmp.eq.s32.totalorder %s28, 0
      %p207 = por %p205, %p206
      %s209 = sadd.s32 %s208, 1
      %p212 = scmp.eq.s32.totalorder %s22, 1
      %p213 = scmp.ne.s32.totalorder %s208, %s210
      %p214 = scmp.eq.s32.totalorder %s22, 0
      %p215 = por %p213, %p214
      %p216 = scmp.ne.s32.totalorder %s208, %s210
      %p217 = scmp.eq.s32.totalorder %s27, 1
      %p218 = por %p216, %p217
      %p219 = scmp.ne.s32.totalorder %s210, %s211
      %p220 = scmp.eq.s32.totalorder %s27, 0
      %p221 = por %p219, %p220
      %p222 = scmp.ne.s32.totalorder %s210, %s211
      %p223 = scmp.eq.s32.totalorder %s28, 1
      %p224 = por %p222, %p223
      %p226 = scmp.ne.s32.totalorder %s211, %s225
      %p227 = scmp.eq.s32.totalorder %s28, 0
      %p228 = por %p226, %p227
      %s230 = sadd.s32 %s229, 1
      %p233 = scmp.eq.s32.totalorder %s22, 1
      %p234 = scmp.ne.s32.totalorder %s229, %s231
      %p235 = scmp.eq.s32.totalorder %s22, 0
      %p236 = por %p234, %p235
      %p237 = scmp.ne.s32.totalorder %s229, %s231
      %p238 = scmp.eq.s32.totalorder %s27, 1
      %p239 = por %p237, %p238
      %p240 = scmp.ne.s32.totalorder %s231, %s232
      %p241 = scmp.eq.s32.totalorder %s27, 0
      %p242 = por %p240, %p241
      %p243 = scmp.ne.s32.totalorder %s231, %s232
      %p244 = scmp.eq.s32.totalorder %s28, 1
      %p245 = por %p243, %p244
      %p247 = scmp.ne.s32.totalorder %s232, %s246
      %p248 = scmp.eq.s32.totalorder %s28, 0
      %p249 = por %p247, %p248
      %s251 = sadd.s32 %s250, 1
      %p254 = scmp.eq.s32.totalorder %s22, 1
      %p255 = scmp.ne.s32.totalorder %s250, %s252
      %p256 = scmp.eq.s32.totalorder %s22, 0
      %p257 = por %p255, %p256
      %p258 = scmp.ne.s32.totalorder %s250, %s252
      %p259 = scmp.eq.s32.totalorder %s27, 1
      %p260 = por %p258, %p259
      %p261 = scmp.ne.s32.totalorder %s252, %s253
      %p262 = scmp.eq.s32.totalorder %s27, 0
      %p263 = por %p261, %p262
      %p264 = scmp.ne.s32.totalorder %s252, %s253
      %p265 = scmp.eq.s32.totalorder %s28, 1
      %p266 = por %p264, %p265
      %p268 = scmp.ne.s32.totalorder %s253, %s267
      %p269 = scmp.eq.s32.totalorder %s28, 0
      %p270 = por %p268, %p269
      %s272 = sadd.s32 %s271, 1
      %p275 = scmp.eq.s32.totalorder %s22, 1
      %p276 = scmp.ne.s32.totalorder %s271, %s273
      %p277 = scmp.eq.s32.totalorder %s22, 0
      %p278 = por %p276, %p277
      %p279 = scmp.ne.s32.totalorder %s271, %s273
      %p280 = scmp.eq.s32.totalorder %s27, 1
      %p281 = por %p279, %p280
      %p282 = scmp.ne.s32.totalorder %s273, %s274
      %p283 = scmp.eq.s32.totalorder %s27, 0
      %p284 = por %p282, %p283
      %p285 = scmp.ne.s32.totalorder %s273, %s274
      %p286 = scmp.eq.s32.totalorder %s28, 1
      %p287 = por %p285, %p286
      %p289 = scmp.ne.s32.totalorder %s274, %s288
      %p290 = scmp.eq.s32.totalorder %s28, 0
      %p291 = por %p289, %p290
      %s293 = sadd.s32 %s292, 1
      %p296 = scmp.eq.s32.totalorder %s22, 1
      %p297 = scmp.ne.s32.totalorder %s292, %s294
      %p298 = scmp.eq.s32.totalorder %s22, 0
      %p299 = por %p297, %p298
      %p300 = scmp.ne.s32.totalorder %s292, %s294
      %p301 = scmp.eq.s32.totalorder %s27, 1
      %p302 = por %p300, %p301
      %p303 = scmp.ne.s32.totalorder %s294, %s295
      %p304 = scmp.eq.s32.totalorder %s27, 0
      %p305 = por %p303, %p304
      %p306 = scmp.ne.s32.totalorder %s294, %s295
      %p307 = scmp.eq.s32.totalorder %s28, 1
      %p308 = por %p306, %p307
      %p310 = scmp.ne.s32.totalorder %s295, %s309
      %p311 = scmp.eq.s32.totalorder %s28, 0
      %p312 = por %p310, %p311
      %s314 = sadd.s32 %s313, 1
      %p317 = scmp.eq.s32.totalorder %s22, 1
      %p318 = scmp.ne.s32.totalorder %s313, %s315
      %p319 = scmp.eq.s32.totalorder %s22, 0
      %p320 = por %p318, %p319
      %p321 = scmp.ne.s32.totalorder %s313, %s315
      %p322 = scmp.eq.s32.totalorder %s27, 1
      %p323 = por %p321, %p322
      %p324 = scmp.ne.s32.totalorder %s315, %s316
      %p325 = scmp.eq.s32.totalorder %s27, 0
      %p326 = por %p324, %p325
      %p327 = scmp.ne.s32.totalorder %s315, %s316
      %p328 = scmp.eq.s32.totalorder %s28, 1
      %p329 = por %p327, %p328
      %p331 = scmp.ne.s32.totalorder %s316, %s330
      %p332 = scmp.eq.s32.totalorder %s28, 0
      %p333 = por %p331, %p332
      %s335 = sadd.s32 %s334, 1
      %p338 = scmp.eq.s32.totalorder %s22, 1
      %p339 = scmp.ne.s32.totalorder %s334, %s336
      %p340 = scmp.eq.s32.totalorder %s22, 0
      %p341 = por %p339, %p340
      %p342 = scmp.ne.s32.totalorder %s334, %s336
      %p343 = scmp.eq.s32.totalorder %s27, 1
      %p344 = por %p342, %p343
      %p345 = scmp.ne.s32.totalorder %s336, %s337
      %p346 = scmp.eq.s32.totalorder %s27, 0
      %p347 = por %p345, %p346
      %p348 = scmp.ne.s32.totalorder %s336, %s337
      %p349 = scmp.eq.s32.totalorder %s28, 1
      %p350 = por %p348, %p349
      %p352 = scmp.ne.s32.totalorder %s337, %s351
      %p353 = scmp.eq.s32.totalorder %s28, 0
      %p354 = por %p352, %p353
      %s355 = ssub.s32 %s22, %s29
      %p356 = scmp.eq.s32.totalorder %s355, 0
      %s358 = sadd.s32 %s357, 1
      %s359 = scalar_select %p356, %s357, %s358
      %p362 = pneg %p356
      %p363 = scmp.eq.s32.totalorder %s22, 1
      %p364 = por %p362, %p363
      %p365 = scmp.ne.s32.totalorder %s357, %s360
      %p366 = scmp.eq.s32.totalorder %s22, 0
      %p367 = por %p365, %p366
      %p368 = scmp.ne.s32.totalorder %s357, %s360
      %p369 = scmp.eq.s32.totalorder %s27, 1
      %p370 = por %p368, %p369
      %p371 = scmp.ne.s32.totalorder %s360, %s361
      %p372 = scmp.eq.s32.totalorder %s27, 0
      %p373 = por %p371, %p372
      %p374 = scmp.ne.s32.totalorder %s360, %s361
      %p375 = scmp.eq.s32.totalorder %s28, 1
      %p376 = por %p374, %p375
      %p378 = scmp.ne.s32.totalorder %s361, %s377
      %p379 = scmp.eq.s32.totalorder %s28, 0
      %p380 = por %p378, %p379
      %p381 = scmp.le.s32.totalorder 1, %s22
      %p382 = scmp.lt.s32.totalorder %s22, 3
      %p383 = pnand %p381, %p382
      %p384 = pneg %p383
      // Predicated region
      $region9: #{tpu_custom_call.1} parent=5 // pred_check
        _
      $region10: #{tpu_custom_call.1} parent=5 // pred_check_branch
        %386 = sbr.rel (%p383) target = $region12
      $region11: #{tpu_custom_call.1} parent=5 // pred_region
        %s387 = ssub.s32 %s22, 1
        // Predicated region
        $region13: #{tpu_custom_call.1} parent=11 // pred_check
          %p388 = pneg %p95
        $region14: #{tpu_custom_call.1} parent=11 // pred_check_branch
          %390 = sbr.rel (%p388) target = $region16
        $region15: #{tpu_custom_call.1} parent=11 // pred_region
          %392 = vsyncadd [#allocation3], 0
          %s394 = sshll.u32 %s2, 4
          %s395 = int_to_ptr.vmem [resolvable:$true] %s394
          %397 = dma.vmem_to_smem %s395, 16, [#allocation2], [#allocation3]
        $region16: #{tpu_custom_call.1} parent=11 // pred_fallthru
          _
        // Predicated region
        $region17: #{tpu_custom_call.1} parent=11 // pred_check
          %p398 = pneg %p116
        $region18: #{tpu_custom_call.1} parent=11 // pred_check_branch
          %400 = sbr.rel (%p398) target = $region20
        $region19: #{tpu_custom_call.1} parent=11 // pred_region
          _
        $region20: #{tpu_custom_call.1} parent=11 // pred_fallthru
          _
        // Predicated region
        $region21: #{tpu_custom_call.1} parent=11 // pred_check
          %p401 = pneg %p137
        $region22: #{tpu_custom_call.1} parent=11 // pred_check_branch
          %403 = sbr.rel (%p401) target = $region24
        $region23: #{tpu_custom_call.1} parent=11 // pred_region
          _
        $region24: #{tpu_custom_call.1} parent=11 // pred_fallthru
          _
        // Predicated region
        $region25: #{tpu_custom_call.1} parent=11 // pred_check
          %p404 = pneg %p158
        $region26: #{tpu_custom_call.1} parent=11 // pred_check_branch
          %406 = sbr.rel (%p404) target = $region28
        $region27: #{tpu_custom_call.1} parent=11 // pred_region
          _
        $region28: #{tpu_custom_call.1} parent=11 // pred_fallthru
          _
        // Predicated region
        $region29: #{tpu_custom_call.1} parent=11 // pred_check
          %p407 = pneg %p179
        $region30: #{tpu_custom_call.1} parent=11 // pred_check_branch
          %409 = sbr.rel (%p407) target = $region32
        $region31: #{tpu_custom_call.1} parent=11 // pred_region
          _
        $region32: #{tpu_custom_call.1} parent=11 // pred_fallthru
          _
        // Predicated region
        $region33: #{tpu_custom_call.1} parent=11 // pred_check
          %p410 = pneg %p200
        $region34: #{tpu_custom_call.1} parent=11 // pred_check_branch
          %412 = sbr.rel (%p410) target = $region36
        $region35: #{tpu_custom_call.1} parent=11 // pred_region
          _
        $region36: #{tpu_custom_call.1} parent=11 // pred_fallthru
          _
        // Predicated region
        $region37: #{tpu_custom_call.1} parent=11 // pred_check
          %p413 = pneg %p221
        $region38: #{tpu_custom_call.1} parent=11 // pred_check_branch
          %415 = sbr.rel (%p413) target = $region40
        $region39: #{tpu_custom_call.1} parent=11 // pred_region
          _
        $region40: #{tpu_custom_call.1} parent=11 // pred_fallthru
          _
        // Predicated region
        $region41: #{tpu_custom_call.1} parent=11 // pred_check
          %p416 = pneg %p242
        $region42: #{tpu_custom_call.1} parent=11 // pred_check_branch
          %418 = sbr.rel (%p416) target = $region44
        $region43: #{tpu_custom_call.1} parent=11 // pred_region
          _
        $region44: #{tpu_custom_call.1} parent=11 // pred_fallthru
          _
        // Predicated region
        $region45: #{tpu_custom_call.1} parent=11 // pred_check
          %p419 = pneg %p263
        $region46: #{tpu_custom_call.1} parent=11 // pred_check_branch
          %421 = sbr.rel (%p419) target = $region48
        $region47: #{tpu_custom_call.1} parent=11 // pred_region
          _
        $region48: #{tpu_custom_call.1} parent=11 // pred_fallthru
          _
        // Predicated region
        $region49: #{tpu_custom_call.1} parent=11 // pred_check
          %p422 = pneg %p284
        $region50: #{tpu_custom_call.1} parent=11 // pred_check_branch
          %424 = sbr.rel (%p422) target = $region52
        $region51: #{tpu_custom_call.1} parent=11 // pred_region
          _
        $region52: #{tpu_custom_call.1} parent=11 // pred_fallthru
          _
        // Predicated region
        $region53: #{tpu_custom_call.1} parent=11 // pred_check
          %p425 = pneg %p305
        $region54: #{tpu_custom_call.1} parent=11 // pred_check_branch
          %427 = sbr.rel (%p425) target = $region56
        $region55: #{tpu_custom_call.1} parent=11 // pred_region
          _
        $region56: #{tpu_custom_call.1} parent=11 // pred_fallthru
          _
        // Predicated region
        $region57: #{tpu_custom_call.1} parent=11 // pred_check
          %p428 = pneg %p326
        $region58: #{tpu_custom_call.1} parent=11 // pred_check_branch
          %430 = sbr.rel (%p428) target = $region60
        $region59: #{tpu_custom_call.1} parent=11 // pred_region
          _
        $region60: #{tpu_custom_call.1} parent=11 // pred_fallthru
          _
        // Predicated region
        $region61: #{tpu_custom_call.1} parent=11 // pred_check
          %p431 = pneg %p347
        $region62: #{tpu_custom_call.1} parent=11 // pred_check_branch
          %433 = sbr.rel (%p431) target = $region64
        $region63: #{tpu_custom_call.1} parent=11 // pred_region
          _
        $region64: #{tpu_custom_call.1} parent=11 // pred_fallthru
          _
      $region12: #{tpu_custom_call.1} parent=5 // pred_fallthru
        _
      %p434 = scmp.lt.s32.totalorder %s22, 2
      // Predicated region
      $region65: #{tpu_custom_call.1} parent=5 // pred_check
        %p435 = pneg %p434
      $region66: #{tpu_custom_call.1} parent=5 // pred_check_branch
        %437 = sbr.rel (%p435) target = $region68
      $region67: #{tpu_custom_call.1} parent=5 // pred_region
        // Predicated region
        $region69: #{tpu_custom_call.1} parent=67 // pred_check
          %p438 = pneg %p42
        $region70: #{tpu_custom_call.1} parent=67 // pred_check_branch
          %440 = sbr.rel (%p438) target = $region72
        $region71: #{tpu_custom_call.1} parent=67 // pred_region
          %s441 = smul.u32 9, %s22
          %p442 = scmp.lt.s32.totalorder %s441, 17
          %s443 = scalar_select %p442, %s441, 17
          %s444 = smul.addr %s443, 8
          %s445 = scalar_lea.vmem %s0, %s444
          %s446 = smul.u32 9, %s22
        $region72: #{tpu_custom_call.1} parent=67 // pred_fallthru
          _
        // Predicated region
        $region73: #{tpu_custom_call.1} parent=67 // pred_check
          %p447 = pneg %p68
        $region74: #{tpu_custom_call.1} parent=67 // pred_check_branch
          %449 = sbr.rel (%p447) target = $region76
        $region75: #{tpu_custom_call.1} parent=67 // pred_region
          %s450 = smul.u32 8, %s22
          %p451 = scmp.lt.s32.totalorder %s450, 15
          %s452 = scalar_select %p451, %s450, 15
          %s453 = smul.addr %s452, 2
          %s454 = smul.addr %s453, 8
          %s455 = scalar_lea.vmem %s1, %s454
          %s456 = smul.u32 8, %s22
        $region76: #{tpu_custom_call.1} parent=67 // pred_fallthru
          _
      $region68: #{tpu_custom_call.1} parent=5 // pred_fallthru
        _
      %p457 = scmp.le.s32.totalorder 1, %s22
      %p458 = scmp.lt.s32.totalorder %s22, 3
      %p459 = pnand %p457, %p458
      %p460 = pneg %p459
      // Predicated region
      $region77: #{tpu_custom_call.1} parent=5 // pred_check
        _
      $region78: #{tpu_custom_call.1} parent=5 // pred_check_branch
        %462 = sbr.rel (%p459) target = $region80
      $region79: #{tpu_custom_call.1} parent=5 // pred_region
        %s463 = ssub.s32 %s22, 1
        // Predicated region
        $region81: #{tpu_custom_call.1} parent=79 // pred_check
          %p464 = pneg %p95
        $region82: #{tpu_custom_call.1} parent=79 // pred_check_branch
          %466 = sbr.rel (%p464) target = $region84
        $region83: #{tpu_custom_call.1} parent=79 // pred_region
          %468 = dma.done [#allocation3], 16
        $region84: #{tpu_custom_call.1} parent=79 // pred_fallthru
          _
        %469 = sfence
        %s470 = smul.u32 9, %s27
        %p471 = scmp.lt.s32.totalorder %s470, 17
        %s472 = scalar_select %p471, %s470, 17
        %s473 = smul.addr %s472, 8
        %s474 = scalar_lea.vmem %s0, %s473
        %p475 = pneg %p48
        %p476 = pneg %p45
        %s477 = smul.u32 8, %s27
        %p478 = scmp.lt.s32.totalorder %s477, 15
        %s479 = scalar_select %p478, %s477, 15
        %s480 = smul.addr %s479, 2
        %s481 = smul.addr %s480, 8
        %s482 = scalar_lea.vmem %s1, %s481
        %p483 = pneg %p74
        %p484 = pneg %p71
        %p485 = pneg %p95
        %p486 = pneg %p92
        %p487 = pneg %p116
        %p488 = pneg %p113
        %p489 = pneg %p137
        %p490 = pneg %p134
        %p491 = pneg %p158
        %p492 = pneg %p155
        %p493 = pneg %p179
        %p494 = pneg %p176
        %p495 = pneg %p200
        %p496 = pneg %p197
        %p497 = pneg %p221
        %p498 = pneg %p218
        %p499 = pneg %p242
        %p500 = pneg %p239
        %p501 = pneg %p263
        %p502 = pneg %p260
        %p503 = pneg %p284
        %p504 = pneg %p281
        %p505 = pneg %p305
        %p506 = pneg %p302
        %p507 = pneg %p326
        %p508 = pneg %p323
        %p509 = pneg %p347
        %p510 = pneg %p344
        %p511 = pneg %p373
        %p512 = pneg %p370
        %s513 = smul.u32 9, %s27
        %p514 = scmp.lt.s32.totalorder %s513, 17
        %s515 = scalar_select %p514, %s513, 17
        %s516 = smul.addr %s515, 8
        %s517 = scalar_lea.vmem %s15, %s516
        %s518 = smul.u32 9, %s27
        %p519 = scmp.lt.s32.totalorder %s518, 17
        %s520 = scalar_select %p519, %s518, 17
        %s521 = smul.addr %s520, 8
        %s522 = scalar_lea.vmem %s0, %s521
        %s523 = smul.u32 9, %s27
        %s524 = smul.u32 8, %s27
        %p525 = scmp.lt.s32.totalorder %s524, 15
        %s526 = scalar_select %p525, %s524, 15
        %s527 = smul.addr %s526, 2
        %s528 = smul.addr %s527, 8
        %s529 = scalar_lea.vmem %s1, %s528
        %s530 = smul.u32 8, %s27
        %s531 = smul.u32 9, %s27
        %p532 = scmp.lt.s32.totalorder %s531, 17
        %s533 = scalar_select %p532, %s531, 17
        %s534 = smul.addr %s533, 8
        %s535 = scalar_lea.vmem %s15, %s534
        %s536 = smul.u32 9, %s27
        %v537 = vld [vmem:[%s522] sm:$0xff]
        %v538 = vld [vmem:[%s522 + $0x8] sm:$0xff]
        %v539 = vld [vmem:[%s522 + $0x10] sm:$0xff]
        %v540 = vld [vmem:[%s522 + $0x18] sm:$0xff]
        %v541 = vld [vmem:[%s522 + $0x20] sm:$0xff]
        %v542 = vld [vmem:[%s522 + $0x28] sm:$0xff]
        %v543 = vld [vmem:[%s522 + $0x30] sm:$0xff]
        %v544 = vld [vmem:[%s522 + $0x38] sm:$0xff]
        %v545 = vld [vmem:[%s522 + $0x40] sm:$0xff]
        %v546 = vld [vmem:[%s529] sm:$0xff]
        %v547 = vld [vmem:[%s529 + $0x8] sm:$0x1]
        %v548 = vld [vmem:[%s529 + $0x10] sm:$0xff]
        %v549 = vld [vmem:[%s529 + $0x18] sm:$0x1]
        %v550 = vld [vmem:[%s529 + $0x20] sm:$0xff]
        %v551 = vld [vmem:[%s529 + $0x28] sm:$0x1]
        %v552 = vld [vmem:[%s529 + $0x30] sm:$0xff]
        %v553 = vld [vmem:[%s529 + $0x38] sm:$0x1]
        %v554 = vld [vmem:[%s529 + $0x40] sm:$0xff]
        %v555 = vld [vmem:[%s529 + $0x48] sm:$0x1]
        %v556 = vld [vmem:[%s529 + $0x50] sm:$0xff]
        %v557 = vld [vmem:[%s529 + $0x58] sm:$0x1]
        %v558 = vld [vmem:[%s529 + $0x60] sm:$0xff]
        %v559 = vld [vmem:[%s529 + $0x68] sm:$0x1]
        %v560 = vld [vmem:[%s529 + $0x70] sm:$0xff]
        %v561 = vld [vmem:[%s529 + $0x78] sm:$0x1]
        %v562 = vld [vmem:[%s3] sm:$0xff]
        %v563 = vld [vmem:[%s3 + $0x8] sm:$0xff]
        %v564 = vld [vmem:[%s4] sm:$0x1]
        %v566 = vperm.slane %v564, 0
        %vm568 = vcmask 130048
        %v570 = vsel %vm568, %v537, 0
        %v573 = vsel %vm568, %v538, 0
        %v576 = vsel %vm568, %v539, 0
        %v579 = vsel %vm568, %v540, 0
        %v582 = vsel %vm568, %v541, 0
        %v585 = vsel %vm568, %v542, 0
        %v588 = vsel %vm568, %v543, 0
        %v591 = vsel %vm568, %v544, 0
        %v594 = vsel %vm568, %v545, 0
        %596 = vmatpush.msra.mxu0 0.0
        %597 = vmatpush.msra.mxu0 0.0
        %598 = vmatpush.msra.mxu0 0.0
        %599 = vmatpush.msra.mxu0 0.0
        %600 = vmatpush.msra.mxu0 0.0
        %601 = vmatpush.msra.mxu0 0.0
        %602 = vmatpush.msra.mxu0 0.0
        %603 = vmatpush.msra.mxu0 0.0
        %604 = vmatpush.msra.mxu0 0.0
        %605 = vmatpush.msra.mxu0 0.0
        %606 = vmatpush.msra.mxu0 0.0
        %607 = vmatpush.msra.mxu0 0.0
        %608 = vmatpush.msra.mxu0 0.0
        %609 = vmatpush.msra.mxu0 0.0
        %610 = vmatpush.msra.mxu0 %v563
        %611 = vmatpush.msra.mxu0 %v562
        %612 = vmatmul.f32.gmra.mxu0 %v570
        %v613 = vpop.f32.mrf.mxu0
        %v614 = vadd.f32 %v566, %v613
        %615 = vmatmul.f32.gmra.mxu0 %v573
        %v616 = vpop.f32.mrf.mxu0
        %v617 = vadd.f32 %v566, %v616
        %618 = vmatmul.f32.gmra.mxu0 %v576
        %v619 = vpop.f32.mrf.mxu0
        %v620 = vadd.f32 %v566, %v619
        %621 = vmatmul.f32.gmra.mxu0 %v579
        %v622 = vpop.f32.mrf.mxu0
        %v623 = vadd.f32 %v566, %v622
        %624 = vmatmul.f32.gmra.mxu0 %v582
        %v625 = vpop.f32.mrf.mxu0
        %v626 = vadd.f32 %v566, %v625
        %627 = vmatmul.f32.gmra.mxu0 %v585
        %v628 = vpop.f32.mrf.mxu0
        %v629 = vadd.f32 %v566, %v628
        %630 = vmatmul.f32.gmra.mxu0 %v588
        %v631 = vpop.f32.mrf.mxu0
        %v632 = vadd.f32 %v566, %v631
        %633 = vmatmul.f32.gmra.mxu0 %v591
        %v634 = vpop.f32.mrf.mxu0
        %v635 = vadd.f32 %v566, %v634
        %636 = vmatmul.f32.gmra.mxu0 %v594
        %v637 = vpop.f32.mrf.mxu0
        %v638 = vadd.f32 %v566, %v637
        %639 = vdwg.mxu0
        %v649 = vrot.slane %v614, 1
        %v650 = vrot.slane %v614, 2
        %v651 = vrot.slane %v614, 3
        %v652 = vrot.slane %v614, 4
        %v653 = vrot.slane %v614, 5
        %v654 = vrot.slane %v614, 6
        %v655 = vrot.slane %v614, 7
        %v656 = vrot.slane %v617, 1
        %v657 = vrot.slane %v617, 2
        %v658 = vrot.slane %v617, 3
        %v659 = vrot.slane %v617, 4
        %v660 = vrot.slane %v617, 5
        %v661 = vrot.slane %v617, 6
        %v662 = vrot.slane %v617, 7
        %v663 = vrot.slane %v620, 1
        %v664 = vrot.slane %v620, 2
        %v665 = vrot.slane %v620, 3
        %v666 = vrot.slane %v620, 4
        %v667 = vrot.slane %v620, 5
        %v668 = vrot.slane %v620, 6
        %v669 = vrot.slane %v620, 7
        %v670 = vrot.slane %v623, 1
        %v671 = vrot.slane %v623, 2
        %v672 = vrot.slane %v623, 3
        %v673 = vrot.slane %v623, 4
        %v674 = vrot.slane %v623, 5
        %v675 = vrot.slane %v623, 6
        %v676 = vrot.slane %v623, 7
        %v677 = vrot.slane %v626, 1
        %v678 = vrot.slane %v626, 2
        %v679 = vrot.slane %v626, 3
        %v680 = vrot.slane %v626, 4
        %v681 = vrot.slane %v626, 5
        %v682 = vrot.slane %v626, 6
        %v683 = vrot.slane %v626, 7
        %v684 = vrot.slane %v629, 1
        %v685 = vrot.slane %v629, 2
        %v686 = vrot.slane %v629, 3
        %v687 = vrot.slane %v629, 4
        %v688 = vrot.slane %v629, 5
        %v689 = vrot.slane %v629, 6
        %v690 = vrot.slane %v629, 7
        %v691 = vrot.slane %v632, 1
        %v692 = vrot.slane %v632, 2
        %v693 = vrot.slane %v632, 3
        %v694 = vrot.slane %v632, 4
        %v695 = vrot.slane %v632, 5
        %v696 = vrot.slane %v632, 6
        %v697 = vrot.slane %v632, 7
        %v698 = vrot.slane %v635, 1
        %v699 = vrot.slane %v635, 2
        %v700 = vrot.slane %v635, 3
        %v701 = vrot.slane %v635, 4
        %v702 = vrot.slane %v635, 5
        %v703 = vrot.slane %v635, 6
        %v704 = vrot.slane %v635, 7
        %v705 = vrot.slane %v638, 1
        %v706 = vrot.slane %v638, 2
        %v707 = vrot.slane %v638, 3
        %v708 = vrot.slane %v638, 4
        %v709 = vrot.slane %v638, 5
        %v710 = vrot.slane %v638, 6
        %v711 = vrot.slane %v638, 7
        %s775 = sld [smem:[#allocation2]]
        %s776 = sadd.f32 %s775, 1.0
        %v777 = vstv %s776
        %v778 = vmul.f32 %v777, %v614
        %v779 = vmul.f32 %v777, %v649
        %v780 = vmul.f32 %v777, %v650
        %v781 = vmul.f32 %v777, %v651
        %v782 = vmul.f32 %v777, %v652
        %v783 = vmul.f32 %v777, %v653
        %v784 = vmul.f32 %v777, %v654
        %v785 = vmul.f32 %v777, %v655
        %v786 = vmul.f32 %v777, %v617
        %v787 = vmul.f32 %v777, %v656
        %v788 = vmul.f32 %v777, %v657
        %v789 = vmul.f32 %v777, %v658
        %v790 = vmul.f32 %v777, %v659
        %v791 = vmul.f32 %v777, %v660
        %v792 = vmul.f32 %v777, %v661
        %v793 = vmul.f32 %v777, %v662
        %v794 = vmul.f32 %v777, %v620
        %v795 = vmul.f32 %v777, %v663
        %v796 = vmul.f32 %v777, %v664
        %v797 = vmul.f32 %v777, %v665
        %v798 = vmul.f32 %v777, %v666
        %v799 = vmul.f32 %v777, %v667
        %v800 = vmul.f32 %v777, %v668
        %v801 = vmul.f32 %v777, %v669
        %v802 = vmul.f32 %v777, %v623
        %v803 = vmul.f32 %v777, %v670
        %v804 = vmul.f32 %v777, %v671
        %v805 = vmul.f32 %v777, %v672
        %v806 = vmul.f32 %v777, %v673
        %v807 = vmul.f32 %v777, %v674
        %v808 = vmul.f32 %v777, %v675
        %v809 = vmul.f32 %v777, %v676
        %v810 = vmul.f32 %v777, %v626
        %v811 = vmul.f32 %v777, %v677
        %v812 = vmul.f32 %v777, %v678
        %v813 = vmul.f32 %v777, %v679
        %v814 = vmul.f32 %v777, %v680
        %v815 = vmul.f32 %v777, %v681
        %v816 = vmul.f32 %v777, %v682
        %v817 = vmul.f32 %v777, %v683
        %v818 = vmul.f32 %v777, %v629
        %v819 = vmul.f32 %v777, %v684
        %v820 = vmul.f32 %v777, %v685
        %v821 = vmul.f32 %v777, %v686
        %v822 = vmul.f32 %v777, %v687
        %v823 = vmul.f32 %v777, %v688
        %v824 = vmul.f32 %v777, %v689
        %v825 = vmul.f32 %v777, %v690
        %v826 = vmul.f32 %v777, %v632
        %v827 = vmul.f32 %v777, %v691
        %v828 = vmul.f32 %v777, %v692
        %v829 = vmul.f32 %v777, %v693
        %v830 = vmul.f32 %v777, %v694
        %v831 = vmul.f32 %v777, %v695
        %v832 = vmul.f32 %v777, %v696
        %v833 = vmul.f32 %v777, %v697
        %v834 = vmul.f32 %v777, %v635
        %v835 = vmul.f32 %v777, %v698
        %v836 = vmul.f32 %v777, %v699
        %v837 = vmul.f32 %v777, %v700
        %v838 = vmul.f32 %v777, %v701
        %v839 = vmul.f32 %v777, %v702
        %v840 = vmul.f32 %v777, %v703
        %v841 = vmul.f32 %v777, %v704
        %v842 = vmul.f32 %v777, %v638
        %v843 = vmul.f32 %v777, %v705
        %v844 = vmul.f32 %v777, %v706
        %v845 = vmul.f32 %v777, %v707
        %v846 = vmul.f32 %v777, %v708
        %v847 = vmul.f32 %v777, %v709
        %v848 = vmul.f32 %v777, %v710
        %v849 = vmul.f32 %v777, %v711
        %850 = vst [vmem:[#allocation1] ss:$9 sm:$0xff] %v614
        %s851 = scalar_lea.vmem [#allocation1], 1
        %852 = vst [vmem:[%s851] ss:$9 sm:$0xff] %v649
        %s853 = scalar_lea.vmem [#allocation1], 2
        %854 = vst [vmem:[%s853] ss:$9 sm:$0xff] %v650
        %s855 = scalar_lea.vmem [#allocation1], 3
        %856 = vst [vmem:[%s855] ss:$9 sm:$0xff] %v651
        %s857 = scalar_lea.vmem [#allocation1], 4
        %858 = vst [vmem:[%s857] ss:$9 sm:$0xff] %v652
        %s859 = scalar_lea.vmem [#allocation1], 5
        %860 = vst [vmem:[%s859] ss:$9 sm:$0xff] %v653
        %s861 = scalar_lea.vmem [#allocation1], 6
        %862 = vst [vmem:[%s861] ss:$9 sm:$0xff] %v654
        %s863 = scalar_lea.vmem [#allocation1], 7
        %864 = vst [vmem:[%s863] ss:$9 sm:$0xff] %v655
        %v865 = vld [vmem:[#allocation1] sm:$0xff]
        %866 = vst [vmem:[#allocation1] ss:$9 sm:$0xff] %v617
        %v867 = vld [vmem:[#allocation1] sm:$0xff]
        %878 = vst [vmem:[#allocation1] ss:$9 sm:$0xff] %v778
        %s879 = scalar_lea.vmem [#allocation1], 1
        %880 = vst [vmem:[%s879] ss:$9 sm:$0xff] %v779
        %s881 = scalar_lea.vmem [#allocation1], 2
        %882 = vst [vmem:[%s881] ss:$9 sm:$0xff] %v780
        %s883 = scalar_lea.vmem [#allocation1], 3
        %884 = vst [vmem:[%s883] ss:$9 sm:$0xff] %v781
        %s885 = scalar_lea.vmem [#allocation1], 4
        %886 = vst [vmem:[%s885] ss:$9 sm:$0xff] %v782
        %s887 = scalar_lea.vmem [#allocation1], 5
        %888 = vst [vmem:[%s887] ss:$9 sm:$0xff] %v783
        %s889 = scalar_lea.vmem [#allocation1], 6
        %890 = vst [vmem:[%s889] ss:$9 sm:$0xff] %v784
        %s891 = scalar_lea.vmem [#allocation1], 7
        %892 = vst [vmem:[%s891] ss:$9 sm:$0xff] %v785
        %v893 = vld [vmem:[#allocation1] sm:$0xff]
        %894 = vst [vmem:[#allocation1] ss:$9 sm:$0xff] %v786
        %v895 = vld [vmem:[#allocation1] sm:$0xff]
        %vm898 = vcmask 72704
        %v900 = vsel %vm898, %v546, 0
        %v903 = vsel %vm898, %v547, 0
        %vm905 = vcmask 1040384
        %v906 = vsel %vm905, %v867, 0
        %908 = vmatpush.msra.mxu0 0.0
        %909 = vmatpush.msra.mxu0 0.0
        %910 = vmatpush.msra.mxu0 0.0
        %911 = vmatpush.msra.mxu0 0.0
        %912 = vmatpush.msra.mxu0 0.0
        %913 = vmatpush.msra.mxu0 0.0
        %914 = vmatpush.msra.mxu0 0.0
        %915 = vmatpush.msra.mxu0 0.0
        %916 = vmatpush.msra.mxu0 0.0
        %917 = vmatpush.msra.mxu0 0.0
        %918 = vmatpush.msra.mxu0 0.0
        %919 = vmatpush.msra.mxu0 0.0
        %920 = vmatpush.msra.mxu0 0.0
        %921 = vmatpush.msra.mxu0 0.0
        %922 = vmatpush.msra.mxu0 %v906
        %923 = vmatpush.msra.mxu0 %v865
        %924 = vmatmul.f32.gmra.mxu0 %v900
        %v925 = vpop.f32.mrf.mxu0
        %v926 = vadd.f32 %v893, %v925
        %927 = vmatmul.f32.gmra.mxu0 %v903
        %v928 = vpop.f32.mrf.mxu0
        %v929 = vadd.f32 %v895, %v928
        %930 = vdwg.mxu0
        %931 = vst [vmem:[#allocation1] ss:$9 sm:$0xff] %v656
        %s932 = scalar_lea.vmem [#allocation1], 1
        %933 = vst [vmem:[%s932] ss:$9 sm:$0xff] %v657
        %s934 = scalar_lea.vmem [#allocation1], 2
        %935 = vst [vmem:[%s934] ss:$9 sm:$0xff] %v658
        %s936 = scalar_lea.vmem [#allocation1], 3
        %937 = vst [vmem:[%s936] ss:$9 sm:$0xff] %v659
        %s938 = scalar_lea.vmem [#allocation1], 4
        %939 = vst [vmem:[%s938] ss:$9 sm:$0xff] %v660
        %s940 = scalar_lea.vmem [#allocation1], 5
        %941 = vst [vmem:[%s940] ss:$9 sm:$0xff] %v661
        %s942 = scalar_lea.vmem [#allocation1], 6
        %943 = vst [vmem:[%s942] ss:$9 sm:$0xff] %v662
        %s944 = scalar_lea.vmem [#allocation1], 7
        %945 = vst [vmem:[%s944] ss:$9 sm:$0xff] %v620
        %v946 = vld [vmem:[#allocation1] sm:$0xff]
        %947 = vst [vmem:[#allocation1] ss:$9 sm:$0xff] %v663
        %v948 = vld [vmem:[#allocation1] sm:$0xff]
        %959 = vst [vmem:[#allocation1] ss:$9 sm:$0xff] %v787
        %s960 = scalar_lea.vmem [#allocation1], 1
        %961 = vst [vmem:[%s960] ss:$9 sm:$0xff] %v788
        %s962 = scalar_lea.vmem [#allocation1], 2
        %963 = vst [vmem:[%s962] ss:$9 sm:$0xff] %v789
        %s964 = scalar_lea.vmem [#allocation1], 3
        %965 = vst [vmem:[%s964] ss:$9 sm:$0xff] %v790
        %s966 = scalar_lea.vmem [#allocation1], 4
        %967 = vst [vmem:[%s966] ss:$9 sm:$0xff] %v791
        %s968 = scalar_lea.vmem [#allocation1], 5
        %969 = vst [vmem:[%s968] ss:$9 sm:$0xff] %v792
        %s970 = scalar_lea.vmem [#allocation1], 6
        %971 = vst [vmem:[%s970] ss:$9 sm:$0xff] %v793
        %s972 = scalar_lea.vmem [#allocation1], 7
        %973 = vst [vmem:[%s972] ss:$9 sm:$0xff] %v794
        %v974 = vld [vmem:[#allocation1] sm:$0xff]
        %975 = vst [vmem:[#allocation1] ss:$9 sm:$0xff] %v795
        %v976 = vld [vmem:[#allocation1] sm:$0xff]
        %v980 = vsel %vm898, %v548, 0
        %v983 = vsel %vm898, %v549, 0
        %v985 = vsel %vm905, %v948, 0
        %987 = vmatpush.msra.mxu0 0.0
        %988 = vmatpush.msra.mxu0 0.0
        %989 = vmatpush.msra.mxu0 0.0
        %990 = vmatpush.msra.mxu0 0.0
        %991 = vmatpush.msra.mxu0 0.0
        %992 = vmatpush.msra.mxu0 0.0
        %993 = vmatpush.msra.mxu0 0.0
        %994 = vmatpush.msra.mxu0 0.0
        %995 = vmatpush.msra.mxu0 0.0
        %996 = vmatpush.msra.mxu0 0.0
        %997 = vmatpush.msra.mxu0 0.0
        %998 = vmatpush.msra.mxu0 0.0
        %999 = vmatpush.msra.mxu0 0.0
        %1000 = vmatpush.msra.mxu0 0.0
        %1001 = vmatpush.msra.mxu0 %v985
        %1002 = vmatpush.msra.mxu0 %v946
        %1003 = vmatmul.f32.gmra.mxu0 %v980
        %v1004 = vpop.f32.mrf.mxu0
        %v1005 = vadd.f32 %v974, %v1004
        %1006 = vmatmul.f32.gmra.mxu0 %v983
        %v1007 = vpop.f32.mrf.mxu0
        %v1008 = vadd.f32 %v976, %v1007
        %1009 = vdwg.mxu0
        %1010 = vst [vmem:[#allocation1] ss:$9 sm:$0xff] %v664
        %s1011 = scalar_lea.vmem [#allocation1], 1
        %1012 = vst [vmem:[%s1011] ss:$9 sm:$0xff] %v665
        %s1013 = scalar_lea.vmem [#allocation1], 2
        %1014 = vst [vmem:[%s1013] ss:$9 sm:$0xff] %v666
        %s1015 = scalar_lea.vmem [#allocation1], 3
        %1016 = vst [vmem:[%s1015] ss:$9 sm:$0xff] %v667
        %s1017 = scalar_lea.vmem [#allocation1], 4
        %1018 = vst [vmem:[%s1017] ss:$9 sm:$0xff] %v668
        %s1019 = scalar_lea.vmem [#allocation1], 5
        %1020 = vst [vmem:[%s1019] ss:$9 sm:$0xff] %v669
        %s1021 = scalar_lea.vmem [#allocation1], 6
        %1022 = vst [vmem:[%s1021] ss:$9 sm:$0xff] %v623
        %s1023 = scalar_lea.vmem [#allocation1], 7
        %1024 = vst [vmem:[%s1023] ss:$9 sm:$0xff] %v670
        %v1025 = vld [vmem:[#allocation1] sm:$0xff]
        %1026 = vst [vmem:[#allocation1] ss:$9 sm:$0xff] %v671
        %v1027 = vld [vmem:[#allocation1] sm:$0xff]
        %1038 = vst [vmem:[#allocation1] ss:$9 sm:$0xff] %v796
        %s1039 = scalar_lea.vmem [#allocation1], 1
        %1040 = vst [vmem:[%s1039] ss:$9 sm:$0xff] %v797
        %s1041 = scalar_lea.vmem [#allocation1], 2
        %1042 = vst [vmem:[%s1041] ss:$9 sm:$0xff] %v798
        %s1043 = scalar_lea.vmem [#allocation1], 3
        %1044 = vst [vmem:[%s1043] ss:$9 sm:$0xff] %v799
        %s1045 = scalar_lea.vmem [#allocation1], 4
        %1046 = vst [vmem:[%s1045] ss:$9 sm:$0xff] %v800
        %s1047 = scalar_lea.vmem [#allocation1], 5
        %1048 = vst [vmem:[%s1047] ss:$9 sm:$0xff] %v801
        %s1049 = scalar_lea.vmem [#allocation1], 6
        %1050 = vst [vmem:[%s1049] ss:$9 sm:$0xff] %v802
        %s1051 = scalar_lea.vmem [#allocation1], 7
        %1052 = vst [vmem:[%s1051] ss:$9 sm:$0xff] %v803
        %v1053 = vld [vmem:[#allocation1] sm:$0xff]
        %1054 = vst [vmem:[#allocation1] ss:$9 sm:$0xff] %v804
        %v1055 = vld [vmem:[#allocation1] sm:$0xff]
        %v1059 = vsel %vm898, %v550, 0
        %v1062 = vsel %vm898, %v551, 0
        %v1064 = vsel %vm905, %v1027, 0
        %1066 = vmatpush.msra.mxu0 0.0
        %1067 = vmatpush.msra.mxu0 0.0
        %1068 = vmatpush.msra.mxu0 0.0
        %1069 = vmatpush.msra.mxu0 0.0
        %1070 = vmatpush.msra.mxu0 0.0
        %1071 = vmatpush.msra.mxu0 0.0
        %1072 = vmatpush.msra.mxu0 0.0
        %1073 = vmatpush.msra.mxu0 0.0
        %1074 = vmatpush.msra.mxu0 0.0
        %1075 = vmatpush.msra.mxu0 0.0
        %1076 = vmatpush.msra.mxu0 0.0
        %1077 = vmatpush.msra.mxu0 0.0
        %1078 = vmatpush.msra.mxu0 0.0
        %1079 = vmatpush.msra.mxu0 0.0
        %1080 = vmatpush.msra.mxu0 %v1064
        %1081 = vmatpush.msra.mxu0 %v1025
        %1082 = vmatmul.f32.gmra.mxu0 %v1059
        %v1083 = vpop.f32.mrf.mxu0
        %v1084 = vadd.f32 %v1053, %v1083
        %1085 = vmatmul.f32.gmra.mxu0 %v1062
        %v1086 = vpop.f32.mrf.mxu0
        %v1087 = vadd.f32 %v1055, %v1086
        %1088 = vdwg.mxu0
        %1089 = vst [vmem:[#allocation1] ss:$9 sm:$0xff] %v672
        %s1090 = scalar_lea.vmem [#allocation1], 1
        %1091 = vst [vmem:[%s1090] ss:$9 sm:$0xff] %v673
        %s1092 = scalar_lea.vmem [#allocation1], 2
        %1093 = vst [vmem:[%s1092] ss:$9 sm:$0xff] %v674
        %s1094 = scalar_lea.vmem [#allocation1], 3
        %1095 = vst [vmem:[%s1094] ss:$9 sm:$0xff] %v675
        %s1096 = scalar_lea.vmem [#allocation1], 4
        %1097 = vst [vmem:[%s1096] ss:$9 sm:$0xff] %v676
        %s1098 = scalar_lea.vmem [#allocation1], 5
        %1099 = vst [vmem:[%s1098] ss:$9 sm:$0xff] %v626
        %s1100 = scalar_lea.vmem [#allocation1], 6
        %1101 = vst [vmem:[%s1100] ss:$9 sm:$0xff] %v677
        %s1102 = scalar_lea.vmem [#allocation1], 7
        %1103 = vst [vmem:[%s1102] ss:$9 sm:$0xff] %v678
        %v1104 = vld [vmem:[#allocation1] sm:$0xff]
        %1105 = vst [vmem:[#allocation1] ss:$9 sm:$0xff] %v679
        %v1106 = vld [vmem:[#allocation1] sm:$0xff]
        %1117 = vst [vmem:[#allocation1] ss:$9 sm:$0xff] %v805
        %s1118 = scalar_lea.vmem [#allocation1], 1
        %1119 = vst [vmem:[%s1118] ss:$9 sm:$0xff] %v806
        %s1120 = scalar_lea.vmem [#allocation1], 2
        %1121 = vst [vmem:[%s1120] ss:$9 sm:$0xff] %v807
        %s1122 = scalar_lea.vmem [#allocation1], 3
        %1123 = vst [vmem:[%s1122] ss:$9 sm:$0xff] %v808
        %s1124 = scalar_lea.vmem [#allocation1], 4
        %1125 = vst [vmem:[%s1124] ss:$9 sm:$0xff] %v809
        %s1126 = scalar_lea.vmem [#allocation1], 5
        %1127 = vst [vmem:[%s1126] ss:$9 sm:$0xff] %v810
        %s1128 = scalar_lea.vmem [#allocation1], 6
        %1129 = vst [vmem:[%s1128] ss:$9 sm:$0xff] %v811
        %s1130 = scalar_lea.vmem [#allocation1], 7
        %1131 = vst [vmem:[%s1130] ss:$9 sm:$0xff] %v812
        %v1132 = vld [vmem:[#allocation1] sm:$0xff]
        %1133 = vst [vmem:[#allocation1] ss:$9 sm:$0xff] %v813
        %v1134 = vld [vmem:[#allocation1] sm:$0xff]
        %v1138 = vsel %vm898, %v552, 0
        %v1141 = vsel %vm898, %v553, 0
        %v1143 = vsel %vm905, %v1106, 0
        %1145 = vmatpush.msra.mxu0 0.0
        %1146 = vmatpush.msra.mxu0 0.0
        %1147 = vmatpush.msra.mxu0 0.0
        %1148 = vmatpush.msra.mxu0 0.0
        %1149 = vmatpush.msra.mxu0 0.0
        %1150 = vmatpush.msra.mxu0 0.0
        %1151 = vmatpush.msra.mxu0 0.0
        %1152 = vmatpush.msra.mxu0 0.0
        %1153 = vmatpush.msra.mxu0 0.0
        %1154 = vmatpush.msra.mxu0 0.0
        %1155 = vmatpush.msra.mxu0 0.0
        %1156 = vmatpush.msra.mxu0 0.0
        %1157 = vmatpush.msra.mxu0 0.0
        %1158 = vmatpush.msra.mxu0 0.0
        %1159 = vmatpush.msra.mxu0 %v1143
        %1160 = vmatpush.msra.mxu0 %v1104
        %1161 = vmatmul.f32.gmra.mxu0 %v1138
        %v1162 = vpop.f32.mrf.mxu0
        %v1163 = vadd.f32 %v1132, %v1162
        %1164 = vmatmul.f32.gmra.mxu0 %v1141
        %v1165 = vpop.f32.mrf.mxu0
        %v1166 = vadd.f32 %v1134, %v1165
        %1167 = vdwg.mxu0
        %1168 = vst [vmem:[#allocation1] ss:$9 sm:$0xff] %v680
        %s1169 = scalar_lea.vmem [#allocation1], 1
        %1170 = vst [vmem:[%s1169] ss:$9 sm:$0xff] %v681
        %s1171 = scalar_lea.vmem [#allocation1], 2
        %1172 = vst [vmem:[%s1171] ss:$9 sm:$0xff] %v682
        %s1173 = scalar_lea.vmem [#allocation1], 3
        %1174 = vst [vmem:[%s1173] ss:$9 sm:$0xff] %v683
        %s1175 = scalar_lea.vmem [#allocation1], 4
        %1176 = vst [vmem:[%s1175] ss:$9 sm:$0xff] %v629
        %s1177 = scalar_lea.vmem [#allocation1], 5
        %1178 = vst [vmem:[%s1177] ss:$9 sm:$0xff] %v684
        %s1179 = scalar_lea.vmem [#allocation1], 6
        %1180 = vst [vmem:[%s1179] ss:$9 sm:$0xff] %v685
        %s1181 = scalar_lea.vmem [#allocation1], 7
        %1182 = vst [vmem:[%s1181] ss:$9 sm:$0xff] %v686
        %v1183 = vld [vmem:[#allocation1] sm:$0xff]
        %1184 = vst [vmem:[#allocation1] ss:$9 sm:$0xff] %v687
        %v1185 = vld [vmem:[#allocation1] sm:$0xff]
        %1196 = vst [vmem:[#allocation1] ss:$9 sm:$0xff] %v814
        %s1197 = scalar_lea.vmem [#allocation1], 1
        %1198 = vst [vmem:[%s1197] ss:$9 sm:$0xff] %v815
        %s1199 = scalar_lea.vmem [#allocation1], 2
        %1200 = vst [vmem:[%s1199] ss:$9 sm:$0xff] %v816
        %s1201 = scalar_lea.vmem [#allocation1], 3
        %1202 = vst [vmem:[%s1201] ss:$9 sm:$0xff] %v817
        %s1203 = scalar_lea.vmem [#allocation1], 4
        %1204 = vst [vmem:[%s1203] ss:$9 sm:$0xff] %v818
        %s1205 = scalar_lea.vmem [#allocation1], 5
        %1206 = vst [vmem:[%s1205] ss:$9 sm:$0xff] %v819
        %s1207 = scalar_lea.vmem [#allocation1], 6
        %1208 = vst [vmem:[%s1207] ss:$9 sm:$0xff] %v820
        %s1209 = scalar_lea.vmem [#allocation1], 7
        %1210 = vst [vmem:[%s1209] ss:$9 sm:$0xff] %v821
        %v1211 = vld [vmem:[#allocation1] sm:$0xff]
        %1212 = vst [vmem:[#allocation1] ss:$9 sm:$0xff] %v822
        %v1213 = vld [vmem:[#allocation1] sm:$0xff]
        %v1217 = vsel %vm898, %v554, 0
        %v1220 = vsel %vm898, %v555, 0
        %v1222 = vsel %vm905, %v1185, 0
        %1224 = vmatpush.msra.mxu0 0.0
        %1225 = vmatpush.msra.mxu0 0.0
        %1226 = vmatpush.msra.mxu0 0.0
        %1227 = vmatpush.msra.mxu0 0.0
        %1228 = vmatpush.msra.mxu0 0.0
        %1229 = vmatpush.msra.mxu0 0.0
        %1230 = vmatpush.msra.mxu0 0.0
        %1231 = vmatpush.msra.mxu0 0.0
        %1232 = vmatpush.msra.mxu0 0.0
        %1233 = vmatpush.msra.mxu0 0.0
        %1234 = vmatpush.msra.mxu0 0.0
        %1235 = vmatpush.msra.mxu0 0.0
        %1236 = vmatpush.msra.mxu0 0.0
        %1237 = vmatpush.msra.mxu0 0.0
        %1238 = vmatpush.msra.mxu0 %v1222
        %1239 = vmatpush.msra.mxu0 %v1183
        %1240 = vmatmul.f32.gmra.mxu0 %v1217
        %v1241 = vpop.f32.mrf.mxu0
        %v1242 = vadd.f32 %v1211, %v1241
        %1243 = vmatmul.f32.gmra.mxu0 %v1220
        %v1244 = vpop.f32.mrf.mxu0
        %v1245 = vadd.f32 %v1213, %v1244
        %1246 = vdwg.mxu0
        %1247 = vst [vmem:[#allocation1] ss:$9 sm:$0xff] %v688
        %s1248 = scalar_lea.vmem [#allocation1], 1
        %1249 = vst [vmem:[%s1248] ss:$9 sm:$0xff] %v689
        %s1250 = scalar_lea.vmem [#allocation1], 2
        %1251 = vst [vmem:[%s1250] ss:$9 sm:$0xff] %v690
        %s1252 = scalar_lea.vmem [#allocation1], 3
        %1253 = vst [vmem:[%s1252] ss:$9 sm:$0xff] %v632
        %s1254 = scalar_lea.vmem [#allocation1], 4
        %1255 = vst [vmem:[%s1254] ss:$9 sm:$0xff] %v691
        %s1256 = scalar_lea.vmem [#allocation1], 5
        %1257 = vst [vmem:[%s1256] ss:$9 sm:$0xff] %v692
        %s1258 = scalar_lea.vmem [#allocation1], 6
        %1259 = vst [vmem:[%s1258] ss:$9 sm:$0xff] %v693
        %s1260 = scalar_lea.vmem [#allocation1], 7
        %1261 = vst [vmem:[%s1260] ss:$9 sm:$0xff] %v694
        %v1262 = vld [vmem:[#allocation1] sm:$0xff]
        %1263 = vst [vmem:[#allocation1] ss:$9 sm:$0xff] %v695
        %v1264 = vld [vmem:[#allocation1] sm:$0xff]
        %1275 = vst [vmem:[#allocation1] ss:$9 sm:$0xff] %v823
        %s1276 = scalar_lea.vmem [#allocation1], 1
        %1277 = vst [vmem:[%s1276] ss:$9 sm:$0xff] %v824
        %s1278 = scalar_lea.vmem [#allocation1], 2
        %1279 = vst [vmem:[%s1278] ss:$9 sm:$0xff] %v825
        %s1280 = scalar_lea.vmem [#allocation1], 3
        %1281 = vst [vmem:[%s1280] ss:$9 sm:$0xff] %v826
        %s1282 = scalar_lea.vmem [#allocation1], 4
        %1283 = vst [vmem:[%s1282] ss:$9 sm:$0xff] %v827
        %s1284 = scalar_lea.vmem [#allocation1], 5
        %1285 = vst [vmem:[%s1284] ss:$9 sm:$0xff] %v828
        %s1286 = scalar_lea.vmem [#allocation1], 6
        %1287 = vst [vmem:[%s1286] ss:$9 sm:$0xff] %v829
        %s1288 = scalar_lea.vmem [#allocation1], 7
        %1289 = vst [vmem:[%s1288] ss:$9 sm:$0xff] %v830
        %v1290 = vld [vmem:[#allocation1] sm:$0xff]
        %1291 = vst [vmem:[#allocation1] ss:$9 sm:$0xff] %v831
        %v1292 = vld [vmem:[#allocation1] sm:$0xff]
        %v1296 = vsel %vm898, %v556, 0
        %v1299 = vsel %vm898, %v557, 0
        %v1301 = vsel %vm905, %v1264, 0
        %1303 = vmatpush.msra.mxu0 0.0
        %1304 = vmatpush.msra.mxu0 0.0
        %1305 = vmatpush.msra.mxu0 0.0
        %1306 = vmatpush.msra.mxu0 0.0
        %1307 = vmatpush.msra.mxu0 0.0
        %1308 = vmatpush.msra.mxu0 0.0
        %1309 = vmatpush.msra.mxu0 0.0
        %1310 = vmatpush.msra.mxu0 0.0
        %1311 = vmatpush.msra.mxu0 0.0
        %1312 = vmatpush.msra.mxu0 0.0
        %1313 = vmatpush.msra.mxu0 0.0
        %1314 = vmatpush.msra.mxu0 0.0
        %1315 = vmatpush.msra.mxu0 0.0
        %1316 = vmatpush.msra.mxu0 0.0
        %1317 = vmatpush.msra.mxu0 %v1301
        %1318 = vmatpush.msra.mxu0 %v1262
        %1319 = vmatmul.f32.gmra.mxu0 %v1296
        %v1320 = vpop.f32.mrf.mxu0
        %v1321 = vadd.f32 %v1290, %v1320
        %1322 = vmatmul.f32.gmra.mxu0 %v1299
        %v1323 = vpop.f32.mrf.mxu0
        %v1324 = vadd.f32 %v1292, %v1323
        %1325 = vdwg.mxu0
        %1326 = vst [vmem:[#allocation1] ss:$9 sm:$0xff] %v696
        %s1327 = scalar_lea.vmem [#allocation1], 1
        %1328 = vst [vmem:[%s1327] ss:$9 sm:$0xff] %v697
        %s1329 = scalar_lea.vmem [#allocation1], 2
        %1330 = vst [vmem:[%s1329] ss:$9 sm:$0xff] %v635
        %s1331 = scalar_lea.vmem [#allocation1], 3
        %1332 = vst [vmem:[%s1331] ss:$9 sm:$0xff] %v698
        %s1333 = scalar_lea.vmem [#allocation1], 4
        %1334 = vst [vmem:[%s1333] ss:$9 sm:$0xff] %v699
        %s1335 = scalar_lea.vmem [#allocation1], 5
        %1336 = vst [vmem:[%s1335] ss:$9 sm:$0xff] %v700
        %s1337 = scalar_lea.vmem [#allocation1], 6
        %1338 = vst [vmem:[%s1337] ss:$9 sm:$0xff] %v701
        %s1339 = scalar_lea.vmem [#allocation1], 7
        %1340 = vst [vmem:[%s1339] ss:$9 sm:$0xff] %v702
        %v1341 = vld [vmem:[#allocation1] sm:$0xff]
        %1342 = vst [vmem:[#allocation1] ss:$9 sm:$0xff] %v703
        %v1343 = vld [vmem:[#allocation1] sm:$0xff]
        %1354 = vst [vmem:[#allocation1] ss:$9 sm:$0xff] %v832
        %s1355 = scalar_lea.vmem [#allocation1], 1
        %1356 = vst [vmem:[%s1355] ss:$9 sm:$0xff] %v833
        %s1357 = scalar_lea.vmem [#allocation1], 2
        %1358 = vst [vmem:[%s1357] ss:$9 sm:$0xff] %v834
        %s1359 = scalar_lea.vmem [#allocation1], 3
        %1360 = vst [vmem:[%s1359] ss:$9 sm:$0xff] %v835
        %s1361 = scalar_lea.vmem [#allocation1], 4
        %1362 = vst [vmem:[%s1361] ss:$9 sm:$0xff] %v836
        %s1363 = scalar_lea.vmem [#allocation1], 5
        %1364 = vst [vmem:[%s1363] ss:$9 sm:$0xff] %v837
        %s1365 = scalar_lea.vmem [#allocation1], 6
        %1366 = vst [vmem:[%s1365] ss:$9 sm:$0xff] %v838
        %s1367 = scalar_lea.vmem [#allocation1], 7
        %1368 = vst [vmem:[%s1367] ss:$9 sm:$0xff] %v839
        %v1369 = vld [vmem:[#allocation1] sm:$0xff]
        %1370 = vst [vmem:[#allocation1] ss:$9 sm:$0xff] %v840
        %v1371 = vld [vmem:[#allocation1] sm:$0xff]
        %v1375 = vsel %vm898, %v558, 0
        %v1378 = vsel %vm898, %v559, 0
        %v1380 = vsel %vm905, %v1343, 0
        %1382 = vmatpush.msra.mxu0 0.0
        %1383 = vmatpush.msra.mxu0 0.0
        %1384 = vmatpush.msra.mxu0 0.0
        %1385 = vmatpush.msra.mxu0 0.0
        %1386 = vmatpush.msra.mxu0 0.0
        %1387 = vmatpush.msra.mxu0 0.0
        %1388 = vmatpush.msra.mxu0 0.0
        %1389 = vmatpush.msra.mxu0 0.0
        %1390 = vmatpush.msra.mxu0 0.0
        %1391 = vmatpush.msra.mxu0 0.0
        %1392 = vmatpush.msra.mxu0 0.0
        %1393 = vmatpush.msra.mxu0 0.0
        %1394 = vmatpush.msra.mxu0 0.0
        %1395 = vmatpush.msra.mxu0 0.0
        %1396 = vmatpush.msra.mxu0 %v1380
        %1397 = vmatpush.msra.mxu0 %v1341
        %1398 = vmatmul.f32.gmra.mxu0 %v1375
        %v1399 = vpop.f32.mrf.mxu0
        %v1400 = vadd.f32 %v1369, %v1399
        %1401 = vmatmul.f32.gmra.mxu0 %v1378
        %v1402 = vpop.f32.mrf.mxu0
        %v1403 = vadd.f32 %v1371, %v1402
        %1404 = vdwg.mxu0
        %1405 = vst [vmem:[#allocation1] ss:$9 sm:$0xff] %v704
        %s1406 = scalar_lea.vmem [#allocation1], 1
        %1407 = vst [vmem:[%s1406] ss:$9 sm:$0xff] %v638
        %s1408 = scalar_lea.vmem [#allocation1], 2
        %1409 = vst [vmem:[%s1408] ss:$9 sm:$0xff] %v705
        %s1410 = scalar_lea.vmem [#allocation1], 3
        %1411 = vst [vmem:[%s1410] ss:$9 sm:$0xff] %v706
        %s1412 = scalar_lea.vmem [#allocation1], 4
        %1413 = vst [vmem:[%s1412] ss:$9 sm:$0xff] %v707
        %s1414 = scalar_lea.vmem [#allocation1], 5
        %1415 = vst [vmem:[%s1414] ss:$9 sm:$0xff] %v708
        %s1416 = scalar_lea.vmem [#allocation1], 6
        %1417 = vst [vmem:[%s1416] ss:$9 sm:$0xff] %v709
        %s1418 = scalar_lea.vmem [#allocation1], 7
        %1419 = vst [vmem:[%s1418] ss:$9 sm:$0xff] %v710
        %v1420 = vld [vmem:[#allocation1] sm:$0xff]
        %1421 = vst [vmem:[#allocation1] ss:$9 sm:$0xff] %v711
        %v1422 = vld [vmem:[#allocation1] sm:$0xff]
        %1433 = vst [vmem:[#allocation1] ss:$9 sm:$0xff] %v841
        %s1434 = scalar_lea.vmem [#allocation1], 1
        %1435 = vst [vmem:[%s1434] ss:$9 sm:$0xff] %v842
        %s1436 = scalar_lea.vmem [#allocation1], 2
        %1437 = vst [vmem:[%s1436] ss:$9 sm:$0xff] %v843
        %s1438 = scalar_lea.vmem [#allocation1], 3
        %1439 = vst [vmem:[%s1438] ss:$9 sm:$0xff] %v844
        %s1440 = scalar_lea.vmem [#allocation1], 4
        %1441 = vst [vmem:[%s1440] ss:$9 sm:$0xff] %v845
        %s1442 = scalar_lea.vmem [#allocation1], 5
        %1443 = vst [vmem:[%s1442] ss:$9 sm:$0xff] %v846
        %s1444 = scalar_lea.vmem [#allocation1], 6
        %1445 = vst [vmem:[%s1444] ss:$9 sm:$0xff] %v847
        %s1446 = scalar_lea.vmem [#allocation1], 7
        %1447 = vst [vmem:[%s1446] ss:$9 sm:$0xff] %v848
        %v1448 = vld [vmem:[#allocation1] sm:$0xff]
        %1449 = vst [vmem:[#allocation1] ss:$9 sm:$0xff] %v849
        %v1450 = vld [vmem:[#allocation1] sm:$0xff]
        %v1454 = vsel %vm898, %v560, 0
        %v1457 = vsel %vm898, %v561, 0
        %v1459 = vsel %vm905, %v1422, 0
        %1461 = vmatpush.msra.mxu0 0.0
        %1462 = vmatpush.msra.mxu0 0.0
        %1463 = vmatpush.msra.mxu0 0.0
        %1464 = vmatpush.msra.mxu0 0.0
        %1465 = vmatpush.msra.mxu0 0.0
        %1466 = vmatpush.msra.mxu0 0.0
        %1467 = vmatpush.msra.mxu0 0.0
        %1468 = vmatpush.msra.mxu0 0.0
        %1469 = vmatpush.msra.mxu0 0.0
        %1470 = vmatpush.msra.mxu0 0.0
        %1471 = vmatpush.msra.mxu0 0.0
        %1472 = vmatpush.msra.mxu0 0.0
        %1473 = vmatpush.msra.mxu0 0.0
        %1474 = vmatpush.msra.mxu0 0.0
        %1475 = vmatpush.msra.mxu0 %v1459
        %1476 = vmatpush.msra.mxu0 %v1420
        %1477 = vmatmul.f32.gmra.mxu0 %v1454
        %v1478 = vpop.f32.mrf.mxu0
        %v1479 = vadd.f32 %v1448, %v1478
        %1480 = vmatmul.f32.gmra.mxu0 %v1457
        %v1481 = vpop.f32.mrf.mxu0
        %v1482 = vadd.f32 %v1450, %v1481
        %1483 = vdwg.mxu0
        %v1500 = vrot.slane %v926, 1
        %v1501 = vrot.slane %v926, 2
        %v1502 = vrot.slane %v926, 3
        %v1503 = vrot.slane %v926, 4
        %v1504 = vrot.slane %v926, 5
        %v1505 = vrot.slane %v926, 6
        %v1506 = vrot.slane %v926, 7
        %v1507 = vrot.slane %v1005, 1
        %v1508 = vrot.slane %v1005, 2
        %v1509 = vrot.slane %v1005, 3
        %v1510 = vrot.slane %v1005, 4
        %v1511 = vrot.slane %v1005, 5
        %v1512 = vrot.slane %v1005, 6
        %v1513 = vrot.slane %v1005, 7
        %v1514 = vrot.slane %v1084, 1
        %v1515 = vrot.slane %v1084, 2
        %v1516 = vrot.slane %v1084, 3
        %v1517 = vrot.slane %v1084, 4
        %v1518 = vrot.slane %v1084, 5
        %v1519 = vrot.slane %v1084, 6
        %v1520 = vrot.slane %v1084, 7
        %v1521 = vrot.slane %v1163, 1
        %v1522 = vrot.slane %v1163, 2
        %v1523 = vrot.slane %v1163, 3
        %v1524 = vrot.slane %v1163, 4
        %v1525 = vrot.slane %v1163, 5
        %v1526 = vrot.slane %v1163, 6
        %v1527 = vrot.slane %v1163, 7
        %v1528 = vrot.slane %v1242, 1
        %v1529 = vrot.slane %v1242, 2
        %v1530 = vrot.slane %v1242, 3
        %v1531 = vrot.slane %v1242, 4
        %v1532 = vrot.slane %v1242, 5
        %v1533 = vrot.slane %v1242, 6
        %v1534 = vrot.slane %v1242, 7
        %v1535 = vrot.slane %v1321, 1
        %v1536 = vrot.slane %v1321, 2
        %v1537 = vrot.slane %v1321, 3
        %v1538 = vrot.slane %v1321, 4
        %v1539 = vrot.slane %v1321, 5
        %v1540 = vrot.slane %v1321, 6
        %v1541 = vrot.slane %v1321, 7
        %v1542 = vrot.slane %v1400, 1
        %v1543 = vrot.slane %v1400, 2
        %v1544 = vrot.slane %v1400, 3
        %v1545 = vrot.slane %v1400, 4
        %v1546 = vrot.slane %v1400, 5
        %v1547 = vrot.slane %v1400, 6
        %v1548 = vrot.slane %v1400, 7
        %v1549 = vrot.slane %v1479, 1
        %v1550 = vrot.slane %v1479, 2
        %v1551 = vrot.slane %v1479, 3
        %v1552 = vrot.slane %v1479, 4
        %v1553 = vrot.slane %v1479, 5
        %v1554 = vrot.slane %v1479, 6
        %v1555 = vrot.slane %v1479, 7
        %v1556 = vld [vmem:[%s7] sm:$0xff]
        %v1557 = vld [vmem:[%s7 + $0x8] sm:$0xff]
        %v1558 = vld [vmem:[%s7 + $0x10] sm:$0xff]
        %v1559 = vld [vmem:[%s7 + $0x18] sm:$0xff]
        %v1560 = vld [vmem:[%s8] sm:$0x1]
        %v1562 = vperm.slane %v1560, 0
        %1564 = vst [vmem:[#allocation1] ss:$9 sm:$0xff] %v926
        %s1565 = scalar_lea.vmem [#allocation1], 1
        %1566 = vst [vmem:[%s1565] ss:$9 sm:$0xff] %v1500
        %s1567 = scalar_lea.vmem [#allocation1], 2
        %1568 = vst [vmem:[%s1567] ss:$9 sm:$0xff] %v1501
        %s1569 = scalar_lea.vmem [#allocation1], 3
        %1570 = vst [vmem:[%s1569] ss:$9 sm:$0xff] %v1502
        %s1571 = scalar_lea.vmem [#allocation1], 4
        %1572 = vst [vmem:[%s1571] ss:$9 sm:$0xff] %v1503
        %s1573 = scalar_lea.vmem [#allocation1], 5
        %1574 = vst [vmem:[%s1573] ss:$9 sm:$0xff] %v1504
        %s1575 = scalar_lea.vmem [#allocation1], 6
        %1576 = vst [vmem:[%s1575] ss:$9 sm:$0xff] %v1505
        %s1577 = scalar_lea.vmem [#allocation1], 7
        %1578 = vst [vmem:[%s1577] ss:$9 sm:$0xff] %v1506
        %v1579 = vld [vmem:[#allocation1] sm:$0xff]
        %1580 = vst [vmem:[#allocation1] ss:$9 sm:$0xff] %v929
        %1581 = vst [vmem:[%s1565] ss:$9 sm:$0xff] %v1005
        %1582 = vst [vmem:[%s1567] ss:$9 sm:$0xff] %v1507
        %1583 = vst [vmem:[%s1569] ss:$9 sm:$0xff] %v1508
        %1584 = vst [vmem:[%s1571] ss:$9 sm:$0xff] %v1509
        %1585 = vst [vmem:[%s1573] ss:$9 sm:$0xff] %v1510
        %1586 = vst [vmem:[%s1575] ss:$9 sm:$0xff] %v1511
        %1587 = vst [vmem:[%s1577] ss:$9 sm:$0xff] %v1512
        %v1588 = vld [vmem:[#allocation1] sm:$0xff]
        %1589 = vst [vmem:[#allocation1] ss:$9 sm:$0xff] %v1513
        %1590 = vst [vmem:[%s1565] ss:$9 sm:$0xff] %v1008
        %1591 = vst [vmem:[%s1567] ss:$9 sm:$0xff] %v1084
        %1592 = vst [vmem:[%s1569] ss:$9 sm:$0xff] %v1514
        %1593 = vst [vmem:[%s1571] ss:$9 sm:$0xff] %v1515
        %1594 = vst [vmem:[%s1573] ss:$9 sm:$0xff] %v1516
        %1595 = vst [vmem:[%s1575] ss:$9 sm:$0xff] %v1517
        %1596 = vst [vmem:[%s1577] ss:$9 sm:$0xff] %v1518
        %v1597 = vld [vmem:[#allocation1] sm:$0xff]
        %1598 = vst [vmem:[#allocation1] ss:$9 sm:$0xff] %v1519
        %1599 = vst [vmem:[%s1565] ss:$9 sm:$0xff] %v1520
        %1600 = vst [vmem:[%s1567] ss:$9 sm:$0xff] %v1087
        %1601 = vst [vmem:[%s1569] ss:$9 sm:$0xff] %v1163
        %1602 = vst [vmem:[%s1571] ss:$9 sm:$0xff] %v1521
        %1603 = vst [vmem:[%s1573] ss:$9 sm:$0xff] %v1522
        %1604 = vst [vmem:[%s1575] ss:$9 sm:$0xff] %v1523
        %1605 = vst [vmem:[%s1577] ss:$9 sm:$0xff] %v1524
        %v1606 = vld [vmem:[#allocation1] sm:$0xff]
        %1607 = vst [vmem:[#allocation1] ss:$9 sm:$0xff] %v1525
        %1608 = vst [vmem:[%s1565] ss:$9 sm:$0xff] %v1526
        %1609 = vst [vmem:[%s1567] ss:$9 sm:$0xff] %v1527
        %1610 = vst [vmem:[%s1569] ss:$9 sm:$0xff] %v1166
        %1611 = vst [vmem:[%s1571] ss:$9 sm:$0xff] %v1242
        %1612 = vst [vmem:[%s1573] ss:$9 sm:$0xff] %v1528
        %1613 = vst [vmem:[%s1575] ss:$9 sm:$0xff] %v1529
        %1614 = vst [vmem:[%s1577] ss:$9 sm:$0xff] %v1530
        %v1615 = vld [vmem:[#allocation1] sm:$0xff]
        %1616 = vst [vmem:[#allocation1] ss:$9 sm:$0xff] %v1531
        %1617 = vst [vmem:[%s1565] ss:$9 sm:$0xff] %v1532
        %1618 = vst [vmem:[%s1567] ss:$9 sm:$0xff] %v1533
        %1619 = vst [vmem:[%s1569] ss:$9 sm:$0xff] %v1534
        %1620 = vst [vmem:[%s1571] ss:$9 sm:$0xff] %v1245
        %1621 = vst [vmem:[%s1573] ss:$9 sm:$0xff] %v1321
        %1622 = vst [vmem:[%s1575] ss:$9 sm:$0xff] %v1535
        %1623 = vst [vmem:[%s1577] ss:$9 sm:$0xff] %v1536
        %v1624 = vld [vmem:[#allocation1] sm:$0xff]
        %1625 = vst [vmem:[#allocation1] ss:$9 sm:$0xff] %v1537
        %1626 = vst [vmem:[%s1565] ss:$9 sm:$0xff] %v1538
        %1627 = vst [vmem:[%s1567] ss:$9 sm:$0xff] %v1539
        %1628 = vst [vmem:[%s1569] ss:$9 sm:$0xff] %v1540
        %1629 = vst [vmem:[%s1571] ss:$9 sm:$0xff] %v1541
        %1630 = vst [vmem:[%s1573] ss:$9 sm:$0xff] %v1324
        %1631 = vst [vmem:[%s1575] ss:$9 sm:$0xff] %v1400
        %1632 = vst [vmem:[%s1577] ss:$9 sm:$0xff] %v1542
        %v1633 = vld [vmem:[#allocation1] sm:$0xff]
        %1634 = vst [vmem:[#allocation1] ss:$9 sm:$0xff] %v1543
        %1635 = vst [vmem:[%s1565] ss:$9 sm:$0xff] %v1544
        %1636 = vst [vmem:[%s1567] ss:$9 sm:$0xff] %v1545
        %1637 = vst [vmem:[%s1569] ss:$9 sm:$0xff] %v1546
        %1638 = vst [vmem:[%s1571] ss:$9 sm:$0xff] %v1547
        %1639 = vst [vmem:[%s1573] ss:$9 sm:$0xff] %v1548
        %1640 = vst [vmem:[%s1575] ss:$9 sm:$0xff] %v1403
        %1641 = vst [vmem:[%s1577] ss:$9 sm:$0xff] %v1479
        %v1642 = vld [vmem:[#allocation1] sm:$0xff]
        %1643 = vst [vmem:[#allocation1] ss:$9 sm:$0xff] %v1549
        %1644 = vst [vmem:[%s1565] ss:$9 sm:$0xff] %v1550
        %1645 = vst [vmem:[%s1567] ss:$9 sm:$0xff] %v1551
        %1646 = vst [vmem:[%s1569] ss:$9 sm:$0xff] %v1552
        %1647 = vst [vmem:[%s1571] ss:$9 sm:$0xff] %v1553
        %1648 = vst [vmem:[%s1573] ss:$9 sm:$0xff] %v1554
        %1649 = vst [vmem:[%s1575] ss:$9 sm:$0xff] %v1555
        %1650 = vst [vmem:[%s1577] ss:$9 sm:$0xff] %v1482
        %v1651 = vld [vmem:[#allocation1] sm:$0xff]
        %vm1652 = vcmask 261120
        %v1653 = vsel %vm1652, %v1579, 0
        %v1655 = vsel %vm1652, %v1588, 0
        %v1657 = vsel %vm1652, %v1597, 0
        %v1659 = vsel %vm1652, %v1606, 0
        %v1661 = vsel %vm1652, %v1615, 0
        %v1663 = vsel %vm1652, %v1624, 0
        %v1665 = vsel %vm1652, %v1633, 0
        %v1667 = vsel %vm1652, %v1642, 0
        %v1669 = vsel %vm1652, %v1651, 0
        %1671 = vmatpush.msra.mxu0 0.0
        %1672 = vmatpush.msra.mxu0 0.0
        %1673 = vmatpush.msra.mxu0 0.0
        %1674 = vmatpush.msra.mxu0 0.0
        %1675 = vmatpush.msra.mxu0 0.0
        %1676 = vmatpush.msra.mxu0 0.0
        %1677 = vmatpush.msra.mxu0 0.0
        %1678 = vmatpush.msra.mxu0 0.0
        %1679 = vmatpush.msra.mxu0 0.0
        %1680 = vmatpush.msra.mxu0 0.0
        %1681 = vmatpush.msra.mxu0 0.0
        %1682 = vmatpush.msra.mxu0 0.0
        %1683 = vmatpush.msra.mxu0 %v1559
        %1684 = vmatpush.msra.mxu0 %v1558
        %1685 = vmatpush.msra.mxu0 %v1557
        %1686 = vmatpush.msra.mxu0 %v1556
        %1687 = vmatmul.f32.gmra.mxu0 %v1653
        %v1688 = vpop.f32.mrf.mxu0
        %v1689 = vadd.f32 %v1562, %v1688
        %1690 = vmatmul.f32.gmra.mxu0 %v1655
        %v1691 = vpop.f32.mrf.mxu0
        %v1692 = vadd.f32 %v1562, %v1691
        %1693 = vmatmul.f32.gmra.mxu0 %v1657
        %v1694 = vpop.f32.mrf.mxu0
        %v1695 = vadd.f32 %v1562, %v1694
        %1696 = vmatmul.f32.gmra.mxu0 %v1659
        %v1697 = vpop.f32.mrf.mxu0
        %v1698 = vadd.f32 %v1562, %v1697
        %1699 = vmatmul.f32.gmra.mxu0 %v1661
        %v1700 = vpop.f32.mrf.mxu0
        %v1701 = vadd.f32 %v1562, %v1700
        %1702 = vmatmul.f32.gmra.mxu0 %v1663
        %v1703 = vpop.f32.mrf.mxu0
        %v1704 = vadd.f32 %v1562, %v1703
        %1705 = vmatmul.f32.gmra.mxu0 %v1665
        %v1706 = vpop.f32.mrf.mxu0
        %v1707 = vadd.f32 %v1562, %v1706
        %1708 = vmatmul.f32.gmra.mxu0 %v1667
        %v1709 = vpop.f32.mrf.mxu0
        %v1710 = vadd.f32 %v1562, %v1709
        %1711 = vmatmul.f32.gmra.mxu0 %v1669
        %v1712 = vpop.f32.mrf.mxu0
        %v1713 = vadd.f32 %v1562, %v1712
        %1714 = vdwg.mxu0
        %v1715 = vld [vmem:[%s11] sm:$0xff]
        %v1716 = vld [vmem:[%s11 + $0x8] sm:$0xff]
        %v1717 = vld [vmem:[%s11 + $0x10] sm:$0xff]
        %v1718 = vld [vmem:[%s11 + $0x18] sm:$0xff]
        %v1719 = vld [vmem:[%s11 + $0x20] sm:$0xff]
        %v1720 = vld [vmem:[%s11 + $0x28] sm:$0xff]
        %v1721 = vld [vmem:[%s11 + $0x30] sm:$0xff]
        %v1722 = vld [vmem:[%s11 + $0x38] sm:$0xff]
        %v1723 = vld [vmem:[%s11 + $0x40] sm:$0xff]
        %1725 = vset.pattern.permute.xlu0 0
        %1726 = vperm.xlu0 %1725, %v1715
        %v1727 = vpop.permute.xlu0 %1726
        %1730 = vset.pattern.permute.xlu0 0
        %1731 = vperm.xlu0 %1730, %v1716
        %v1732 = vpop.permute.xlu0 %1731
        %1735 = vset.pattern.permute.xlu0 0
        %1736 = vperm.xlu0 %1735, %v1717
        %v1737 = vpop.permute.xlu0 %1736
        %1740 = vset.pattern.permute.xlu0 0
        %1741 = vperm.xlu0 %1740, %v1718
        %v1742 = vpop.permute.xlu0 %1741
        %1745 = vset.pattern.permute.xlu0 0
        %1746 = vperm.xlu0 %1745, %v1719
        %v1747 = vpop.permute.xlu0 %1746
        %1750 = vset.pattern.permute.xlu0 0
        %1751 = vperm.xlu0 %1750, %v1720
        %v1752 = vpop.permute.xlu0 %1751
        %1755 = vset.pattern.permute.xlu0 0
        %1756 = vperm.xlu0 %1755, %v1721
        %v1757 = vpop.permute.xlu0 %1756
        %1760 = vset.pattern.permute.xlu0 0
        %1761 = vperm.xlu0 %1760, %v1722
        %v1762 = vpop.permute.xlu0 %1761
        %1765 = vset.pattern.permute.xlu0 0
        %1766 = vperm.xlu0 %1765, %v1723
        %v1767 = vpop.permute.xlu0 %1766
        %v1769 = vmul.f32 %v1689, %v1727
        %v1770 = vmul.f32 %v1692, %v1732
        %v1771 = vmul.f32 %v1695, %v1737
        %v1772 = vmul.f32 %v1698, %v1742
        %v1773 = vmul.f32 %v1701, %v1747
        %v1774 = vmul.f32 %v1704, %v1752
        %v1775 = vmul.f32 %v1707, %v1757
        %v1776 = vmul.f32 %v1710, %v1762
        %v1777 = vmul.f32 %v1713, %v1767
        %v1778 = vld [vmem:[%s12] sm:$0xff]
        %v1779 = vld [vmem:[%s12 + $0x8] sm:$0xff]
        %v1780 = vld [vmem:[%s12 + $0x10] sm:$0xff]
        %v1781 = vld [vmem:[%s12 + $0x18] sm:$0xff]
        %v1782 = vld [vmem:[%s12 + $0x20] sm:$0xff]
        %v1783 = vld [vmem:[%s12 + $0x28] sm:$0xff]
        %v1784 = vld [vmem:[%s12 + $0x30] sm:$0xff]
        %v1785 = vld [vmem:[%s12 + $0x38] sm:$0xff]
        %v1786 = vld [vmem:[%s12 + $0x40] sm:$0xff]
        %1788 = vset.pattern.permute.xlu0 0
        %1789 = vperm.xlu0 %1788, %v1778
        %v1790 = vpop.permute.xlu0 %1789
        %1793 = vset.pattern.permute.xlu0 0
        %1794 = vperm.xlu0 %1793, %v1779
        %v1795 = vpop.permute.xlu0 %1794
        %1798 = vset.pattern.permute.xlu0 0
        %1799 = vperm.xlu0 %1798, %v1780
        %v1800 = vpop.permute.xlu0 %1799
        %1803 = vset.pattern.permute.xlu0 0
        %1804 = vperm.xlu0 %1803, %v1781
        %v1805 = vpop.permute.xlu0 %1804
        %1808 = vset.pattern.permute.xlu0 0
        %1809 = vperm.xlu0 %1808, %v1782
        %v1810 = vpop.permute.xlu0 %1809
        %1813 = vset.pattern.permute.xlu0 0
        %1814 = vperm.xlu0 %1813, %v1783
        %v1815 = vpop.permute.xlu0 %1814
        %1818 = vset.pattern.permute.xlu0 0
        %1819 = vperm.xlu0 %1818, %v1784
        %v1820 = vpop.permute.xlu0 %1819
        %1823 = vset.pattern.permute.xlu0 0
        %1824 = vperm.xlu0 %1823, %v1785
        %v1825 = vpop.permute.xlu0 %1824
        %1828 = vset.pattern.permute.xlu0 0
        %1829 = vperm.xlu0 %1828, %v1786
        %v1830 = vpop.permute.xlu0 %1829
        %v1832 = vadd.f32 %v1769, %v1790
        %v1833 = vadd.f32 %v1770, %v1795
        %v1834 = vadd.f32 %v1771, %v1800
        %v1835 = vadd.f32 %v1772, %v1805
        %v1836 = vadd.f32 %v1773, %v1810
        %v1837 = vadd.f32 %v1774, %v1815
        %v1838 = vadd.f32 %v1775, %v1820
        %v1839 = vadd.f32 %v1776, %v1825
        %v1840 = vadd.f32 %v1777, %v1830
        %v1841 = vmax.f32 %v1832, 0.0
        %v1842 = vmax.f32 %v1833, 0.0
        %v1843 = vmax.f32 %v1834, 0.0
        %v1844 = vmax.f32 %v1835, 0.0
        %v1845 = vmax.f32 %v1836, 0.0
        %v1846 = vmax.f32 %v1837, 0.0
        %v1847 = vmax.f32 %v1838, 0.0
        %v1848 = vmax.f32 %v1839, 0.0
        %v1849 = vmax.f32 %v1840, 0.0
        %v1850 = vld [vmem:[%s9] sm:$0xff]
        %v1851 = vld [vmem:[%s9 + $0x8] sm:$0xff]
        %v1852 = vld [vmem:[%s9 + $0x10] sm:$0xff]
        %v1853 = vld [vmem:[%s9 + $0x18] sm:$0xff]
        %v1854 = vld [vmem:[%s10] sm:$0x1]
        %v1856 = vperm.slane %v1854, 0
        %v1859 = vsel %vm1652, %v1841, 0
        %v1862 = vsel %vm1652, %v1842, 0
        %v1865 = vsel %vm1652, %v1843, 0
        %v1868 = vsel %vm1652, %v1844, 0
        %v1871 = vsel %vm1652, %v1845, 0
        %v1874 = vsel %vm1652, %v1846, 0
        %v1877 = vsel %vm1652, %v1847, 0
        %v1880 = vsel %vm1652, %v1848, 0
        %v1883 = vsel %vm1652, %v1849, 0
        %1885 = vmatpush.msra.mxu0 0.0
        %1886 = vmatpush.msra.mxu0 0.0
        %1887 = vmatpush.msra.mxu0 0.0
        %1888 = vmatpush.msra.mxu0 0.0
        %1889 = vmatpush.msra.mxu0 0.0
        %1890 = vmatpush.msra.mxu0 0.0
        %1891 = vmatpush.msra.mxu0 0.0
        %1892 = vmatpush.msra.mxu0 0.0
        %1893 = vmatpush.msra.mxu0 0.0
        %1894 = vmatpush.msra.mxu0 0.0
        %1895 = vmatpush.msra.mxu0 0.0
        %1896 = vmatpush.msra.mxu0 0.0
        %1897 = vmatpush.msra.mxu0 %v1853
        %1898 = vmatpush.msra.mxu0 %v1852
        %1899 = vmatpush.msra.mxu0 %v1851
        %1900 = vmatpush.msra.mxu0 %v1850
        %1901 = vmatmul.f32.gmra.mxu0 %v1859
        %v1902 = vpop.f32.mrf.mxu0
        %v1903 = vadd.f32 %v1856, %v1902
        %1904 = vmatmul.f32.gmra.mxu0 %v1862
        %v1905 = vpop.f32.mrf.mxu0
        %v1906 = vadd.f32 %v1856, %v1905
        %1907 = vmatmul.f32.gmra.mxu0 %v1865
        %v1908 = vpop.f32.mrf.mxu0
        %v1909 = vadd.f32 %v1856, %v1908
        %1910 = vmatmul.f32.gmra.mxu0 %v1868
        %v1911 = vpop.f32.mrf.mxu0
        %v1912 = vadd.f32 %v1856, %v1911
        %1913 = vmatmul.f32.gmra.mxu0 %v1871
        %v1914 = vpop.f32.mrf.mxu0
        %v1915 = vadd.f32 %v1856, %v1914
        %1916 = vmatmul.f32.gmra.mxu0 %v1874
        %v1917 = vpop.f32.mrf.mxu0
        %v1918 = vadd.f32 %v1856, %v1917
        %1919 = vmatmul.f32.gmra.mxu0 %v1877
        %v1920 = vpop.f32.mrf.mxu0
        %v1921 = vadd.f32 %v1856, %v1920
        %1922 = vmatmul.f32.gmra.mxu0 %v1880
        %v1923 = vpop.f32.mrf.mxu0
        %v1924 = vadd.f32 %v1856, %v1923
        %1925 = vmatmul.f32.gmra.mxu0 %v1883
        %v1926 = vpop.f32.mrf.mxu0
        %v1927 = vadd.f32 %v1856, %v1926
        %1928 = vdwg.mxu0
        %s1929 = scalar_lea.vmem %s11, 72
        %v1930 = vld [vmem:[%s1929] sm:$0xff]
        %v1931 = vld [vmem:[%s1929 + $0x8] sm:$0xff]
        %v1932 = vld [vmem:[%s1929 + $0x10] sm:$0xff]
        %v1933 = vld [vmem:[%s1929 + $0x18] sm:$0xff]
        %v1934 = vld [vmem:[%s1929 + $0x20] sm:$0xff]
        %v1935 = vld [vmem:[%s1929 + $0x28] sm:$0xff]
        %v1936 = vld [vmem:[%s1929 + $0x30] sm:$0xff]
        %v1937 = vld [vmem:[%s1929 + $0x38] sm:$0xff]
        %v1938 = vld [vmem:[%s1929 + $0x40] sm:$0xff]
        %1940 = vset.pattern.permute.xlu0 0
        %1941 = vperm.xlu0 %1940, %v1930
        %v1942 = vpop.permute.xlu0 %1941
        %1945 = vset.pattern.permute.xlu0 0
        %1946 = vperm.xlu0 %1945, %v1931
        %v1947 = vpop.permute.xlu0 %1946
        %1950 = vset.pattern.permute.xlu0 0
        %1951 = vperm.xlu0 %1950, %v1932
        %v1952 = vpop.permute.xlu0 %1951
        %1955 = vset.pattern.permute.xlu0 0
        %1956 = vperm.xlu0 %1955, %v1933
        %v1957 = vpop.permute.xlu0 %1956
        %1960 = vset.pattern.permute.xlu0 0
        %1961 = vperm.xlu0 %1960, %v1934
        %v1962 = vpop.permute.xlu0 %1961
        %1965 = vset.pattern.permute.xlu0 0
        %1966 = vperm.xlu0 %1965, %v1935
        %v1967 = vpop.permute.xlu0 %1966
        %1970 = vset.pattern.permute.xlu0 0
        %1971 = vperm.xlu0 %1970, %v1936
        %v1972 = vpop.permute.xlu0 %1971
        %1975 = vset.pattern.permute.xlu0 0
        %1976 = vperm.xlu0 %1975, %v1937
        %v1977 = vpop.permute.xlu0 %1976
        %1980 = vset.pattern.permute.xlu0 0
        %1981 = vperm.xlu0 %1980, %v1938
        %v1982 = vpop.permute.xlu0 %1981
        %v1984 = vmul.f32 %v1903, %v1942
        %v1985 = vmul.f32 %v1906, %v1947
        %v1986 = vmul.f32 %v1909, %v1952
        %v1987 = vmul.f32 %v1912, %v1957
        %v1988 = vmul.f32 %v1915, %v1962
        %v1989 = vmul.f32 %v1918, %v1967
        %v1990 = vmul.f32 %v1921, %v1972
        %v1991 = vmul.f32 %v1924, %v1977
        %v1992 = vmul.f32 %v1927, %v1982
        %s1993 = scalar_lea.vmem %s12, 72
        %v1994 = vld [vmem:[%s1993] sm:$0xff]
        %v1995 = vld [vmem:[%s1993 + $0x8] sm:$0xff]
        %v1996 = vld [vmem:[%s1993 + $0x10] sm:$0xff]
        %v1997 = vld [vmem:[%s1993 + $0x18] sm:$0xff]
        %v1998 = vld [vmem:[%s1993 + $0x20] sm:$0xff]
        %v1999 = vld [vmem:[%s1993 + $0x28] sm:$0xff]
        %v2000 = vld [vmem:[%s1993 + $0x30] sm:$0xff]
        %v2001 = vld [vmem:[%s1993 + $0x38] sm:$0xff]
        %v2002 = vld [vmem:[%s1993 + $0x40] sm:$0xff]
        %2004 = vset.pattern.permute.xlu0 0
        %2005 = vperm.xlu0 %2004, %v1994
        %v2006 = vpop.permute.xlu0 %2005
        %2009 = vset.pattern.permute.xlu0 0
        %2010 = vperm.xlu0 %2009, %v1995
        %v2011 = vpop.permute.xlu0 %2010
        %2014 = vset.pattern.permute.xlu0 0
        %2015 = vperm.xlu0 %2014, %v1996
        %v2016 = vpop.permute.xlu0 %2015
        %2019 = vset.pattern.permute.xlu0 0
        %2020 = vperm.xlu0 %2019, %v1997
        %v2021 = vpop.permute.xlu0 %2020
        %2024 = vset.pattern.permute.xlu0 0
        %2025 = vperm.xlu0 %2024, %v1998
        %v2026 = vpop.permute.xlu0 %2025
        %2029 = vset.pattern.permute.xlu0 0
        %2030 = vperm.xlu0 %2029, %v1999
        %v2031 = vpop.permute.xlu0 %2030
        %2034 = vset.pattern.permute.xlu0 0
        %2035 = vperm.xlu0 %2034, %v2000
        %v2036 = vpop.permute.xlu0 %2035
        %2039 = vset.pattern.permute.xlu0 0
        %2040 = vperm.xlu0 %2039, %v2001
        %v2041 = vpop.permute.xlu0 %2040
        %2044 = vset.pattern.permute.xlu0 0
        %2045 = vperm.xlu0 %2044, %v2002
        %v2046 = vpop.permute.xlu0 %2045
        %v2048 = vadd.f32 %v1984, %v2006
        %v2049 = vadd.f32 %v1985, %v2011
        %v2050 = vadd.f32 %v1986, %v2016
        %v2051 = vadd.f32 %v1987, %v2021
        %v2052 = vadd.f32 %v1988, %v2026
        %v2053 = vadd.f32 %v1989, %v2031
        %v2054 = vadd.f32 %v1990, %v2036
        %v2055 = vadd.f32 %v1991, %v2041
        %v2056 = vadd.f32 %v1992, %v2046
        %v2057 = vmax.f32 %v2048, 0.0
        %v2058 = vmax.f32 %v2049, 0.0
        %v2059 = vmax.f32 %v2050, 0.0
        %v2060 = vmax.f32 %v2051, 0.0
        %v2061 = vmax.f32 %v2052, 0.0
        %v2062 = vmax.f32 %v2053, 0.0
        %v2063 = vmax.f32 %v2054, 0.0
        %v2064 = vmax.f32 %v2055, 0.0
        %v2065 = vmax.f32 %v2056, 0.0
        %v2066 = vld [vmem:[%s5] sm:$0xff]
        %v2067 = vld [vmem:[%s5 + $0x8] sm:$0xff]
        %v2068 = vld [vmem:[%s5 + $0x10] sm:$0xff]
        %v2069 = vld [vmem:[%s5 + $0x18] sm:$0xff]
        %v2070 = vld [vmem:[%s6] sm:$0x1]
        %v2072 = vperm.slane %v2070, 0
        %v2075 = vsel %vm1652, %v2057, 0
        %v2078 = vsel %vm1652, %v2058, 0
        %v2081 = vsel %vm1652, %v2059, 0
        %v2084 = vsel %vm1652, %v2060, 0
        %v2087 = vsel %vm1652, %v2061, 0
        %v2090 = vsel %vm1652, %v2062, 0
        %v2093 = vsel %vm1652, %v2063, 0
        %v2096 = vsel %vm1652, %v2064, 0
        %v2099 = vsel %vm1652, %v2065, 0
        %2101 = vmatpush.msra.mxu0 0.0
        %2102 = vmatpush.msra.mxu0 0.0
        %2103 = vmatpush.msra.mxu0 0.0
        %2104 = vmatpush.msra.mxu0 0.0
        %2105 = vmatpush.msra.mxu0 0.0
        %2106 = vmatpush.msra.mxu0 0.0
        %2107 = vmatpush.msra.mxu0 0.0
        %2108 = vmatpush.msra.mxu0 0.0
        %2109 = vmatpush.msra.mxu0 0.0
        %2110 = vmatpush.msra.mxu0 0.0
        %2111 = vmatpush.msra.mxu0 0.0
        %2112 = vmatpush.msra.mxu0 0.0
        %2113 = vmatpush.msra.mxu0 %v2069
        %2114 = vmatpush.msra.mxu0 %v2068
        %2115 = vmatpush.msra.mxu0 %v2067
        %2116 = vmatpush.msra.mxu0 %v2066
        %2117 = vmatmul.f32.gmra.mxu0 %v2075
        %v2118 = vpop.f32.mrf.mxu0
        %v2119 = vadd.f32 %v2072, %v2118
        %2120 = vmatmul.f32.gmra.mxu0 %v2078
        %v2121 = vpop.f32.mrf.mxu0
        %v2122 = vadd.f32 %v2072, %v2121
        %2123 = vmatmul.f32.gmra.mxu0 %v2081
        %v2124 = vpop.f32.mrf.mxu0
        %v2125 = vadd.f32 %v2072, %v2124
        %2126 = vmatmul.f32.gmra.mxu0 %v2084
        %v2127 = vpop.f32.mrf.mxu0
        %v2128 = vadd.f32 %v2072, %v2127
        %2129 = vmatmul.f32.gmra.mxu0 %v2087
        %v2130 = vpop.f32.mrf.mxu0
        %v2131 = vadd.f32 %v2072, %v2130
        %2132 = vmatmul.f32.gmra.mxu0 %v2090
        %v2133 = vpop.f32.mrf.mxu0
        %v2134 = vadd.f32 %v2072, %v2133
        %2135 = vmatmul.f32.gmra.mxu0 %v2093
        %v2136 = vpop.f32.mrf.mxu0
        %v2137 = vadd.f32 %v2072, %v2136
        %2138 = vmatmul.f32.gmra.mxu0 %v2096
        %v2139 = vpop.f32.mrf.mxu0
        %v2140 = vadd.f32 %v2072, %v2139
        %2141 = vmatmul.f32.gmra.mxu0 %v2099
        %v2142 = vpop.f32.mrf.mxu0
        %v2143 = vadd.f32 %v2072, %v2142
        %2144 = vdwg.mxu0
        %v2154 = vrot.slane %v2119, 1
        %v2155 = vrot.slane %v2119, 2
        %v2156 = vrot.slane %v2119, 3
        %v2157 = vrot.slane %v2119, 4
        %v2158 = vrot.slane %v2119, 5
        %v2159 = vrot.slane %v2119, 6
        %v2160 = vrot.slane %v2119, 7
        %v2161 = vrot.slane %v2122, 1
        %v2162 = vrot.slane %v2122, 2
        %v2163 = vrot.slane %v2122, 3
        %v2164 = vrot.slane %v2122, 4
        %v2165 = vrot.slane %v2122, 5
        %v2166 = vrot.slane %v2122, 6
        %v2167 = vrot.slane %v2122, 7
        %v2168 = vrot.slane %v2125, 1
        %v2169 = vrot.slane %v2125, 2
        %v2170 = vrot.slane %v2125, 3
        %v2171 = vrot.slane %v2125, 4
        %v2172 = vrot.slane %v2125, 5
        %v2173 = vrot.slane %v2125, 6
        %v2174 = vrot.slane %v2125, 7
        %v2175 = vrot.slane %v2128, 1
        %v2176 = vrot.slane %v2128, 2
        %v2177 = vrot.slane %v2128, 3
        %v2178 = vrot.slane %v2128, 4
        %v2179 = vrot.slane %v2128, 5
        %v2180 = vrot.slane %v2128, 6
        %v2181 = vrot.slane %v2128, 7
        %v2182 = vrot.slane %v2131, 1
        %v2183 = vrot.slane %v2131, 2
        %v2184 = vrot.slane %v2131, 3
        %v2185 = vrot.slane %v2131, 4
        %v2186 = vrot.slane %v2131, 5
        %v2187 = vrot.slane %v2131, 6
        %v2188 = vrot.slane %v2131, 7
        %v2189 = vrot.slane %v2134, 1
        %v2190 = vrot.slane %v2134, 2
        %v2191 = vrot.slane %v2134, 3
        %v2192 = vrot.slane %v2134, 4
        %v2193 = vrot.slane %v2134, 5
        %v2194 = vrot.slane %v2134, 6
        %v2195 = vrot.slane %v2134, 7
        %v2196 = vrot.slane %v2137, 1
        %v2197 = vrot.slane %v2137, 2
        %v2198 = vrot.slane %v2137, 3
        %v2199 = vrot.slane %v2137, 4
        %v2200 = vrot.slane %v2137, 5
        %v2201 = vrot.slane %v2137, 6
        %v2202 = vrot.slane %v2137, 7
        %v2203 = vrot.slane %v2140, 1
        %v2204 = vrot.slane %v2140, 2
        %v2205 = vrot.slane %v2140, 3
        %v2206 = vrot.slane %v2140, 4
        %v2207 = vrot.slane %v2140, 5
        %v2208 = vrot.slane %v2140, 6
        %v2209 = vrot.slane %v2140, 7
        %v2210 = vrot.slane %v2143, 1
        %v2211 = vrot.slane %v2143, 2
        %v2212 = vrot.slane %v2143, 3
        %v2213 = vrot.slane %v2143, 4
        %v2214 = vrot.slane %v2143, 5
        %v2215 = vrot.slane %v2143, 6
        %v2216 = vrot.slane %v2143, 7
        %s2280 = sld [smem:[#allocation2 + $0x1]]
        %s2281 = sadd.f32 %s2280, 1.0
        %v2282 = vstv %s2281
        %v2283 = vmul.f32 %v2282, %v2119
        %v2284 = vmul.f32 %v2282, %v2154
        %v2285 = vmul.f32 %v2282, %v2155
        %v2286 = vmul.f32 %v2282, %v2156
        %v2287 = vmul.f32 %v2282, %v2157
        %v2288 = vmul.f32 %v2282, %v2158
        %v2289 = vmul.f32 %v2282, %v2159
        %v2290 = vmul.f32 %v2282, %v2160
        %v2291 = vmul.f32 %v2282, %v2122
        %v2292 = vmul.f32 %v2282, %v2161
        %v2293 = vmul.f32 %v2282, %v2162
        %v2294 = vmul.f32 %v2282, %v2163
        %v2295 = vmul.f32 %v2282, %v2164
        %v2296 = vmul.f32 %v2282, %v2165
        %v2297 = vmul.f32 %v2282, %v2166
        %v2298 = vmul.f32 %v2282, %v2167
        %v2299 = vmul.f32 %v2282, %v2125
        %v2300 = vmul.f32 %v2282, %v2168
        %v2301 = vmul.f32 %v2282, %v2169
        %v2302 = vmul.f32 %v2282, %v2170
        %v2303 = vmul.f32 %v2282, %v2171
        %v2304 = vmul.f32 %v2282, %v2172
        %v2305 = vmul.f32 %v2282, %v2173
        %v2306 = vmul.f32 %v2282, %v2174
        %v2307 = vmul.f32 %v2282, %v2128
        %v2308 = vmul.f32 %v2282, %v2175
        %v2309 = vmul.f32 %v2282, %v2176
        %v2310 = vmul.f32 %v2282, %v2177
        %v2311 = vmul.f32 %v2282, %v2178
        %v2312 = vmul.f32 %v2282, %v2179
        %v2313 = vmul.f32 %v2282, %v2180
        %v2314 = vmul.f32 %v2282, %v2181
        %v2315 = vmul.f32 %v2282, %v2131
        %v2316 = vmul.f32 %v2282, %v2182
        %v2317 = vmul.f32 %v2282, %v2183
        %v2318 = vmul.f32 %v2282, %v2184
        %v2319 = vmul.f32 %v2282, %v2185
        %v2320 = vmul.f32 %v2282, %v2186
        %v2321 = vmul.f32 %v2282, %v2187
        %v2322 = vmul.f32 %v2282, %v2188
        %v2323 = vmul.f32 %v2282, %v2134
        %v2324 = vmul.f32 %v2282, %v2189
        %v2325 = vmul.f32 %v2282, %v2190
        %v2326 = vmul.f32 %v2282, %v2191
        %v2327 = vmul.f32 %v2282, %v2192
        %v2328 = vmul.f32 %v2282, %v2193
        %v2329 = vmul.f32 %v2282, %v2194
        %v2330 = vmul.f32 %v2282, %v2195
        %v2331 = vmul.f32 %v2282, %v2137
        %v2332 = vmul.f32 %v2282, %v2196
        %v2333 = vmul.f32 %v2282, %v2197
        %v2334 = vmul.f32 %v2282, %v2198
        %v2335 = vmul.f32 %v2282, %v2199
        %v2336 = vmul.f32 %v2282, %v2200
        %v2337 = vmul.f32 %v2282, %v2201
        %v2338 = vmul.f32 %v2282, %v2202
        %v2339 = vmul.f32 %v2282, %v2140
        %v2340 = vmul.f32 %v2282, %v2203
        %v2341 = vmul.f32 %v2282, %v2204
        %v2342 = vmul.f32 %v2282, %v2205
        %v2343 = vmul.f32 %v2282, %v2206
        %v2344 = vmul.f32 %v2282, %v2207
        %v2345 = vmul.f32 %v2282, %v2208
        %v2346 = vmul.f32 %v2282, %v2209
        %v2347 = vmul.f32 %v2282, %v2143
        %v2348 = vmul.f32 %v2282, %v2210
        %v2349 = vmul.f32 %v2282, %v2211
        %v2350 = vmul.f32 %v2282, %v2212
        %v2351 = vmul.f32 %v2282, %v2213
        %v2352 = vmul.f32 %v2282, %v2214
        %v2353 = vmul.f32 %v2282, %v2215
        %v2354 = vmul.f32 %v2282, %v2216
        %2355 = vst [vmem:[#allocation1] ss:$9 sm:$0xff] %v2119
        %s2356 = scalar_lea.vmem [#allocation1], 1
        %2357 = vst [vmem:[%s2356] ss:$9 sm:$0xff] %v2154
        %s2358 = scalar_lea.vmem [#allocation1], 2
        %2359 = vst [vmem:[%s2358] ss:$9 sm:$0xff] %v2155
        %s2360 = scalar_lea.vmem [#allocation1], 3
        %2361 = vst [vmem:[%s2360] ss:$9 sm:$0xff] %v2156
        %s2362 = scalar_lea.vmem [#allocation1], 4
        %2363 = vst [vmem:[%s2362] ss:$9 sm:$0xff] %v2157
        %s2364 = scalar_lea.vmem [#allocation1], 5
        %2365 = vst [vmem:[%s2364] ss:$9 sm:$0xff] %v2158
        %s2366 = scalar_lea.vmem [#allocation1], 6
        %2367 = vst [vmem:[%s2366] ss:$9 sm:$0xff] %v2159
        %s2368 = scalar_lea.vmem [#allocation1], 7
        %2369 = vst [vmem:[%s2368] ss:$9 sm:$0xff] %v2160
        %v2370 = vld [vmem:[#allocation1] sm:$0xff]
        %2371 = vst [vmem:[#allocation1] ss:$9 sm:$0xff] %v2122
        %v2372 = vld [vmem:[#allocation1] sm:$0xff]
        %2383 = vst [vmem:[#allocation1] ss:$9 sm:$0xff] %v2283
        %s2384 = scalar_lea.vmem [#allocation1], 1
        %2385 = vst [vmem:[%s2384] ss:$9 sm:$0xff] %v2284
        %s2386 = scalar_lea.vmem [#allocation1], 2
        %2387 = vst [vmem:[%s2386] ss:$9 sm:$0xff] %v2285
        %s2388 = scalar_lea.vmem [#allocation1], 3
        %2389 = vst [vmem:[%s2388] ss:$9 sm:$0xff] %v2286
        %s2390 = scalar_lea.vmem [#allocation1], 4
        %2391 = vst [vmem:[%s2390] ss:$9 sm:$0xff] %v2287
        %s2392 = scalar_lea.vmem [#allocation1], 5
        %2393 = vst [vmem:[%s2392] ss:$9 sm:$0xff] %v2288
        %s2394 = scalar_lea.vmem [#allocation1], 6
        %2395 = vst [vmem:[%s2394] ss:$9 sm:$0xff] %v2289
        %s2396 = scalar_lea.vmem [#allocation1], 7
        %2397 = vst [vmem:[%s2396] ss:$9 sm:$0xff] %v2290
        %v2398 = vld [vmem:[#allocation1] sm:$0xff]
        %2399 = vst [vmem:[#allocation1] ss:$9 sm:$0xff] %v2291
        %v2400 = vld [vmem:[#allocation1] sm:$0xff]
        %v2403 = vsel %vm905, %v2372, 0
        %2405 = vmatpush.msra.mxu0 0.0
        %2406 = vmatpush.msra.mxu0 0.0
        %2407 = vmatpush.msra.mxu0 0.0
        %2408 = vmatpush.msra.mxu0 0.0
        %2409 = vmatpush.msra.mxu0 0.0
        %2410 = vmatpush.msra.mxu0 0.0
        %2411 = vmatpush.msra.mxu0 0.0
        %2412 = vmatpush.msra.mxu0 0.0
        %2413 = vmatpush.msra.mxu0 0.0
        %2414 = vmatpush.msra.mxu0 0.0
        %2415 = vmatpush.msra.mxu0 0.0
        %2416 = vmatpush.msra.mxu0 0.0
        %2417 = vmatpush.msra.mxu0 0.0
        %2418 = vmatpush.msra.mxu0 0.0
        %2419 = vmatpush.msra.mxu0 %v2403
        %2420 = vmatpush.msra.mxu0 %v2370
        %2421 = vmatmul.f32.gmra.mxu0 %v900
        %v2422 = vpop.f32.mrf.mxu0
        %v2423 = vadd.f32 %v2398, %v2422
        %2424 = vmatmul.f32.gmra.mxu0 %v903
        %v2425 = vpop.f32.mrf.mxu0
        %v2426 = vadd.f32 %v2400, %v2425
        %2427 = vdwg.mxu0
        %2428 = vst [vmem:[#allocation1] ss:$9 sm:$0xff] %v2161
        %s2429 = scalar_lea.vmem [#allocation1], 1
        %2430 = vst [vmem:[%s2429] ss:$9 sm:$0xff] %v2162
        %s2431 = scalar_lea.vmem [#allocation1], 2
        %2432 = vst [vmem:[%s2431] ss:$9 sm:$0xff] %v2163
        %s2433 = scalar_lea.vmem [#allocation1], 3
        %2434 = vst [vmem:[%s2433] ss:$9 sm:$0xff] %v2164
        %s2435 = scalar_lea.vmem [#allocation1], 4
        %2436 = vst [vmem:[%s2435] ss:$9 sm:$0xff] %v2165
        %s2437 = scalar_lea.vmem [#allocation1], 5
        %2438 = vst [vmem:[%s2437] ss:$9 sm:$0xff] %v2166
        %s2439 = scalar_lea.vmem [#allocation1], 6
        %2440 = vst [vmem:[%s2439] ss:$9 sm:$0xff] %v2167
        %s2441 = scalar_lea.vmem [#allocation1], 7
        %2442 = vst [vmem:[%s2441] ss:$9 sm:$0xff] %v2125
        %v2443 = vld [vmem:[#allocation1] sm:$0xff]
        %2444 = vst [vmem:[#allocation1] ss:$9 sm:$0xff] %v2168
        %v2445 = vld [vmem:[#allocation1] sm:$0xff]
        %2456 = vst [vmem:[#allocation1] ss:$9 sm:$0xff] %v2292
        %s2457 = scalar_lea.vmem [#allocation1], 1
        %2458 = vst [vmem:[%s2457] ss:$9 sm:$0xff] %v2293
        %s2459 = scalar_lea.vmem [#allocation1], 2
        %2460 = vst [vmem:[%s2459] ss:$9 sm:$0xff] %v2294
        %s2461 = scalar_lea.vmem [#allocation1], 3
        %2462 = vst [vmem:[%s2461] ss:$9 sm:$0xff] %v2295
        %s2463 = scalar_lea.vmem [#allocation1], 4
        %2464 = vst [vmem:[%s2463] ss:$9 sm:$0xff] %v2296
        %s2465 = scalar_lea.vmem [#allocation1], 5
        %2466 = vst [vmem:[%s2465] ss:$9 sm:$0xff] %v2297
        %s2467 = scalar_lea.vmem [#allocation1], 6
        %2468 = vst [vmem:[%s2467] ss:$9 sm:$0xff] %v2298
        %s2469 = scalar_lea.vmem [#allocation1], 7
        %2470 = vst [vmem:[%s2469] ss:$9 sm:$0xff] %v2299
        %v2471 = vld [vmem:[#allocation1] sm:$0xff]
        %2472 = vst [vmem:[#allocation1] ss:$9 sm:$0xff] %v2300
        %v2473 = vld [vmem:[#allocation1] sm:$0xff]
        %v2476 = vsel %vm905, %v2445, 0
        %2478 = vmatpush.msra.mxu0 0.0
        %2479 = vmatpush.msra.mxu0 0.0
        %2480 = vmatpush.msra.mxu0 0.0
        %2481 = vmatpush.msra.mxu0 0.0
        %2482 = vmatpush.msra.mxu0 0.0
        %2483 = vmatpush.msra.mxu0 0.0
        %2484 = vmatpush.msra.mxu0 0.0
        %2485 = vmatpush.msra.mxu0 0.0
        %2486 = vmatpush.msra.mxu0 0.0
        %2487 = vmatpush.msra.mxu0 0.0
        %2488 = vmatpush.msra.mxu0 0.0
        %2489 = vmatpush.msra.mxu0 0.0
        %2490 = vmatpush.msra.mxu0 0.0
        %2491 = vmatpush.msra.mxu0 0.0
        %2492 = vmatpush.msra.mxu0 %v2476
        %2493 = vmatpush.msra.mxu0 %v2443
        %2494 = vmatmul.f32.gmra.mxu0 %v980
        %v2495 = vpop.f32.mrf.mxu0
        %v2496 = vadd.f32 %v2471, %v2495
        %2497 = vmatmul.f32.gmra.mxu0 %v983
        %v2498 = vpop.f32.mrf.mxu0
        %v2499 = vadd.f32 %v2473, %v2498
        %2500 = vdwg.mxu0
        %2501 = vst [vmem:[#allocation1] ss:$9 sm:$0xff] %v2169
        %s2502 = scalar_lea.vmem [#allocation1], 1
        %2503 = vst [vmem:[%s2502] ss:$9 sm:$0xff] %v2170
        %s2504 = scalar_lea.vmem [#allocation1], 2
        %2505 = vst [vmem:[%s2504] ss:$9 sm:$0xff] %v2171
        %s2506 = scalar_lea.vmem [#allocation1], 3
        %2507 = vst [vmem:[%s2506] ss:$9 sm:$0xff] %v2172
        %s2508 = scalar_lea.vmem [#allocation1], 4
        %2509 = vst [vmem:[%s2508] ss:$9 sm:$0xff] %v2173
        %s2510 = scalar_lea.vmem [#allocation1], 5
        %2511 = vst [vmem:[%s2510] ss:$9 sm:$0xff] %v2174
        %s2512 = scalar_lea.vmem [#allocation1], 6
        %2513 = vst [vmem:[%s2512] ss:$9 sm:$0xff] %v2128
        %s2514 = scalar_lea.vmem [#allocation1], 7
        %2515 = vst [vmem:[%s2514] ss:$9 sm:$0xff] %v2175
        %v2516 = vld [vmem:[#allocation1] sm:$0xff]
        %2517 = vst [vmem:[#allocation1] ss:$9 sm:$0xff] %v2176
        %v2518 = vld [vmem:[#allocation1] sm:$0xff]
        %2529 = vst [vmem:[#allocation1] ss:$9 sm:$0xff] %v2301
        %s2530 = scalar_lea.vmem [#allocation1], 1
        %2531 = vst [vmem:[%s2530] ss:$9 sm:$0xff] %v2302
        %s2532 = scalar_lea.vmem [#allocation1], 2
        %2533 = vst [vmem:[%s2532] ss:$9 sm:$0xff] %v2303
        %s2534 = scalar_lea.vmem [#allocation1], 3
        %2535 = vst [vmem:[%s2534] ss:$9 sm:$0xff] %v2304
        %s2536 = scalar_lea.vmem [#allocation1], 4
        %2537 = vst [vmem:[%s2536] ss:$9 sm:$0xff] %v2305
        %s2538 = scalar_lea.vmem [#allocation1], 5
        %2539 = vst [vmem:[%s2538] ss:$9 sm:$0xff] %v2306
        %s2540 = scalar_lea.vmem [#allocation1], 6
        %2541 = vst [vmem:[%s2540] ss:$9 sm:$0xff] %v2307
        %s2542 = scalar_lea.vmem [#allocation1], 7
        %2543 = vst [vmem:[%s2542] ss:$9 sm:$0xff] %v2308
        %v2544 = vld [vmem:[#allocation1] sm:$0xff]
        %2545 = vst [vmem:[#allocation1] ss:$9 sm:$0xff] %v2309
        %v2546 = vld [vmem:[#allocation1] sm:$0xff]
        %v2549 = vsel %vm905, %v2518, 0
        %2551 = vmatpush.msra.mxu0 0.0
        %2552 = vmatpush.msra.mxu0 0.0
        %2553 = vmatpush.msra.mxu0 0.0
        %2554 = vmatpush.msra.mxu0 0.0
        %2555 = vmatpush.msra.mxu0 0.0
        %2556 = vmatpush.msra.mxu0 0.0
        %2557 = vmatpush.msra.mxu0 0.0
        %2558 = vmatpush.msra.mxu0 0.0
        %2559 = vmatpush.msra.mxu0 0.0
        %2560 = vmatpush.msra.mxu0 0.0
        %2561 = vmatpush.msra.mxu0 0.0
        %2562 = vmatpush.msra.mxu0 0.0
        %2563 = vmatpush.msra.mxu0 0.0
        %2564 = vmatpush.msra.mxu0 0.0
        %2565 = vmatpush.msra.mxu0 %v2549
        %2566 = vmatpush.msra.mxu0 %v2516
        %2567 = vmatmul.f32.gmra.mxu0 %v1059
        %v2568 = vpop.f32.mrf.mxu0
        %v2569 = vadd.f32 %v2544, %v2568
        %2570 = vmatmul.f32.gmra.mxu0 %v1062
        %v2571 = vpop.f32.mrf.mxu0
        %v2572 = vadd.f32 %v2546, %v2571
        %2573 = vdwg.mxu0
        %2574 = vst [vmem:[#allocation1] ss:$9 sm:$0xff] %v2177
        %s2575 = scalar_lea.vmem [#allocation1], 1
        %2576 = vst [vmem:[%s2575] ss:$9 sm:$0xff] %v2178
        %s2577 = scalar_lea.vmem [#allocation1], 2
        %2578 = vst [vmem:[%s2577] ss:$9 sm:$0xff] %v2179
        %s2579 = scalar_lea.vmem [#allocation1], 3
        %2580 = vst [vmem:[%s2579] ss:$9 sm:$0xff] %v2180
        %s2581 = scalar_lea.vmem [#allocation1], 4
        %2582 = vst [vmem:[%s2581] ss:$9 sm:$0xff] %v2181
        %s2583 = scalar_lea.vmem [#allocation1], 5
        %2584 = vst [vmem:[%s2583] ss:$9 sm:$0xff] %v2131
        %s2585 = scalar_lea.vmem [#allocation1], 6
        %2586 = vst [vmem:[%s2585] ss:$9 sm:$0xff] %v2182
        %s2587 = scalar_lea.vmem [#allocation1], 7
        %2588 = vst [vmem:[%s2587] ss:$9 sm:$0xff] %v2183
        %v2589 = vld [vmem:[#allocation1] sm:$0xff]
        %2590 = vst [vmem:[#allocation1] ss:$9 sm:$0xff] %v2184
        %v2591 = vld [vmem:[#allocation1] sm:$0xff]
        %2602 = vst [vmem:[#allocation1] ss:$9 sm:$0xff] %v2310
        %s2603 = scalar_lea.vmem [#allocation1], 1
        %2604 = vst [vmem:[%s2603] ss:$9 sm:$0xff] %v2311
        %s2605 = scalar_lea.vmem [#allocation1], 2
        %2606 = vst [vmem:[%s2605] ss:$9 sm:$0xff] %v2312
        %s2607 = scalar_lea.vmem [#allocation1], 3
        %2608 = vst [vmem:[%s2607] ss:$9 sm:$0xff] %v2313
        %s2609 = scalar_lea.vmem [#allocation1], 4
        %2610 = vst [vmem:[%s2609] ss:$9 sm:$0xff] %v2314
        %s2611 = scalar_lea.vmem [#allocation1], 5
        %2612 = vst [vmem:[%s2611] ss:$9 sm:$0xff] %v2315
        %s2613 = scalar_lea.vmem [#allocation1], 6
        %2614 = vst [vmem:[%s2613] ss:$9 sm:$0xff] %v2316
        %s2615 = scalar_lea.vmem [#allocation1], 7
        %2616 = vst [vmem:[%s2615] ss:$9 sm:$0xff] %v2317
        %v2617 = vld [vmem:[#allocation1] sm:$0xff]
        %2618 = vst [vmem:[#allocation1] ss:$9 sm:$0xff] %v2318
        %v2619 = vld [vmem:[#allocation1] sm:$0xff]
        %v2622 = vsel %vm905, %v2591, 0
        %2624 = vmatpush.msra.mxu0 0.0
        %2625 = vmatpush.msra.mxu0 0.0
        %2626 = vmatpush.msra.mxu0 0.0
        %2627 = vmatpush.msra.mxu0 0.0
        %2628 = vmatpush.msra.mxu0 0.0
        %2629 = vmatpush.msra.mxu0 0.0
        %2630 = vmatpush.msra.mxu0 0.0
        %2631 = vmatpush.msra.mxu0 0.0
        %2632 = vmatpush.msra.mxu0 0.0
        %2633 = vmatpush.msra.mxu0 0.0
        %2634 = vmatpush.msra.mxu0 0.0
        %2635 = vmatpush.msra.mxu0 0.0
        %2636 = vmatpush.msra.mxu0 0.0
        %2637 = vmatpush.msra.mxu0 0.0
        %2638 = vmatpush.msra.mxu0 %v2622
        %2639 = vmatpush.msra.mxu0 %v2589
        %2640 = vmatmul.f32.gmra.mxu0 %v1138
        %v2641 = vpop.f32.mrf.mxu0
        %v2642 = vadd.f32 %v2617, %v2641
        %2643 = vmatmul.f32.gmra.mxu0 %v1141
        %v2644 = vpop.f32.mrf.mxu0
        %v2645 = vadd.f32 %v2619, %v2644
        %2646 = vdwg.mxu0
        %2647 = vst [vmem:[#allocation1] ss:$9 sm:$0xff] %v2185
        %s2648 = scalar_lea.vmem [#allocation1], 1
        %2649 = vst [vmem:[%s2648] ss:$9 sm:$0xff] %v2186
        %s2650 = scalar_lea.vmem [#allocation1], 2
        %2651 = vst [vmem:[%s2650] ss:$9 sm:$0xff] %v2187
        %s2652 = scalar_lea.vmem [#allocation1], 3
        %2653 = vst [vmem:[%s2652] ss:$9 sm:$0xff] %v2188
        %s2654 = scalar_lea.vmem [#allocation1], 4
        %2655 = vst [vmem:[%s2654] ss:$9 sm:$0xff] %v2134
        %s2656 = scalar_lea.vmem [#allocation1], 5
        %2657 = vst [vmem:[%s2656] ss:$9 sm:$0xff] %v2189
        %s2658 = scalar_lea.vmem [#allocation1], 6
        %2659 = vst [vmem:[%s2658] ss:$9 sm:$0xff] %v2190
        %s2660 = scalar_lea.vmem [#allocation1], 7
        %2661 = vst [vmem:[%s2660] ss:$9 sm:$0xff] %v2191
        %v2662 = vld [vmem:[#allocation1] sm:$0xff]
        %2663 = vst [vmem:[#allocation1] ss:$9 sm:$0xff] %v2192
        %v2664 = vld [vmem:[#allocation1] sm:$0xff]
        %2675 = vst [vmem:[#allocation1] ss:$9 sm:$0xff] %v2319
        %s2676 = scalar_lea.vmem [#allocation1], 1
        %2677 = vst [vmem:[%s2676] ss:$9 sm:$0xff] %v2320
        %s2678 = scalar_lea.vmem [#allocation1], 2
        %2679 = vst [vmem:[%s2678] ss:$9 sm:$0xff] %v2321
        %s2680 = scalar_lea.vmem [#allocation1], 3
        %2681 = vst [vmem:[%s2680] ss:$9 sm:$0xff] %v2322
        %s2682 = scalar_lea.vmem [#allocation1], 4
        %2683 = vst [vmem:[%s2682] ss:$9 sm:$0xff] %v2323
        %s2684 = scalar_lea.vmem [#allocation1], 5
        %2685 = vst [vmem:[%s2684] ss:$9 sm:$0xff] %v2324
        %s2686 = scalar_lea.vmem [#allocation1], 6
        %2687 = vst [vmem:[%s2686] ss:$9 sm:$0xff] %v2325
        %s2688 = scalar_lea.vmem [#allocation1], 7
        %2689 = vst [vmem:[%s2688] ss:$9 sm:$0xff] %v2326
        %v2690 = vld [vmem:[#allocation1] sm:$0xff]
        %2691 = vst [vmem:[#allocation1] ss:$9 sm:$0xff] %v2327
        %v2692 = vld [vmem:[#allocation1] sm:$0xff]
        %v2695 = vsel %vm905, %v2664, 0
        %2697 = vmatpush.msra.mxu0 0.0
        %2698 = vmatpush.msra.mxu0 0.0
        %2699 = vmatpush.msra.mxu0 0.0
        %2700 = vmatpush.msra.mxu0 0.0
        %2701 = vmatpush.msra.mxu0 0.0
        %2702 = vmatpush.msra.mxu0 0.0
        %2703 = vmatpush.msra.mxu0 0.0
        %2704 = vmatpush.msra.mxu0 0.0
        %2705 = vmatpush.msra.mxu0 0.0
        %2706 = vmatpush.msra.mxu0 0.0
        %2707 = vmatpush.msra.mxu0 0.0
        %2708 = vmatpush.msra.mxu0 0.0
        %2709 = vmatpush.msra.mxu0 0.0
        %2710 = vmatpush.msra.mxu0 0.0
        %2711 = vmatpush.msra.mxu0 %v2695
        %2712 = vmatpush.msra.mxu0 %v2662
        %2713 = vmatmul.f32.gmra.mxu0 %v1217
        %v2714 = vpop.f32.mrf.mxu0
        %v2715 = vadd.f32 %v2690, %v2714
        %2716 = vmatmul.f32.gmra.mxu0 %v1220
        %v2717 = vpop.f32.mrf.mxu0
        %v2718 = vadd.f32 %v2692, %v2717
        %2719 = vdwg.mxu0
        %2720 = vst [vmem:[#allocation1] ss:$9 sm:$0xff] %v2193
        %s2721 = scalar_lea.vmem [#allocation1], 1
        %2722 = vst [vmem:[%s2721] ss:$9 sm:$0xff] %v2194
        %s2723 = scalar_lea.vmem [#allocation1], 2
        %2724 = vst [vmem:[%s2723] ss:$9 sm:$0xff] %v2195
        %s2725 = scalar_lea.vmem [#allocation1], 3
        %2726 = vst [vmem:[%s2725] ss:$9 sm:$0xff] %v2137
        %s2727 = scalar_lea.vmem [#allocation1], 4
        %2728 = vst [vmem:[%s2727] ss:$9 sm:$0xff] %v2196
        %s2729 = scalar_lea.vmem [#allocation1], 5
        %2730 = vst [vmem:[%s2729] ss:$9 sm:$0xff] %v2197
        %s2731 = scalar_lea.vmem [#allocation1], 6
        %2732 = vst [vmem:[%s2731] ss:$9 sm:$0xff] %v2198
        %s2733 = scalar_lea.vmem [#allocation1], 7
        %2734 = vst [vmem:[%s2733] ss:$9 sm:$0xff] %v2199
        %v2735 = vld [vmem:[#allocation1] sm:$0xff]
        %2736 = vst [vmem:[#allocation1] ss:$9 sm:$0xff] %v2200
        %v2737 = vld [vmem:[#allocation1] sm:$0xff]
        %2748 = vst [vmem:[#allocation1] ss:$9 sm:$0xff] %v2328
        %s2749 = scalar_lea.vmem [#allocation1], 1
        %2750 = vst [vmem:[%s2749] ss:$9 sm:$0xff] %v2329
        %s2751 = scalar_lea.vmem [#allocation1], 2
        %2752 = vst [vmem:[%s2751] ss:$9 sm:$0xff] %v2330
        %s2753 = scalar_lea.vmem [#allocation1], 3
        %2754 = vst [vmem:[%s2753] ss:$9 sm:$0xff] %v2331
        %s2755 = scalar_lea.vmem [#allocation1], 4
        %2756 = vst [vmem:[%s2755] ss:$9 sm:$0xff] %v2332
        %s2757 = scalar_lea.vmem [#allocation1], 5
        %2758 = vst [vmem:[%s2757] ss:$9 sm:$0xff] %v2333
        %s2759 = scalar_lea.vmem [#allocation1], 6
        %2760 = vst [vmem:[%s2759] ss:$9 sm:$0xff] %v2334
        %s2761 = scalar_lea.vmem [#allocation1], 7
        %2762 = vst [vmem:[%s2761] ss:$9 sm:$0xff] %v2335
        %v2763 = vld [vmem:[#allocation1] sm:$0xff]
        %2764 = vst [vmem:[#allocation1] ss:$9 sm:$0xff] %v2336
        %v2765 = vld [vmem:[#allocation1] sm:$0xff]
        %v2768 = vsel %vm905, %v2737, 0
        %2770 = vmatpush.msra.mxu0 0.0
        %2771 = vmatpush.msra.mxu0 0.0
        %2772 = vmatpush.msra.mxu0 0.0
        %2773 = vmatpush.msra.mxu0 0.0
        %2774 = vmatpush.msra.mxu0 0.0
        %2775 = vmatpush.msra.mxu0 0.0
        %2776 = vmatpush.msra.mxu0 0.0
        %2777 = vmatpush.msra.mxu0 0.0
        %2778 = vmatpush.msra.mxu0 0.0
        %2779 = vmatpush.msra.mxu0 0.0
        %2780 = vmatpush.msra.mxu0 0.0
        %2781 = vmatpush.msra.mxu0 0.0
        %2782 = vmatpush.msra.mxu0 0.0
        %2783 = vmatpush.msra.mxu0 0.0
        %2784 = vmatpush.msra.mxu0 %v2768
        %2785 = vmatpush.msra.mxu0 %v2735
        %2786 = vmatmul.f32.gmra.mxu0 %v1296
        %v2787 = vpop.f32.mrf.mxu0
        %v2788 = vadd.f32 %v2763, %v2787
        %2789 = vmatmul.f32.gmra.mxu0 %v1299
        %v2790 = vpop.f32.mrf.mxu0
        %v2791 = vadd.f32 %v2765, %v2790
        %2792 = vdwg.mxu0
        %2793 = vst [vmem:[#allocation1] ss:$9 sm:$0xff] %v2201
        %s2794 = scalar_lea.vmem [#allocation1], 1
        %2795 = vst [vmem:[%s2794] ss:$9 sm:$0xff] %v2202
        %s2796 = scalar_lea.vmem [#allocation1], 2
        %2797 = vst [vmem:[%s2796] ss:$9 sm:$0xff] %v2140
        %s2798 = scalar_lea.vmem [#allocation1], 3
        %2799 = vst [vmem:[%s2798] ss:$9 sm:$0xff] %v2203
        %s2800 = scalar_lea.vmem [#allocation1], 4
        %2801 = vst [vmem:[%s2800] ss:$9 sm:$0xff] %v2204
        %s2802 = scalar_lea.vmem [#allocation1], 5
        %2803 = vst [vmem:[%s2802] ss:$9 sm:$0xff] %v2205
        %s2804 = scalar_lea.vmem [#allocation1], 6
        %2805 = vst [vmem:[%s2804] ss:$9 sm:$0xff] %v2206
        %s2806 = scalar_lea.vmem [#allocation1], 7
        %2807 = vst [vmem:[%s2806] ss:$9 sm:$0xff] %v2207
        %v2808 = vld [vmem:[#allocation1] sm:$0xff]
        %2809 = vst [vmem:[#allocation1] ss:$9 sm:$0xff] %v2208
        %v2810 = vld [vmem:[#allocation1] sm:$0xff]
        %2821 = vst [vmem:[#allocation1] ss:$9 sm:$0xff] %v2337
        %s2822 = scalar_lea.vmem [#allocation1], 1
        %2823 = vst [vmem:[%s2822] ss:$9 sm:$0xff] %v2338
        %s2824 = scalar_lea.vmem [#allocation1], 2
        %2825 = vst [vmem:[%s2824] ss:$9 sm:$0xff] %v2339
        %s2826 = scalar_lea.vmem [#allocation1], 3
        %2827 = vst [vmem:[%s2826] ss:$9 sm:$0xff] %v2340
        %s2828 = scalar_lea.vmem [#allocation1], 4
        %2829 = vst [vmem:[%s2828] ss:$9 sm:$0xff] %v2341
        %s2830 = scalar_lea.vmem [#allocation1], 5
        %2831 = vst [vmem:[%s2830] ss:$9 sm:$0xff] %v2342
        %s2832 = scalar_lea.vmem [#allocation1], 6
        %2833 = vst [vmem:[%s2832] ss:$9 sm:$0xff] %v2343
        %s2834 = scalar_lea.vmem [#allocation1], 7
        %2835 = vst [vmem:[%s2834] ss:$9 sm:$0xff] %v2344
        %v2836 = vld [vmem:[#allocation1] sm:$0xff]
        %2837 = vst [vmem:[#allocation1] ss:$9 sm:$0xff] %v2345
        %v2838 = vld [vmem:[#allocation1] sm:$0xff]
        %v2841 = vsel %vm905, %v2810, 0
        %2843 = vmatpush.msra.mxu0 0.0
        %2844 = vmatpush.msra.mxu0 0.0
        %2845 = vmatpush.msra.mxu0 0.0
        %2846 = vmatpush.msra.mxu0 0.0
        %2847 = vmatpush.msra.mxu0 0.0
        %2848 = vmatpush.msra.mxu0 0.0
        %2849 = vmatpush.msra.mxu0 0.0
        %2850 = vmatpush.msra.mxu0 0.0
        %2851 = vmatpush.msra.mxu0 0.0
        %2852 = vmatpush.msra.mxu0 0.0
        %2853 = vmatpush.msra.mxu0 0.0
        %2854 = vmatpush.msra.mxu0 0.0
        %2855 = vmatpush.msra.mxu0 0.0
        %2856 = vmatpush.msra.mxu0 0.0
        %2857 = vmatpush.msra.mxu0 %v2841
        %2858 = vmatpush.msra.mxu0 %v2808
        %2859 = vmatmul.f32.gmra.mxu0 %v1375
        %v2860 = vpop.f32.mrf.mxu0
        %v2861 = vadd.f32 %v2836, %v2860
        %2862 = vmatmul.f32.gmra.mxu0 %v1378
        %v2863 = vpop.f32.mrf.mxu0
        %v2864 = vadd.f32 %v2838, %v2863
        %2865 = vdwg.mxu0
        %2866 = vst [vmem:[#allocation1] ss:$9 sm:$0xff] %v2209
        %s2867 = scalar_lea.vmem [#allocation1], 1
        %2868 = vst [vmem:[%s2867] ss:$9 sm:$0xff] %v2143
        %s2869 = scalar_lea.vmem [#allocation1], 2
        %2870 = vst [vmem:[%s2869] ss:$9 sm:$0xff] %v2210
        %s2871 = scalar_lea.vmem [#allocation1], 3
        %2872 = vst [vmem:[%s2871] ss:$9 sm:$0xff] %v2211
        %s2873 = scalar_lea.vmem [#allocation1], 4
        %2874 = vst [vmem:[%s2873] ss:$9 sm:$0xff] %v2212
        %s2875 = scalar_lea.vmem [#allocation1], 5
        %2876 = vst [vmem:[%s2875] ss:$9 sm:$0xff] %v2213
        %s2877 = scalar_lea.vmem [#allocation1], 6
        %2878 = vst [vmem:[%s2877] ss:$9 sm:$0xff] %v2214
        %s2879 = scalar_lea.vmem [#allocation1], 7
        %2880 = vst [vmem:[%s2879] ss:$9 sm:$0xff] %v2215
        %v2881 = vld [vmem:[#allocation1] sm:$0xff]
        %2882 = vst [vmem:[#allocation1] ss:$9 sm:$0xff] %v2216
        %v2883 = vld [vmem:[#allocation1] sm:$0xff]
        %2894 = vst [vmem:[#allocation1] ss:$9 sm:$0xff] %v2346
        %s2895 = scalar_lea.vmem [#allocation1], 1
        %2896 = vst [vmem:[%s2895] ss:$9 sm:$0xff] %v2347
        %s2897 = scalar_lea.vmem [#allocation1], 2
        %2898 = vst [vmem:[%s2897] ss:$9 sm:$0xff] %v2348
        %s2899 = scalar_lea.vmem [#allocation1], 3
        %2900 = vst [vmem:[%s2899] ss:$9 sm:$0xff] %v2349
        %s2901 = scalar_lea.vmem [#allocation1], 4
        %2902 = vst [vmem:[%s2901] ss:$9 sm:$0xff] %v2350
        %s2903 = scalar_lea.vmem [#allocation1], 5
        %2904 = vst [vmem:[%s2903] ss:$9 sm:$0xff] %v2351
        %s2905 = scalar_lea.vmem [#allocation1], 6
        %2906 = vst [vmem:[%s2905] ss:$9 sm:$0xff] %v2352
        %s2907 = scalar_lea.vmem [#allocation1], 7
        %2908 = vst [vmem:[%s2907] ss:$9 sm:$0xff] %v2353
        %v2909 = vld [vmem:[#allocation1] sm:$0xff]
        %2910 = vst [vmem:[#allocation1] ss:$9 sm:$0xff] %v2354
        %v2911 = vld [vmem:[#allocation1] sm:$0xff]
        %v2914 = vsel %vm905, %v2883, 0
        %2916 = vmatpush.msra.mxu0 0.0
        %2917 = vmatpush.msra.mxu0 0.0
        %2918 = vmatpush.msra.mxu0 0.0
        %2919 = vmatpush.msra.mxu0 0.0
        %2920 = vmatpush.msra.mxu0 0.0
        %2921 = vmatpush.msra.mxu0 0.0
        %2922 = vmatpush.msra.mxu0 0.0
        %2923 = vmatpush.msra.mxu0 0.0
        %2924 = vmatpush.msra.mxu0 0.0
        %2925 = vmatpush.msra.mxu0 0.0
        %2926 = vmatpush.msra.mxu0 0.0
        %2927 = vmatpush.msra.mxu0 0.0
        %2928 = vmatpush.msra.mxu0 0.0
        %2929 = vmatpush.msra.mxu0 0.0
        %2930 = vmatpush.msra.mxu0 %v2914
        %2931 = vmatpush.msra.mxu0 %v2881
        %2932 = vmatmul.f32.gmra.mxu0 %v1454
        %v2933 = vpop.f32.mrf.mxu0
        %v2934 = vadd.f32 %v2909, %v2933
        %2935 = vmatmul.f32.gmra.mxu0 %v1457
        %v2936 = vpop.f32.mrf.mxu0
        %v2937 = vadd.f32 %v2911, %v2936
        %2938 = vdwg.mxu0
        %v2955 = vrot.slane %v2423, 1
        %v2956 = vrot.slane %v2423, 2
        %v2957 = vrot.slane %v2423, 3
        %v2958 = vrot.slane %v2423, 4
        %v2959 = vrot.slane %v2423, 5
        %v2960 = vrot.slane %v2423, 6
        %v2961 = vrot.slane %v2423, 7
        %v2962 = vrot.slane %v2496, 1
        %v2963 = vrot.slane %v2496, 2
        %v2964 = vrot.slane %v2496, 3
        %v2965 = vrot.slane %v2496, 4
        %v2966 = vrot.slane %v2496, 5
        %v2967 = vrot.slane %v2496, 6
        %v2968 = vrot.slane %v2496, 7
        %v2969 = vrot.slane %v2569, 1
        %v2970 = vrot.slane %v2569, 2
        %v2971 = vrot.slane %v2569, 3
        %v2972 = vrot.slane %v2569, 4
        %v2973 = vrot.slane %v2569, 5
        %v2974 = vrot.slane %v2569, 6
        %v2975 = vrot.slane %v2569, 7
        %v2976 = vrot.slane %v2642, 1
        %v2977 = vrot.slane %v2642, 2
        %v2978 = vrot.slane %v2642, 3
        %v2979 = vrot.slane %v2642, 4
        %v2980 = vrot.slane %v2642, 5
        %v2981 = vrot.slane %v2642, 6
        %v2982 = vrot.slane %v2642, 7
        %v2983 = vrot.slane %v2715, 1
        %v2984 = vrot.slane %v2715, 2
        %v2985 = vrot.slane %v2715, 3
        %v2986 = vrot.slane %v2715, 4
        %v2987 = vrot.slane %v2715, 5
        %v2988 = vrot.slane %v2715, 6
        %v2989 = vrot.slane %v2715, 7
        %v2990 = vrot.slane %v2788, 1
        %v2991 = vrot.slane %v2788, 2
        %v2992 = vrot.slane %v2788, 3
        %v2993 = vrot.slane %v2788, 4
        %v2994 = vrot.slane %v2788, 5
        %v2995 = vrot.slane %v2788, 6
        %v2996 = vrot.slane %v2788, 7
        %v2997 = vrot.slane %v2861, 1
        %v2998 = vrot.slane %v2861, 2
        %v2999 = vrot.slane %v2861, 3
        %v3000 = vrot.slane %v2861, 4
        %v3001 = vrot.slane %v2861, 5
        %v3002 = vrot.slane %v2861, 6
        %v3003 = vrot.slane %v2861, 7
        %v3004 = vrot.slane %v2934, 1
        %v3005 = vrot.slane %v2934, 2
        %v3006 = vrot.slane %v2934, 3
        %v3007 = vrot.slane %v2934, 4
        %v3008 = vrot.slane %v2934, 5
        %v3009 = vrot.slane %v2934, 6
        %v3010 = vrot.slane %v2934, 7
        %s3011 = scalar_lea.vmem %s7, 32
        %v3012 = vld [vmem:[%s3011] sm:$0xff]
        %v3013 = vld [vmem:[%s3011 + $0x8] sm:$0xff]
        %v3014 = vld [vmem:[%s3011 + $0x10] sm:$0xff]
        %v3015 = vld [vmem:[%s3011 + $0x18] sm:$0xff]
        %s3016 = scalar_lea.vmem %s8, 1
        %v3017 = vld [vmem:[%s3016] sm:$0x1]
        %v3019 = vperm.slane %v3017, 0
        %3021 = vst [vmem:[#allocation1] ss:$9 sm:$0xff] %v2423
        %s3022 = scalar_lea.vmem [#allocation1], 1
        %3023 = vst [vmem:[%s3022] ss:$9 sm:$0xff] %v2955
        %s3024 = scalar_lea.vmem [#allocation1], 2
        %3025 = vst [vmem:[%s3024] ss:$9 sm:$0xff] %v2956
        %s3026 = scalar_lea.vmem [#allocation1], 3
        %3027 = vst [vmem:[%s3026] ss:$9 sm:$0xff] %v2957
        %s3028 = scalar_lea.vmem [#allocation1], 4
        %3029 = vst [vmem:[%s3028] ss:$9 sm:$0xff] %v2958
        %s3030 = scalar_lea.vmem [#allocation1], 5
        %3031 = vst [vmem:[%s3030] ss:$9 sm:$0xff] %v2959
        %s3032 = scalar_lea.vmem [#allocation1], 6
        %3033 = vst [vmem:[%s3032] ss:$9 sm:$0xff] %v2960
        %s3034 = scalar_lea.vmem [#allocation1], 7
        %3035 = vst [vmem:[%s3034] ss:$9 sm:$0xff] %v2961
        %v3036 = vld [vmem:[#allocation1] sm:$0xff]
        %3037 = vst [vmem:[#allocation1] ss:$9 sm:$0xff] %v2426
        %3038 = vst [vmem:[%s3022] ss:$9 sm:$0xff] %v2496
        %3039 = vst [vmem:[%s3024] ss:$9 sm:$0xff] %v2962
        %3040 = vst [vmem:[%s3026] ss:$9 sm:$0xff] %v2963
        %3041 = vst [vmem:[%s3028] ss:$9 sm:$0xff] %v2964
        %3042 = vst [vmem:[%s3030] ss:$9 sm:$0xff] %v2965
        %3043 = vst [vmem:[%s3032] ss:$9 sm:$0xff] %v2966
        %3044 = vst [vmem:[%s3034] ss:$9 sm:$0xff] %v2967
        %v3045 = vld [vmem:[#allocation1] sm:$0xff]
        %3046 = vst [vmem:[#allocation1] ss:$9 sm:$0xff] %v2968
        %3047 = vst [vmem:[%s3022] ss:$9 sm:$0xff] %v2499
        %3048 = vst [vmem:[%s3024] ss:$9 sm:$0xff] %v2569
        %3049 = vst [vmem:[%s3026] ss:$9 sm:$0xff] %v2969
        %3050 = vst [vmem:[%s3028] ss:$9 sm:$0xff] %v2970
        %3051 = vst [vmem:[%s3030] ss:$9 sm:$0xff] %v2971
        %3052 = vst [vmem:[%s3032] ss:$9 sm:$0xff] %v2972
        %3053 = vst [vmem:[%s3034] ss:$9 sm:$0xff] %v2973
        %v3054 = vld [vmem:[#allocation1] sm:$0xff]
        %3055 = vst [vmem:[#allocation1] ss:$9 sm:$0xff] %v2974
        %3056 = vst [vmem:[%s3022] ss:$9 sm:$0xff] %v2975
        %3057 = vst [vmem:[%s3024] ss:$9 sm:$0xff] %v2572
        %3058 = vst [vmem:[%s3026] ss:$9 sm:$0xff] %v2642
        %3059 = vst [vmem:[%s3028] ss:$9 sm:$0xff] %v2976
        %3060 = vst [vmem:[%s3030] ss:$9 sm:$0xff] %v2977
        %3061 = vst [vmem:[%s3032] ss:$9 sm:$0xff] %v2978
        %3062 = vst [vmem:[%s3034] ss:$9 sm:$0xff] %v2979
        %v3063 = vld [vmem:[#allocation1] sm:$0xff]
        %3064 = vst [vmem:[#allocation1] ss:$9 sm:$0xff] %v2980
        %3065 = vst [vmem:[%s3022] ss:$9 sm:$0xff] %v2981
        %3066 = vst [vmem:[%s3024] ss:$9 sm:$0xff] %v2982
        %3067 = vst [vmem:[%s3026] ss:$9 sm:$0xff] %v2645
        %3068 = vst [vmem:[%s3028] ss:$9 sm:$0xff] %v2715
        %3069 = vst [vmem:[%s3030] ss:$9 sm:$0xff] %v2983
        %3070 = vst [vmem:[%s3032] ss:$9 sm:$0xff] %v2984
        %3071 = vst [vmem:[%s3034] ss:$9 sm:$0xff] %v2985
        %v3072 = vld [vmem:[#allocation1] sm:$0xff]
        %3073 = vst [vmem:[#allocation1] ss:$9 sm:$0xff] %v2986
        %3074 = vst [vmem:[%s3022] ss:$9 sm:$0xff] %v2987
        %3075 = vst [vmem:[%s3024] ss:$9 sm:$0xff] %v2988
        %3076 = vst [vmem:[%s3026] ss:$9 sm:$0xff] %v2989
        %3077 = vst [vmem:[%s3028] ss:$9 sm:$0xff] %v2718
        %3078 = vst [vmem:[%s3030] ss:$9 sm:$0xff] %v2788
        %3079 = vst [vmem:[%s3032] ss:$9 sm:$0xff] %v2990
        %3080 = vst [vmem:[%s3034] ss:$9 sm:$0xff] %v2991
        %v3081 = vld [vmem:[#allocation1] sm:$0xff]
        %3082 = vst [vmem:[#allocation1] ss:$9 sm:$0xff] %v2992
        %3083 = vst [vmem:[%s3022] ss:$9 sm:$0xff] %v2993
        %3084 = vst [vmem:[%s3024] ss:$9 sm:$0xff] %v2994
        %3085 = vst [vmem:[%s3026] ss:$9 sm:$0xff] %v2995
        %3086 = vst [vmem:[%s3028] ss:$9 sm:$0xff] %v2996
        %3087 = vst [vmem:[%s3030] ss:$9 sm:$0xff] %v2791
        %3088 = vst [vmem:[%s3032] ss:$9 sm:$0xff] %v2861
        %3089 = vst [vmem:[%s3034] ss:$9 sm:$0xff] %v2997
        %v3090 = vld [vmem:[#allocation1] sm:$0xff]
        %3091 = vst [vmem:[#allocation1] ss:$9 sm:$0xff] %v2998
        %3092 = vst [vmem:[%s3022] ss:$9 sm:$0xff] %v2999
        %3093 = vst [vmem:[%s3024] ss:$9 sm:$0xff] %v3000
        %3094 = vst [vmem:[%s3026] ss:$9 sm:$0xff] %v3001
        %3095 = vst [vmem:[%s3028] ss:$9 sm:$0xff] %v3002
        %3096 = vst [vmem:[%s3030] ss:$9 sm:$0xff] %v3003
        %3097 = vst [vmem:[%s3032] ss:$9 sm:$0xff] %v2864
        %3098 = vst [vmem:[%s3034] ss:$9 sm:$0xff] %v2934
        %v3099 = vld [vmem:[#allocation1] sm:$0xff]
        %3100 = vst [vmem:[#allocation1] ss:$9 sm:$0xff] %v3004
        %3101 = vst [vmem:[%s3022] ss:$9 sm:$0xff] %v3005
        %3102 = vst [vmem:[%s3024] ss:$9 sm:$0xff] %v3006
        %3103 = vst [vmem:[%s3026] ss:$9 sm:$0xff] %v3007
        %3104 = vst [vmem:[%s3028] ss:$9 sm:$0xff] %v3008
        %3105 = vst [vmem:[%s3030] ss:$9 sm:$0xff] %v3009
        %3106 = vst [vmem:[%s3032] ss:$9 sm:$0xff] %v3010
        %3107 = vst [vmem:[%s3034] ss:$9 sm:$0xff] %v2937
        %v3108 = vld [vmem:[#allocation1] sm:$0xff]
        %v3109 = vsel %vm1652, %v3036, 0
        %v3111 = vsel %vm1652, %v3045, 0
        %v3113 = vsel %vm1652, %v3054, 0
        %v3115 = vsel %vm1652, %v3063, 0
        %v3117 = vsel %vm1652, %v3072, 0
        %v3119 = vsel %vm1652, %v3081, 0
        %v3121 = vsel %vm1652, %v3090, 0
        %v3123 = vsel %vm1652, %v3099, 0
        %v3125 = vsel %vm1652, %v3108, 0
        %3127 = vmatpush.msra.mxu0 0.0
        %3128 = vmatpush.msra.mxu0 0.0
        %3129 = vmatpush.msra.mxu0 0.0
        %3130 = vmatpush.msra.mxu0 0.0
        %3131 = vmatpush.msra.mxu0 0.0
        %3132 = vmatpush.msra.mxu0 0.0
        %3133 = vmatpush.msra.mxu0 0.0
        %3134 = vmatpush.msra.mxu0 0.0
        %3135 = vmatpush.msra.mxu0 0.0
        %3136 = vmatpush.msra.mxu0 0.0
        %3137 = vmatpush.msra.mxu0 0.0
        %3138 = vmatpush.msra.mxu0 0.0
        %3139 = vmatpush.msra.mxu0 %v3015
        %3140 = vmatpush.msra.mxu0 %v3014
        %3141 = vmatpush.msra.mxu0 %v3013
        %3142 = vmatpush.msra.mxu0 %v3012
        %3143 = vmatmul.f32.gmra.mxu0 %v3109
        %v3144 = vpop.f32.mrf.mxu0
        %v3145 = vadd.f32 %v3019, %v3144
        %3146 = vmatmul.f32.gmra.mxu0 %v3111
        %v3147 = vpop.f32.mrf.mxu0
        %v3148 = vadd.f32 %v3019, %v3147
        %3149 = vmatmul.f32.gmra.mxu0 %v3113
        %v3150 = vpop.f32.mrf.mxu0
        %v3151 = vadd.f32 %v3019, %v3150
        %3152 = vmatmul.f32.gmra.mxu0 %v3115
        %v3153 = vpop.f32.mrf.mxu0
        %v3154 = vadd.f32 %v3019, %v3153
        %3155 = vmatmul.f32.gmra.mxu0 %v3117
        %v3156 = vpop.f32.mrf.mxu0
        %v3157 = vadd.f32 %v3019, %v3156
        %3158 = vmatmul.f32.gmra.mxu0 %v3119
        %v3159 = vpop.f32.mrf.mxu0
        %v3160 = vadd.f32 %v3019, %v3159
        %3161 = vmatmul.f32.gmra.mxu0 %v3121
        %v3162 = vpop.f32.mrf.mxu0
        %v3163 = vadd.f32 %v3019, %v3162
        %3164 = vmatmul.f32.gmra.mxu0 %v3123
        %v3165 = vpop.f32.mrf.mxu0
        %v3166 = vadd.f32 %v3019, %v3165
        %3167 = vmatmul.f32.gmra.mxu0 %v3125
        %v3168 = vpop.f32.mrf.mxu0
        %v3169 = vadd.f32 %v3019, %v3168
        %3170 = vdwg.mxu0
        %s3171 = scalar_lea.vmem %s11, 144
        %v3172 = vld [vmem:[%s3171] sm:$0xff]
        %v3173 = vld [vmem:[%s3171 + $0x8] sm:$0xff]
        %v3174 = vld [vmem:[%s3171 + $0x10] sm:$0xff]
        %v3175 = vld [vmem:[%s3171 + $0x18] sm:$0xff]
        %v3176 = vld [vmem:[%s3171 + $0x20] sm:$0xff]
        %v3177 = vld [vmem:[%s3171 + $0x28] sm:$0xff]
        %v3178 = vld [vmem:[%s3171 + $0x30] sm:$0xff]
        %v3179 = vld [vmem:[%s3171 + $0x38] sm:$0xff]
        %v3180 = vld [vmem:[%s3171 + $0x40] sm:$0xff]
        %3182 = vset.pattern.permute.xlu0 0
        %3183 = vperm.xlu0 %3182, %v3172
        %v3184 = vpop.permute.xlu0 %3183
        %3187 = vset.pattern.permute.xlu0 0
        %3188 = vperm.xlu0 %3187, %v3173
        %v3189 = vpop.permute.xlu0 %3188
        %3192 = vset.pattern.permute.xlu0 0
        %3193 = vperm.xlu0 %3192, %v3174
        %v3194 = vpop.permute.xlu0 %3193
        %3197 = vset.pattern.permute.xlu0 0
        %3198 = vperm.xlu0 %3197, %v3175
        %v3199 = vpop.permute.xlu0 %3198
        %3202 = vset.pattern.permute.xlu0 0
        %3203 = vperm.xlu0 %3202, %v3176
        %v3204 = vpop.permute.xlu0 %3203
        %3207 = vset.pattern.permute.xlu0 0
        %3208 = vperm.xlu0 %3207, %v3177
        %v3209 = vpop.permute.xlu0 %3208
        %3212 = vset.pattern.permute.xlu0 0
        %3213 = vperm.xlu0 %3212, %v3178
        %v3214 = vpop.permute.xlu0 %3213
        %3217 = vset.pattern.permute.xlu0 0
        %3218 = vperm.xlu0 %3217, %v3179
        %v3219 = vpop.permute.xlu0 %3218
        %3222 = vset.pattern.permute.xlu0 0
        %3223 = vperm.xlu0 %3222, %v3180
        %v3224 = vpop.permute.xlu0 %3223
        %v3226 = vmul.f32 %v3145, %v3184
        %v3227 = vmul.f32 %v3148, %v3189
        %v3228 = vmul.f32 %v3151, %v3194
        %v3229 = vmul.f32 %v3154, %v3199
        %v3230 = vmul.f32 %v3157, %v3204
        %v3231 = vmul.f32 %v3160, %v3209
        %v3232 = vmul.f32 %v3163, %v3214
        %v3233 = vmul.f32 %v3166, %v3219
        %v3234 = vmul.f32 %v3169, %v3224
        %s3235 = scalar_lea.vmem %s12, 144
        %v3236 = vld [vmem:[%s3235] sm:$0xff]
        %v3237 = vld [vmem:[%s3235 + $0x8] sm:$0xff]
        %v3238 = vld [vmem:[%s3235 + $0x10] sm:$0xff]
        %v3239 = vld [vmem:[%s3235 + $0x18] sm:$0xff]
        %v3240 = vld [vmem:[%s3235 + $0x20] sm:$0xff]
        %v3241 = vld [vmem:[%s3235 + $0x28] sm:$0xff]
        %v3242 = vld [vmem:[%s3235 + $0x30] sm:$0xff]
        %v3243 = vld [vmem:[%s3235 + $0x38] sm:$0xff]
        %v3244 = vld [vmem:[%s3235 + $0x40] sm:$0xff]
        %3246 = vset.pattern.permute.xlu0 0
        %3247 = vperm.xlu0 %3246, %v3236
        %v3248 = vpop.permute.xlu0 %3247
        %3251 = vset.pattern.permute.xlu0 0
        %3252 = vperm.xlu0 %3251, %v3237
        %v3253 = vpop.permute.xlu0 %3252
        %3256 = vset.pattern.permute.xlu0 0
        %3257 = vperm.xlu0 %3256, %v3238
        %v3258 = vpop.permute.xlu0 %3257
        %3261 = vset.pattern.permute.xlu0 0
        %3262 = vperm.xlu0 %3261, %v3239
        %v3263 = vpop.permute.xlu0 %3262
        %3266 = vset.pattern.permute.xlu0 0
        %3267 = vperm.xlu0 %3266, %v3240
        %v3268 = vpop.permute.xlu0 %3267
        %3271 = vset.pattern.permute.xlu0 0
        %3272 = vperm.xlu0 %3271, %v3241
        %v3273 = vpop.permute.xlu0 %3272
        %3276 = vset.pattern.permute.xlu0 0
        %3277 = vperm.xlu0 %3276, %v3242
        %v3278 = vpop.permute.xlu0 %3277
        %3281 = vset.pattern.permute.xlu0 0
        %3282 = vperm.xlu0 %3281, %v3243
        %v3283 = vpop.permute.xlu0 %3282
        %3286 = vset.pattern.permute.xlu0 0
        %3287 = vperm.xlu0 %3286, %v3244
        %v3288 = vpop.permute.xlu0 %3287
        %v3290 = vadd.f32 %v3226, %v3248
        %v3291 = vadd.f32 %v3227, %v3253
        %v3292 = vadd.f32 %v3228, %v3258
        %v3293 = vadd.f32 %v3229, %v3263
        %v3294 = vadd.f32 %v3230, %v3268
        %v3295 = vadd.f32 %v3231, %v3273
        %v3296 = vadd.f32 %v3232, %v3278
        %v3297 = vadd.f32 %v3233, %v3283
        %v3298 = vadd.f32 %v3234, %v3288
        %v3299 = vmax.f32 %v3290, 0.0
        %v3300 = vmax.f32 %v3291, 0.0
        %v3301 = vmax.f32 %v3292, 0.0
        %v3302 = vmax.f32 %v3293, 0.0
        %v3303 = vmax.f32 %v3294, 0.0
        %v3304 = vmax.f32 %v3295, 0.0
        %v3305 = vmax.f32 %v3296, 0.0
        %v3306 = vmax.f32 %v3297, 0.0
        %v3307 = vmax.f32 %v3298, 0.0
        %s3308 = scalar_lea.vmem %s9, 32
        %v3309 = vld [vmem:[%s3308] sm:$0xff]
        %v3310 = vld [vmem:[%s3308 + $0x8] sm:$0xff]
        %v3311 = vld [vmem:[%s3308 + $0x10] sm:$0xff]
        %v3312 = vld [vmem:[%s3308 + $0x18] sm:$0xff]
        %s3313 = scalar_lea.vmem %s10, 1
        %v3314 = vld [vmem:[%s3313] sm:$0x1]
        %v3316 = vperm.slane %v3314, 0
        %v3319 = vsel %vm1652, %v3299, 0
        %v3322 = vsel %vm1652, %v3300, 0
        %v3325 = vsel %vm1652, %v3301, 0
        %v3328 = vsel %vm1652, %v3302, 0
        %v3331 = vsel %vm1652, %v3303, 0
        %v3334 = vsel %vm1652, %v3304, 0
        %v3337 = vsel %vm1652, %v3305, 0
        %v3340 = vsel %vm1652, %v3306, 0
        %v3343 = vsel %vm1652, %v3307, 0
        %3345 = vmatpush.msra.mxu0 0.0
        %3346 = vmatpush.msra.mxu0 0.0
        %3347 = vmatpush.msra.mxu0 0.0
        %3348 = vmatpush.msra.mxu0 0.0
        %3349 = vmatpush.msra.mxu0 0.0
        %3350 = vmatpush.msra.mxu0 0.0
        %3351 = vmatpush.msra.mxu0 0.0
        %3352 = vmatpush.msra.mxu0 0.0
        %3353 = vmatpush.msra.mxu0 0.0
        %3354 = vmatpush.msra.mxu0 0.0
        %3355 = vmatpush.msra.mxu0 0.0
        %3356 = vmatpush.msra.mxu0 0.0
        %3357 = vmatpush.msra.mxu0 %v3312
        %3358 = vmatpush.msra.mxu0 %v3311
        %3359 = vmatpush.msra.mxu0 %v3310
        %3360 = vmatpush.msra.mxu0 %v3309
        %3361 = vmatmul.f32.gmra.mxu0 %v3319
        %v3362 = vpop.f32.mrf.mxu0
        %v3363 = vadd.f32 %v3316, %v3362
        %3364 = vmatmul.f32.gmra.mxu0 %v3322
        %v3365 = vpop.f32.mrf.mxu0
        %v3366 = vadd.f32 %v3316, %v3365
        %3367 = vmatmul.f32.gmra.mxu0 %v3325
        %v3368 = vpop.f32.mrf.mxu0
        %v3369 = vadd.f32 %v3316, %v3368
        %3370 = vmatmul.f32.gmra.mxu0 %v3328
        %v3371 = vpop.f32.mrf.mxu0
        %v3372 = vadd.f32 %v3316, %v3371
        %3373 = vmatmul.f32.gmra.mxu0 %v3331
        %v3374 = vpop.f32.mrf.mxu0
        %v3375 = vadd.f32 %v3316, %v3374
        %3376 = vmatmul.f32.gmra.mxu0 %v3334
        %v3377 = vpop.f32.mrf.mxu0
        %v3378 = vadd.f32 %v3316, %v3377
        %3379 = vmatmul.f32.gmra.mxu0 %v3337
        %v3380 = vpop.f32.mrf.mxu0
        %v3381 = vadd.f32 %v3316, %v3380
        %3382 = vmatmul.f32.gmra.mxu0 %v3340
        %v3383 = vpop.f32.mrf.mxu0
        %v3384 = vadd.f32 %v3316, %v3383
        %3385 = vmatmul.f32.gmra.mxu0 %v3343
        %v3386 = vpop.f32.mrf.mxu0
        %v3387 = vadd.f32 %v3316, %v3386
        %3388 = vdwg.mxu0
        %s3389 = scalar_lea.vmem %s11, 216
        %v3390 = vld [vmem:[%s3389] sm:$0xff]
        %v3391 = vld [vmem:[%s3389 + $0x8] sm:$0xff]
        %v3392 = vld [vmem:[%s3389 + $0x10] sm:$0xff]
        %v3393 = vld [vmem:[%s3389 + $0x18] sm:$0xff]
        %v3394 = vld [vmem:[%s3389 + $0x20] sm:$0xff]
        %v3395 = vld [vmem:[%s3389 + $0x28] sm:$0xff]
        %v3396 = vld [vmem:[%s3389 + $0x30] sm:$0xff]
        %v3397 = vld [vmem:[%s3389 + $0x38] sm:$0xff]
        %v3398 = vld [vmem:[%s3389 + $0x40] sm:$0xff]
        %3400 = vset.pattern.permute.xlu0 0
        %3401 = vperm.xlu0 %3400, %v3390
        %v3402 = vpop.permute.xlu0 %3401
        %3405 = vset.pattern.permute.xlu0 0
        %3406 = vperm.xlu0 %3405, %v3391
        %v3407 = vpop.permute.xlu0 %3406
        %3410 = vset.pattern.permute.xlu0 0
        %3411 = vperm.xlu0 %3410, %v3392
        %v3412 = vpop.permute.xlu0 %3411
        %3415 = vset.pattern.permute.xlu0 0
        %3416 = vperm.xlu0 %3415, %v3393
        %v3417 = vpop.permute.xlu0 %3416
        %3420 = vset.pattern.permute.xlu0 0
        %3421 = vperm.xlu0 %3420, %v3394
        %v3422 = vpop.permute.xlu0 %3421
        %3425 = vset.pattern.permute.xlu0 0
        %3426 = vperm.xlu0 %3425, %v3395
        %v3427 = vpop.permute.xlu0 %3426
        %3430 = vset.pattern.permute.xlu0 0
        %3431 = vperm.xlu0 %3430, %v3396
        %v3432 = vpop.permute.xlu0 %3431
        %3435 = vset.pattern.permute.xlu0 0
        %3436 = vperm.xlu0 %3435, %v3397
        %v3437 = vpop.permute.xlu0 %3436
        %3440 = vset.pattern.permute.xlu0 0
        %3441 = vperm.xlu0 %3440, %v3398
        %v3442 = vpop.permute.xlu0 %3441
        %v3444 = vmul.f32 %v3363, %v3402
        %v3445 = vmul.f32 %v3366, %v3407
        %v3446 = vmul.f32 %v3369, %v3412
        %v3447 = vmul.f32 %v3372, %v3417
        %v3448 = vmul.f32 %v3375, %v3422
        %v3449 = vmul.f32 %v3378, %v3427
        %v3450 = vmul.f32 %v3381, %v3432
        %v3451 = vmul.f32 %v3384, %v3437
        %v3452 = vmul.f32 %v3387, %v3442
        %s3453 = scalar_lea.vmem %s12, 216
        %v3454 = vld [vmem:[%s3453] sm:$0xff]
        %v3455 = vld [vmem:[%s3453 + $0x8] sm:$0xff]
        %v3456 = vld [vmem:[%s3453 + $0x10] sm:$0xff]
        %v3457 = vld [vmem:[%s3453 + $0x18] sm:$0xff]
        %v3458 = vld [vmem:[%s3453 + $0x20] sm:$0xff]
        %v3459 = vld [vmem:[%s3453 + $0x28] sm:$0xff]
        %v3460 = vld [vmem:[%s3453 + $0x30] sm:$0xff]
        %v3461 = vld [vmem:[%s3453 + $0x38] sm:$0xff]
        %v3462 = vld [vmem:[%s3453 + $0x40] sm:$0xff]
        %3464 = vset.pattern.permute.xlu0 0
        %3465 = vperm.xlu0 %3464, %v3454
        %v3466 = vpop.permute.xlu0 %3465
        %3469 = vset.pattern.permute.xlu0 0
        %3470 = vperm.xlu0 %3469, %v3455
        %v3471 = vpop.permute.xlu0 %3470
        %3474 = vset.pattern.permute.xlu0 0
        %3475 = vperm.xlu0 %3474, %v3456
        %v3476 = vpop.permute.xlu0 %3475
        %3479 = vset.pattern.permute.xlu0 0
        %3480 = vperm.xlu0 %3479, %v3457
        %v3481 = vpop.permute.xlu0 %3480
        %3484 = vset.pattern.permute.xlu0 0
        %3485 = vperm.xlu0 %3484, %v3458
        %v3486 = vpop.permute.xlu0 %3485
        %3489 = vset.pattern.permute.xlu0 0
        %3490 = vperm.xlu0 %3489, %v3459
        %v3491 = vpop.permute.xlu0 %3490
        %3494 = vset.pattern.permute.xlu0 0
        %3495 = vperm.xlu0 %3494, %v3460
        %v3496 = vpop.permute.xlu0 %3495
        %3499 = vset.pattern.permute.xlu0 0
        %3500 = vperm.xlu0 %3499, %v3461
        %v3501 = vpop.permute.xlu0 %3500
        %3504 = vset.pattern.permute.xlu0 0
        %3505 = vperm.xlu0 %3504, %v3462
        %v3506 = vpop.permute.xlu0 %3505
        %v3508 = vadd.f32 %v3444, %v3466
        %v3509 = vadd.f32 %v3445, %v3471
        %v3510 = vadd.f32 %v3446, %v3476
        %v3511 = vadd.f32 %v3447, %v3481
        %v3512 = vadd.f32 %v3448, %v3486
        %v3513 = vadd.f32 %v3449, %v3491
        %v3514 = vadd.f32 %v3450, %v3496
        %v3515 = vadd.f32 %v3451, %v3501
        %v3516 = vadd.f32 %v3452, %v3506
        %v3517 = vmax.f32 %v3508, 0.0
        %v3518 = vmax.f32 %v3509, 0.0
        %v3519 = vmax.f32 %v3510, 0.0
        %v3520 = vmax.f32 %v3511, 0.0
        %v3521 = vmax.f32 %v3512, 0.0
        %v3522 = vmax.f32 %v3513, 0.0
        %v3523 = vmax.f32 %v3514, 0.0
        %v3524 = vmax.f32 %v3515, 0.0
        %v3525 = vmax.f32 %v3516, 0.0
        %v3526 = vadd.f32 %v2057, %v3517
        %v3527 = vadd.f32 %v2058, %v3518
        %v3528 = vadd.f32 %v2059, %v3519
        %v3529 = vadd.f32 %v2060, %v3520
        %v3530 = vadd.f32 %v2061, %v3521
        %v3531 = vadd.f32 %v2062, %v3522
        %v3532 = vadd.f32 %v2063, %v3523
        %v3533 = vadd.f32 %v2064, %v3524
        %v3534 = vadd.f32 %v2065, %v3525
        %v3535 = vld [vmem:[%s13] sm:$0xff]
        %v3536 = vld [vmem:[%s13 + $0x8] sm:$0xff]
        %v3537 = vld [vmem:[%s13 + $0x10] sm:$0xff]
        %v3538 = vld [vmem:[%s13 + $0x18] sm:$0xff]
        %v3539 = vld [vmem:[%s14] sm:$0x1]
        %v3540 = vmul.f32 %v3539, 2.0
        %v3542 = vperm.slane %v3540, 0
        %v3545 = vsel %vm1652, %v3526, 0
        %v3548 = vsel %vm1652, %v3527, 0
        %v3551 = vsel %vm1652, %v3528, 0
        %v3554 = vsel %vm1652, %v3529, 0
        %v3557 = vsel %vm1652, %v3530, 0
        %v3560 = vsel %vm1652, %v3531, 0
        %v3563 = vsel %vm1652, %v3532, 0
        %v3566 = vsel %vm1652, %v3533, 0
        %v3569 = vsel %vm1652, %v3534, 0
        %3571 = vmatpush.msra.mxu0 0.0
        %3572 = vmatpush.msra.mxu0 0.0
        %3573 = vmatpush.msra.mxu0 0.0
        %3574 = vmatpush.msra.mxu0 0.0
        %3575 = vmatpush.msra.mxu0 0.0
        %3576 = vmatpush.msra.mxu0 0.0
        %3577 = vmatpush.msra.mxu0 0.0
        %3578 = vmatpush.msra.mxu0 0.0
        %3579 = vmatpush.msra.mxu0 0.0
        %3580 = vmatpush.msra.mxu0 0.0
        %3581 = vmatpush.msra.mxu0 0.0
        %3582 = vmatpush.msra.mxu0 0.0
        %3583 = vmatpush.msra.mxu0 %v3538
        %3584 = vmatpush.msra.mxu0 %v3537
        %3585 = vmatpush.msra.mxu0 %v3536
        %3586 = vmatpush.msra.mxu0 %v3535
        %3587 = vmatmul.f32.gmra.mxu0 %v3545
        %v3588 = vpop.f32.mrf.mxu0
        %v3589 = vadd.f32 %v3542, %v3588
        %3590 = vmatmul.f32.gmra.mxu0 %v3548
        %v3591 = vpop.f32.mrf.mxu0
        %v3592 = vadd.f32 %v3542, %v3591
        %3593 = vmatmul.f32.gmra.mxu0 %v3551
        %v3594 = vpop.f32.mrf.mxu0
        %v3595 = vadd.f32 %v3542, %v3594
        %3596 = vmatmul.f32.gmra.mxu0 %v3554
        %v3597 = vpop.f32.mrf.mxu0
        %v3598 = vadd.f32 %v3542, %v3597
        %3599 = vmatmul.f32.gmra.mxu0 %v3557
        %v3600 = vpop.f32.mrf.mxu0
        %v3601 = vadd.f32 %v3542, %v3600
        %3602 = vmatmul.f32.gmra.mxu0 %v3560
        %v3603 = vpop.f32.mrf.mxu0
        %v3604 = vadd.f32 %v3542, %v3603
        %3605 = vmatmul.f32.gmra.mxu0 %v3563
        %v3606 = vpop.f32.mrf.mxu0
        %v3607 = vadd.f32 %v3542, %v3606
        %3608 = vmatmul.f32.gmra.mxu0 %v3566
        %v3609 = vpop.f32.mrf.mxu0
        %v3610 = vadd.f32 %v3542, %v3609
        %3611 = vmatmul.f32.gmra.mxu0 %v3569
        %v3612 = vpop.f32.mrf.mxu0
        %v3613 = vadd.f32 %v3542, %v3612
        %3614 = vdwg.mxu0
        %3615 = vst.msk [vmem:[%s535] sm:$0xff] %vm568, %v3589
        %3616 = vst.msk [vmem:[%s535 + $0x8] sm:$0xff] %vm568, %v3592
        %3617 = vst.msk [vmem:[%s535 + $0x10] sm:$0xff] %vm568, %v3595
        %3618 = vst.msk [vmem:[%s535 + $0x18] sm:$0xff] %vm568, %v3598
        %3619 = vst.msk [vmem:[%s535 + $0x20] sm:$0xff] %vm568, %v3601
        %3620 = vst.msk [vmem:[%s535 + $0x28] sm:$0xff] %vm568, %v3604
        %3621 = vst.msk [vmem:[%s535 + $0x30] sm:$0xff] %vm568, %v3607
        %3622 = vst.msk [vmem:[%s535 + $0x38] sm:$0xff] %vm568, %v3610
        %3623 = vst.msk [vmem:[%s535 + $0x40] sm:$0xff] %vm568, %v3613
        %s3624 = smul.u32 9, %s27
        %p3625 = scmp.lt.s32.totalorder %s3624, 17
        %s3626 = scalar_select %p3625, %s3624, 17
        %s3627 = smul.addr %s3626, 8
        %s3628 = scalar_lea.vmem %s15, %s3627
        // Predicated region
        $region85: #{tpu_custom_call.1} parent=79 // pred_check
          %p3629 = pneg %p370
        $region86: #{tpu_custom_call.1} parent=79 // pred_check_branch
          %3631 = sbr.rel (%p3629) target = $region88
        $region87: #{tpu_custom_call.1} parent=79 // pred_region
          %s3632 = smul.u32 9, %s27
        $region88: #{tpu_custom_call.1} parent=79 // pred_fallthru
          _
      $region80: #{tpu_custom_call.1} parent=5 // pred_fallthru
        _
      %p3633 = scmp.le.s32.totalorder 2, %s22
      // Predicated region
      $region89: #{tpu_custom_call.1} parent=5 // pred_check
        %p3634 = pneg %p3633
      $region90: #{tpu_custom_call.1} parent=5 // pred_check_branch
        %3636 = sbr.rel (%p3634) target = $region92
      $region91: #{tpu_custom_call.1} parent=5 // pred_region
        %s3637 = ssub.s32 %s22, 2
        // Predicated region
        $region93: #{tpu_custom_call.1} parent=91 // pred_check
          %p3638 = pneg %p376
        $region94: #{tpu_custom_call.1} parent=91 // pred_check_branch
          %3640 = sbr.rel (%p3638) target = $region96
        $region95: #{tpu_custom_call.1} parent=91 // pred_region
          %s3641 = smul.u32 9, %s28
          %p3642 = scmp.lt.s32.totalorder %s3641, 17
          %s3643 = scalar_select %p3642, %s3641, 17
          %s3644 = smul.addr %s3643, 8
          %s3645 = scalar_lea.vmem %s15, %s3644
        $region96: #{tpu_custom_call.1} parent=91 // pred_fallthru
          _
      $region92: #{tpu_custom_call.1} parent=5 // pred_fallthru
        _
    $region6: #{tpu_custom_call.1} parent=1 // loop_footer
      %s26 = sadd.s32 1, %s22
    $region7: #{tpu_custom_call.1} parent=1 // loop_footer_branch
      %21 = sbr.rel target = $region3
    $region8: #{tpu_custom_call.1} parent=1 // loop_exit
      _
    %3646 = vsyncpa [#allocation3], 1
    %s3647 = scalar_lea.sflag [#allocation3], 1
    %3648 = vsyncpa %s3647, 1

</llo_original>
